<compile_context>
chip_gen: v7x
topology: tpu7x:2x2x1
jax: 0.10.0
libtpu: 0.0.40
codegen_flags: <defaults>
</compile_context>

<pallas_src>
import jax
import jax.numpy as jnp
from jax.experimental import pallas as pl
from jax.experimental.pallas import tpu as pltpu


# Lane-aligned (padded) hidden dims: 2000 -> 2048, 500 -> 512.
_H1, _H2, _H3 = 2048, 512, 512


def _round_up(n, m):
    return (n + m - 1) // m * m


def _decoder_kernel(x_ref,
                    w1_ref, b1_ref,
                    w2_ref, b2_ref,
                    w3_ref, b3_ref,
                    w4_ref, b4_ref,
                    o_ref):
    # bf16 matmuls (native MXU rate), f32 accumulation, f32 bias/ReLU.
    x = x_ref[...].astype(jnp.bfloat16)

    # Linear(feature_dim, 2000) + ReLU
    h = jnp.dot(x, w1_ref[...], preferred_element_type=jnp.float32) + b1_ref[...]
    h = jnp.maximum(h, 0.0)

    # Linear(2000, 500)   (no activation, matches the PyTorch Sequential)
    h = jnp.dot(h.astype(jnp.bfloat16), w2_ref[...],
                preferred_element_type=jnp.float32) + b2_ref[...]

    # Linear(500, 500) + ReLU
    h = jnp.dot(h.astype(jnp.bfloat16), w3_ref[...],
                preferred_element_type=jnp.float32) + b3_ref[...]
    h = jnp.maximum(h, 0.0)

    # Linear(500, input_dim)
    y = jnp.dot(h.astype(jnp.bfloat16), w4_ref[...],
                preferred_element_type=jnp.float32) + b4_ref[...]
    o_ref[...] = y.astype(o_ref.dtype)


def prepare_decoder_params(params):
    """One-time glue: transpose PyTorch (out,in) weights to (in,out), cast to
    bf16, reshape biases to (1,out) in f32, zero-pad every dim to a lane
    multiple.  Zero padding is exact: padded input cols hit zero weight rows,
    padded hidden/output cols get zero weights + zero bias (=> 0, unaffected
    by ReLU / no-ReLU layers)."""
    def pad2(a, rows, cols):
        r, c = a.shape
        if (r, c) != (rows, cols):
            a = jnp.pad(a, ((0, rows - r), (0, cols - c)))
        return a

    def w_prep(w, rows, cols):   # weights -> (in, out) bf16
        return pad2(w.T, rows, cols).astype(jnp.bfloat16)

    def b_prep(b, cols):         # biases -> (1, out) f32
        return pad2(b.reshape(1, -1), 1, cols).astype(jnp.float32)

    feature_dim = params["w1"].shape[1]
    input_dim = params["w4"].shape[0]
    f_pad = _round_up(feature_dim, 128)
    o_pad = _round_up(input_dim, 128)

    prepared = dict(
        w1=w_prep(params["w1"], f_pad, _H1), b1=b_prep(params["b1"], _H1),
        w2=w_prep(params["w2"], _H1, _H2),   b2=b_prep(params["b2"], _H2),
        w3=w_prep(params["w3"], _H2, _H3),   b3=b_prep(params["b3"], _H3),
        w4=w_prep(params["w4"], _H3, o_pad), b4=b_prep(params["b4"], o_pad),
    )
    meta = dict(feature_dim=feature_dim, input_dim=input_dim,
                f_pad=f_pad, o_pad=o_pad)
    return prepared, meta


def _pick_block_b(b8):
    """b8 is the batch rounded up to a multiple of 8.
    Small batches: one tile (no padded rows, no duplicated weight DMA).
    Large batches: pick the tile in {512,256,128} minimizing row padding
    (prefer the bigger tile on ties -> fewer per-grid-step overheads on the
    single-TC v5e/v6e)."""
    if b8 <= 256:
        return b8
    best_key, best_cand = None, None
    for cand in (512, 256, 128):
        pad = _round_up(b8, cand) - b8
        key = (pad, -cand)               # minimize padding, then prefer larger tile
        if best_key is None or key < best_key:
            best_key, best_cand = key, cand
    return best_cand


def _vmem_cap_bytes():
    """Physical VMEM minus headroom for compiler-internal scratch."""
    try:
        cap = int(pltpu.get_tpu_info().vmem_capacity_bytes)
    except Exception:
        cap = 64 << 20                    # conservative default (v7x has 64 MiB)
    return cap - (8 << 20)


def _vmem_budget(block_b, f_pad, o_pad):
    # bf16 resident weights, f32 biases.
    w_bytes = 2 * (f_pad * _H1 + _H1 * _H2 + _H2 * _H3 + _H3 * o_pad)
    b_bytes = 4 * (_H1 + _H2 + _H3 + o_pad)
    # double-buffered f32 x / out tiles
    io_bytes = 2 * block_b * (f_pad + o_pad) * 4
    # live intermediates: f32 accumulators + bf16 casted copies
    act_bytes = block_b * (_H1 + _H2 + _H3 + o_pad) * 4 \
              + block_b * (f_pad + _H1 + _H2 + _H3) * 2
    footprint = w_bytes + b_bytes + io_bytes + act_bytes

    cap = _vmem_cap_bytes()
    budget = max(int(footprint * 1.3), 16 << 20)   # 30% headroom, 16 MiB floor
    budget = min(budget, cap)                      # generation-aware ceiling
    budget = max(budget, min(footprint, cap))      # never undercut the footprint
    return budget


def decoder_forward(x, prepared, meta):
    """x: (B, feature_dim) f32.  prepared/meta from prepare_decoder_params."""
    B, F = x.shape
    assert F == meta["feature_dim"], (F, meta["feature_dim"])
    f_pad, o_pad, input_dim = meta["f_pad"], meta["o_pad"], meta["input_dim"]

    b8 = _round_up(B, 8)
    block_b = _pick_block_b(b8)
    b_pad = _round_up(B, block_b)
    grid = (b_pad // block_b,)

    if (b_pad, f_pad) != (B, F):
        x = jnp.pad(x, ((0, b_pad - B), (0, f_pad - F)))

    # Only shard across both v7x TensorCores when per-step compute clearly
    # exceeds the duplicated resident-weight DMA; otherwise run sequentially.
    semantics = ("parallel",) if b_pad >= 1024 else ("arbitrary",)

    def resident(arr):
        # Full-array block, constant index map, single-buffered: the block
        # never changes across grid steps, so it is DMA'd once per call.
        nd = arr.ndim
        return pl.BlockSpec(arr.shape, lambda i, _nd=nd: (0,) * _nd,
                            pipeline_mode=pl.Buffered(1))

    p = prepared
    out = pl.pallas_call(
        _decoder_kernel,
        out_shape=jax.ShapeDtypeStruct((b_pad, o_pad), x.dtype),
        grid_spec=pltpu.PrefetchScalarGridSpec(
            num_scalar_prefetch=0,
            grid=grid,
            in_specs=[
                pl.BlockSpec((block_b, f_pad), lambda i: (i, 0)),   # x tile
                resident(p["w1"]), resident(p["b1"]),
                resident(p["w2"]), resident(p["b2"]),
                resident(p["w3"]), resident(p["b3"]),
                resident(p["w4"]), resident(p["b4"]),
            ],
            out_specs=pl.BlockSpec((block_b, o_pad), lambda i: (i, 0)),
        ),
        compiler_params=pltpu.CompilerParams(
            dimension_semantics=semantics,
            vmem_limit_bytes=_vmem_budget(block_b, f_pad, o_pad),
        ),
    )(x, p["w1"], p["b1"], p["w2"], p["b2"], p["w3"], p["b3"], p["w4"], p["b4"])

    # Slice off the row (batch) and column (output-lane) padding.
    return out[:B, :input_dim]


def init_decoder_params(key, input_dim, feature_dim, dtype=jnp.float32):
    """Deterministic synthetic init, PyTorch Linear shapes: weight (out, in), bias (out,)."""
    dims = [(2000, feature_dim), (500, 2000), (500, 500), (input_dim, 500)]
    params = {}
    for idx, (out_d, in_d) in enumerate(dims, start=1):
        key, kw, kb = jax.random.split(key, 3)
        bound = 1.0 / jnp.sqrt(in_d)
        params[f"w{idx}"] = jax.random.uniform(kw, (out_d, in_d), dtype,
                                               minval=-bound, maxval=bound)
        params[f"b{idx}"] = jax.random.uniform(kb, (out_d,), dtype,
                                               minval=-bound, maxval=bound)
    return params


def decoder_ref_f32(x, params):
    """Pure-JAX f32 reference matching the PyTorch forward exactly."""
    h = jnp.maximum(x @ params["w1"].T + params["b1"], 0.0)
    h = h @ params["w2"].T + params["b2"]
    h = jnp.maximum(h @ params["w3"].T + params["b3"], 0.0)
    return h @ params["w4"].T + params["b4"]


def decoder_ref_bf16(x, params):
    """Reference with the same bf16-weight / f32-accumulate quantization as the kernel."""
    def q(name):
        return params[name].astype(jnp.bfloat16).T

    h = jnp.dot(x.astype(jnp.bfloat16), q("w1"),
                preferred_element_type=jnp.float32) + params["b1"]
    h = jnp.maximum(h, 0.0)
    h = jnp.dot(h.astype(jnp.bfloat16), q("w2"),
                preferred_element_type=jnp.float32) + params["b2"]
    h = jnp.dot(h.astype(jnp.bfloat16), q("w3"),
                preferred_element_type=jnp.float32) + params["b3"]
    h = jnp.maximum(h, 0.0)
    return jnp.dot(h.astype(jnp.bfloat16), q("w4"),
                   preferred_element_type=jnp.float32) + params["b4"]


if __name__ == "__main__":
    input_dim = 64     # decoder output dim
    feature_dim = 32   # decoder input dim
    batch = 12         # exercises row padding (12 -> 16) and output-lane slicing

    key = jax.random.PRNGKey(0)
    key, kx = jax.random.split(key)
    x = jax.random.normal(kx, (batch, feature_dim), jnp.float32)
    params = init_decoder_params(key, input_dim, feature_dim)

    # One-time weight prep (transpose / pad / bf16 cast) -- NOT the per-call path.
    prepared, meta = prepare_decoder_params(params)
    prepared = jax.tree_util.tree_map(jax.block_until_ready, prepared)

    out = decoder_forward(x, prepared, meta)
    out = jax.block_until_ready(out)
    assert out.shape == (batch, input_dim), out.shape

    # Tight check against a reference quantized exactly like the kernel.
    ref_q = decoder_ref_bf16(x, params)
    err_q = float(jnp.max(jnp.abs(out - ref_q)))
    assert jnp.allclose(out, ref_q, atol=2e-3, rtol=2e-3), err_q

    # Loose check against the exact f32 PyTorch-equivalent forward
    # (bf16 weights/activations with f32 accumulation => ~1e-2 relative).
    ref = decoder_ref_f32(x, params)
    err = float(jnp.max(jnp.abs(out - ref)))
    assert jnp.allclose(out, ref, atol=5e-2, rtol=5e-2), err

    print("KERNEL_OK")
</pallas_src>

<mosaic_0001>
module attributes {stable_mosaic.version = 11 : i64} {
  func.func @_decoder_kernel(%arg0: i32, %arg1: memref<16x128xf32, #tpu.memory_space<vmem>>, %arg2: memref<128x2048xbf16, #tpu.memory_space<vmem>>, %arg3: memref<1x2048xf32, #tpu.memory_space<vmem>>, %arg4: memref<2048x512xbf16, #tpu.memory_space<vmem>>, %arg5: memref<1x512xf32, #tpu.memory_space<vmem>>, %arg6: memref<512x512xbf16, #tpu.memory_space<vmem>>, %arg7: memref<1x512xf32, #tpu.memory_space<vmem>>, %arg8: memref<512x128xbf16, #tpu.memory_space<vmem>>, %arg9: memref<1x128xf32, #tpu.memory_space<vmem>>, %arg10: memref<16x128xf32, #tpu.memory_space<vmem>>) attributes {dimension_semantics = [#tpu.dimension_semantics<arbitrary>], iteration_bounds = array<i64: 1>, scalar_prefetch = 0 : i64, scratch_operands = 0 : i64, tpu.core_type = #tpu.core_type<tc>, window_params = [{transform_indices = @transform_0, window_bounds = array<i64: 16, 128>}, {pipeline_mode = #tpu.pipeline_mode<synchronous>, transform_indices = @transform_1, window_bounds = array<i64: 128, 2048>}, {pipeline_mode = #tpu.pipeline_mode<synchronous>, transform_indices = @transform_2, window_bounds = array<i64: 1, 2048>}, {pipeline_mode = #tpu.pipeline_mode<synchronous>, transform_indices = @transform_3, window_bounds = array<i64: 2048, 512>}, {pipeline_mode = #tpu.pipeline_mode<synchronous>, transform_indices = @transform_4, window_bounds = array<i64: 1, 512>}, {pipeline_mode = #tpu.pipeline_mode<synchronous>, transform_indices = @transform_5, window_bounds = array<i64: 512, 512>}, {pipeline_mode = #tpu.pipeline_mode<synchronous>, transform_indices = @transform_6, window_bounds = array<i64: 1, 512>}, {pipeline_mode = #tpu.pipeline_mode<synchronous>, transform_indices = @transform_7, window_bounds = array<i64: 512, 128>}, {pipeline_mode = #tpu.pipeline_mode<synchronous>, transform_indices = @transform_8, window_bounds = array<i64: 1, 128>}, {transform_indices = @transform_9, window_bounds = array<i64: 16, 128>}]} {
    %c0 = arith.constant 0 : index
    %c0_0 = arith.constant 0 : index
    %0 = vector.load %arg1[%c0, %c0_0] : memref<16x128xf32, #tpu.memory_space<vmem>>, vector<16x128xf32>
    %1 = arith.truncf %0 : vector<16x128xf32> to vector<16x128xbf16>
    %c0_1 = arith.constant 0 : index
    %c0_2 = arith.constant 0 : index
    %2 = vector.load %arg2[%c0_1, %c0_2] : memref<128x2048xbf16, #tpu.memory_space<vmem>>, vector<128x2048xbf16>
    %cst = arith.constant dense<0.000000e+00> : vector<16x2048xf32>
    %3 = tpu.matmul %1, %2, %cst {dimension_numbers = #tpu.dot_dimension_numbers<[1], [0], [0], [1], [0, 0, 1, 1], [], []>} : vector<16x128xbf16>, vector<128x2048xbf16>, vector<16x2048xf32> -> vector<16x2048xf32>
    %c0_3 = arith.constant 0 : index
    %c0_4 = arith.constant 0 : index
    %4 = vector.load %arg3[%c0_3, %c0_4] : memref<1x2048xf32, #tpu.memory_space<vmem>>, vector<1x2048xf32>
    %5 = vector.broadcast %4 : vector<1x2048xf32> to vector<16x2048xf32>
    %6 = arith.addf %3, %5 : vector<16x2048xf32>
    %cst_5 = arith.constant 0.000000e+00 : f32
    %7 = vector.broadcast %cst_5 : f32 to vector<16x2048xf32>
    %8 = arith.maximumf %6, %7 : vector<16x2048xf32>
    %9 = arith.truncf %8 : vector<16x2048xf32> to vector<16x2048xbf16>
    %c0_6 = arith.constant 0 : index
    %c0_7 = arith.constant 0 : index
    %10 = vector.load %arg4[%c0_6, %c0_7] : memref<2048x512xbf16, #tpu.memory_space<vmem>>, vector<2048x512xbf16>
    %cst_8 = arith.constant dense<0.000000e+00> : vector<16x512xf32>
    %11 = tpu.matmul %9, %10, %cst_8 {dimension_numbers = #tpu.dot_dimension_numbers<[1], [0], [0], [1], [0, 0, 1, 1], [], []>} : vector<16x2048xbf16>, vector<2048x512xbf16>, vector<16x512xf32> -> vector<16x512xf32>
    %c0_9 = arith.constant 0 : index
    %c0_10 = arith.constant 0 : index
    %12 = vector.load %arg5[%c0_9, %c0_10] : memref<1x512xf32, #tpu.memory_space<vmem>>, vector<1x512xf32>
    %13 = vector.broadcast %12 : vector<1x512xf32> to vector<16x512xf32>
    %14 = arith.addf %11, %13 : vector<16x512xf32>
    %15 = arith.truncf %14 : vector<16x512xf32> to vector<16x512xbf16>
    %c0_11 = arith.constant 0 : index
    %c0_12 = arith.constant 0 : index
    %16 = vector.load %arg6[%c0_11, %c0_12] : memref<512x512xbf16, #tpu.memory_space<vmem>>, vector<512x512xbf16>
    %cst_13 = arith.constant dense<0.000000e+00> : vector<16x512xf32>
    %17 = tpu.matmul %15, %16, %cst_13 {dimension_numbers = #tpu.dot_dimension_numbers<[1], [0], [0], [1], [0, 0, 1, 1], [], []>} : vector<16x512xbf16>, vector<512x512xbf16>, vector<16x512xf32> -> vector<16x512xf32>
    %c0_14 = arith.constant 0 : index
    %c0_15 = arith.constant 0 : index
    %18 = vector.load %arg7[%c0_14, %c0_15] : memref<1x512xf32, #tpu.memory_space<vmem>>, vector<1x512xf32>
    %19 = vector.broadcast %18 : vector<1x512xf32> to vector<16x512xf32>
    %20 = arith.addf %17, %19 : vector<16x512xf32>
    %cst_16 = arith.constant 0.000000e+00 : f32
    %21 = vector.broadcast %cst_16 : f32 to vector<16x512xf32>
    %22 = arith.maximumf %20, %21 : vector<16x512xf32>
    %23 = arith.truncf %22 : vector<16x512xf32> to vector<16x512xbf16>
    %c0_17 = arith.constant 0 : index
    %c0_18 = arith.constant 0 : index
    %24 = vector.load %arg8[%c0_17, %c0_18] : memref<512x128xbf16, #tpu.memory_space<vmem>>, vector<512x128xbf16>
    %cst_19 = arith.constant dense<0.000000e+00> : vector<16x128xf32>
    %25 = tpu.matmul %23, %24, %cst_19 {dimension_numbers = #tpu.dot_dimension_numbers<[1], [0], [0], [1], [0, 0, 1, 1], [], []>} : vector<16x512xbf16>, vector<512x128xbf16>, vector<16x128xf32> -> vector<16x128xf32>
    %c0_20 = arith.constant 0 : index
    %c0_21 = arith.constant 0 : index
    %26 = vector.load %arg9[%c0_20, %c0_21] : memref<1x128xf32, #tpu.memory_space<vmem>>, vector<1x128xf32>
    %27 = vector.broadcast %26 : vector<1x128xf32> to vector<16x128xf32>
    %28 = arith.addf %25, %27 : vector<16x128xf32>
    %c0_22 = arith.constant 0 : index
    %c0_23 = arith.constant 0 : index
    %29 = vector.load %arg10[%c0_22, %c0_23] : memref<16x128xf32, #tpu.memory_space<vmem>>, vector<16x128xf32>
    tpu.vector_store %arg10[%c0_22, %c0_23], %28 {strides = array<i32>} : memref<16x128xf32, #tpu.memory_space<vmem>>, vector<16x128xf32>,
    return
  }
  func.func @transform_0(%arg0: i32) -> (i32, i32) {
    %c0_i32 = arith.constant 0 : i32
    %c0_i32_0 = arith.constant 0 : i32
    return %arg0, %c0_i32 : i32, i32
  }
  func.func @transform_1(%arg0: i32) -> (i32, i32) {
    %c0_i32 = arith.constant 0 : i32
    %c0_i32_0 = arith.constant 0 : i32
    %c0_i32_1 = arith.constant 0 : i32
    return %c0_i32, %c0_i32_0 : i32, i32
  }
  func.func @transform_2(%arg0: i32) -> (i32, i32) {
    %c0_i32 = arith.constant 0 : i32
    %c0_i32_0 = arith.constant 0 : i32
    %c0_i32_1 = arith.constant 0 : i32
    return %c0_i32, %c0_i32_0 : i32, i32
  }
  func.func @transform_3(%arg0: i32) -> (i32, i32) {
    %c0_i32 = arith.constant 0 : i32
    %c0_i32_0 = arith.constant 0 : i32
    %c0_i32_1 = arith.constant 0 : i32
    return %c0_i32, %c0_i32_0 : i32, i32
  }
  func.func @transform_4(%arg0: i32) -> (i32, i32) {
    %c0_i32 = arith.constant 0 : i32
    %c0_i32_0 = arith.constant 0 : i32
    %c0_i32_1 = arith.constant 0 : i32
    return %c0_i32, %c0_i32_0 : i32, i32
  }
  func.func @transform_5(%arg0: i32) -> (i32, i32) {
    %c0_i32 = arith.constant 0 : i32
    %c0_i32_0 = arith.constant 0 : i32
    %c0_i32_1 = arith.constant 0 : i32
    return %c0_i32, %c0_i32_0 : i32, i32
  }
  func.func @transform_6(%arg0: i32) -> (i32, i32) {
    %c0_i32 = arith.constant 0 : i32
    %c0_i32_0 = arith.constant 0 : i32
    %c0_i32_1 = arith.constant 0 : i32
    return %c0_i32, %c0_i32_0 : i32, i32
  }
  func.func @transform_7(%arg0: i32) -> (i32, i32) {
    %c0_i32 = arith.constant 0 : i32
    %c0_i32_0 = arith.constant 0 : i32
    %c0_i32_1 = arith.constant 0 : i32
    return %c0_i32, %c0_i32_0 : i32, i32
  }
  func.func @transform_8(%arg0: i32) -> (i32, i32) {
    %c0_i32 = arith.constant 0 : i32
    %c0_i32_0 = arith.constant 0 : i32
    %c0_i32_1 = arith.constant 0 : i32
    return %c0_i32, %c0_i32_0 : i32, i32
  }
  func.func @transform_9(%arg0: i32) -> (i32, i32) {
    %c0_i32 = arith.constant 0 : i32
    %c0_i32_0 = arith.constant 0 : i32
    return %arg0, %c0_i32 : i32, i32
  }
}

</mosaic_0001>

<llo_original>
// kernel: tpu_custom_call.1
$region0: #{tpu_custom_call.1}
  #allocation0 [shape = 'u32[]', space=smem, size = 0x4, offset = 0x4, fixed_abs, tag = 'smem constant byte address 0x4 - core index']
  #allocation1 [shape = 'u32[144,128]{1,0:T(1,128)}', space=vmem, size = 0x12000, scoped, tag = 'internal scratch']
  %s0 = inlined_call_operand.hbm [shape: f32[16,128], index: 0, kind: input, shape index: {}]
  %s1 = inlined_call_operand.hbm [shape: bf16[128,2048], index: 1, kind: input, shape index: {}]
  %s2 = inlined_call_operand.hbm [shape: f32[1,2048], index: 2, kind: input, shape index: {}]
  %s3 = inlined_call_operand.hbm [shape: bf16[2048,512], index: 3, kind: input, shape index: {}]
  %s4 = inlined_call_operand.hbm [shape: f32[1,512], index: 4, kind: input, shape index: {}]
  %s5 = inlined_call_operand.hbm [shape: bf16[512,512], index: 5, kind: input, shape index: {}]
  %s6 = inlined_call_operand.hbm [shape: f32[1,512], index: 6, kind: input, shape index: {}]
  %s7 = inlined_call_operand.hbm [shape: bf16[512,128], index: 7, kind: input, shape index: {}]
  %s8 = inlined_call_operand.hbm [shape: f32[1,128], index: 8, kind: input, shape index: {}]
  %s9 = inlined_call_operand.hbm [shape: f32[16,128], index: 9, kind: output, shape index: {}]
  %s10 = sld [smem:[#allocation0]]
  $region82: #{tpu_custom_call.1} parent=0
    _
  %s12 = ssub.s32 1, %s10
  %s13 = scalar_select 0, %s12, %s10
  $region1: #{tpu_custom_call.1} parent=0
    #allocation2 [shape = 'u8[8192]{0}', space=vmem, size = 0x2000, scoped, tag = 'input window, operand 0, single buffered']
    #allocation3 [shape = 's32[1]{0}', space=sflag, size = 0x4, scoped, tag = 'scoped memory for tpu_custom_call.1']
    #allocation4 [shape = 's32[1]{0}', space=sflag, size = 0x4, scoped, tag = 'scoped memory for tpu_custom_call.1']
    #allocation5 [shape = 'u8[524288]{0}', space=vmem, size = 0x80000, scoped, tag = 'input window, operand 1, single buffered']
    #allocation6 [shape = 's32[1]{0}', space=sflag, size = 0x4, scoped, tag = 'scoped memory for tpu_custom_call.1']
    #allocation7 [shape = 'u8[8192]{0}', space=vmem, size = 0x2000, scoped, tag = 'input window, operand 2, single buffered']
    #allocation8 [shape = 'u8[2097152]{0}', space=vmem, size = 0x200000, scoped, tag = 'input window, operand 3, single buffered']
    #allocation9 [shape = 's32[1]{0}', space=sflag, size = 0x4, scoped, tag = 'scoped memory for tpu_custom_call.1']
    #allocation10 [shape = 'u8[2048]{0}', space=vmem, size = 0x800, scoped, tag = 'input window, operand 4, single buffered']
    #allocation11 [shape = 'u8[524288]{0}', space=vmem, size = 0x80000, scoped, tag = 'input window, operand 5, single buffered']
    #allocation12 [shape = 's32[1]{0}', space=sflag, size = 0x4, scoped, tag = 'scoped memory for tpu_custom_call.1']
    #allocation13 [shape = 'u8[2048]{0}', space=vmem, size = 0x800, scoped, tag = 'input window, operand 6, single buffered']
    #allocation14 [shape = 'u8[131072]{0}', space=vmem, size = 0x20000, scoped, tag = 'input window, operand 7, single buffered']
    #allocation15 [shape = 's32[1]{0}', space=sflag, size = 0x4, scoped, tag = 'scoped memory for tpu_custom_call.1']
    #allocation16 [shape = 'u8[512]{0}', space=vmem, size = 0x400, scoped, tag = 'input window, operand 8, single buffered']
    #allocation17 [shape = 'u8[8192]{0}', space=vmem, size = 0x2000, scoped, tag = 'output window, operand 0, single buffered']
    %14 = vsyncpa [#allocation3], 0
    %15 = vsyncpa [#allocation6], 0
    %16 = vsyncpa [#allocation9], 0
    %17 = vsyncpa [#allocation12], 0
    %18 = vsyncpa [#allocation15], 0
    %19 = vsyncpa [#allocation4], 0
    // Predicated region
    $region2: #{tpu_custom_call.1} parent=1 // pred_check
      _
    $region3: #{tpu_custom_call.1} parent=1 // pred_check_branch
      %21 = sbr.rel (0) target = $region5
    $region4: #{tpu_custom_call.1} parent=1 // pred_region
      %s23 = ssub.s32 256, 256
      %24 = vsyncadd [#allocation3], %s23
      %s25 = sshll.u32 [#allocation2], 4
      %s26 = int_to_ptr.vmem [resolvable:$true] %s25
      %31 = dma.hbm_to_vmem [thread:$0]  %s0, 256, %s26, [#allocation3], 128, 128, 8
    $region5: #{tpu_custom_call.1} parent=1 // pred_fallthru
      _
    // Predicated region
    $region6: #{tpu_custom_call.1} parent=1 // pred_check
      _
    $region7: #{tpu_custom_call.1} parent=1 // pred_check_branch
      %33 = sbr.rel (0) target = $region9
    $region8: #{tpu_custom_call.1} parent=1 // pred_region
      %s35 = ssub.s32 16384, 16384
      %36 = vsyncadd [#allocation6], %s35
      %s37 = sshll.u32 [#allocation5], 4
      %s38 = int_to_ptr.vmem [resolvable:$true] %s37
      %43 = dma.hbm_to_vmem [thread:$0]  %s1, 16384, %s38, [#allocation6], 1024, 1024, 64
    $region9: #{tpu_custom_call.1} parent=1 // pred_fallthru
      _
    // Predicated region
    $region10: #{tpu_custom_call.1} parent=1 // pred_check
      _
    $region11: #{tpu_custom_call.1} parent=1 // pred_check_branch
      %45 = sbr.rel (0) target = $region13
    $region12: #{tpu_custom_call.1} parent=1 // pred_region
      %s47 = ssub.s32 256, 256
      %48 = vsyncadd [#allocation6], %s47
      %s50 = sshll.u32 [#allocation7], 4
      %s51 = int_to_ptr.vmem [resolvable:$true] %s50
      %53 = dma.hbm_to_vmem [thread:$0]  %s2, 256, %s51, [#allocation6]
    $region13: #{tpu_custom_call.1} parent=1 // pred_fallthru
      _
    // Predicated region
    $region14: #{tpu_custom_call.1} parent=1 // pred_check
      _
    $region15: #{tpu_custom_call.1} parent=1 // pred_check_branch
      %55 = sbr.rel (0) target = $region17
    $region16: #{tpu_custom_call.1} parent=1 // pred_region
      %s57 = ssub.s32 65536, 65536
      %58 = vsyncadd [#allocation9], %s57
      %s59 = sshll.u32 [#allocation8], 4
      %s60 = int_to_ptr.vmem [resolvable:$true] %s59
      %65 = dma.hbm_to_vmem [thread:$0]  %s3, 65536, %s60, [#allocation9], 256, 256, 16
    $region17: #{tpu_custom_call.1} parent=1 // pred_fallthru
      _
    // Predicated region
    $region18: #{tpu_custom_call.1} parent=1 // pred_check
      _
    $region19: #{tpu_custom_call.1} parent=1 // pred_check_branch
      %67 = sbr.rel (0) target = $region21
    $region20: #{tpu_custom_call.1} parent=1 // pred_region
      %s69 = ssub.s32 64, 64
      %70 = vsyncadd [#allocation9], %s69
      %s72 = sshll.u32 [#allocation10], 4
      %s73 = int_to_ptr.vmem [resolvable:$true] %s72
      %75 = dma.hbm_to_vmem [thread:$0]  %s4, 64, %s73, [#allocation9]
    $region21: #{tpu_custom_call.1} parent=1 // pred_fallthru
      _
    // Predicated region
    $region22: #{tpu_custom_call.1} parent=1 // pred_check
      _
    $region23: #{tpu_custom_call.1} parent=1 // pred_check_branch
      %77 = sbr.rel (0) target = $region25
    $region24: #{tpu_custom_call.1} parent=1 // pred_region
      %s79 = ssub.s32 16384, 16384
      %80 = vsyncadd [#allocation12], %s79
      %s81 = sshll.u32 [#allocation11], 4
      %s82 = int_to_ptr.vmem [resolvable:$true] %s81
      %87 = dma.hbm_to_vmem [thread:$0]  %s5, 16384, %s82, [#allocation12], 256, 256, 16
    $region25: #{tpu_custom_call.1} parent=1 // pred_fallthru
      _
    // Predicated region
    $region26: #{tpu_custom_call.1} parent=1 // pred_check
      _
    $region27: #{tpu_custom_call.1} parent=1 // pred_check_branch
      %89 = sbr.rel (0) target = $region29
    $region28: #{tpu_custom_call.1} parent=1 // pred_region
      %s91 = ssub.s32 64, 64
      %92 = vsyncadd [#allocation12], %s91
      %s94 = sshll.u32 [#allocation13], 4
      %s95 = int_to_ptr.vmem [resolvable:$true] %s94
      %97 = dma.hbm_to_vmem [thread:$0]  %s6, 64, %s95, [#allocation12]
    $region29: #{tpu_custom_call.1} parent=1 // pred_fallthru
      _
    // Predicated region
    $region30: #{tpu_custom_call.1} parent=1 // pred_check
      _
    $region31: #{tpu_custom_call.1} parent=1 // pred_check_branch
      %99 = sbr.rel (0) target = $region33
    $region32: #{tpu_custom_call.1} parent=1 // pred_region
      %s101 = ssub.s32 4096, 4096
      %102 = vsyncadd [#allocation15], %s101
      %s103 = sshll.u32 [#allocation14], 4
      %s104 = int_to_ptr.vmem [resolvable:$true] %s103
      %109 = dma.hbm_to_vmem [thread:$0]  %s7, 4096, %s104, [#allocation15], 64, 64, 4
    $region33: #{tpu_custom_call.1} parent=1 // pred_fallthru
      _
    // Predicated region
    $region34: #{tpu_custom_call.1} parent=1 // pred_check
      _
    $region35: #{tpu_custom_call.1} parent=1 // pred_check_branch
      %111 = sbr.rel (0) target = $region37
    $region36: #{tpu_custom_call.1} parent=1 // pred_region
      %s113 = ssub.s32 16, 16
      %114 = vsyncadd [#allocation15], %s113
      %s116 = sshll.u32 [#allocation16], 4
      %s117 = int_to_ptr.vmem [resolvable:$true] %s116
      %119 = dma.hbm_to_vmem [thread:$0]  %s8, 16, %s117, [#allocation15]
    $region37: #{tpu_custom_call.1} parent=1 // pred_fallthru
      _
    // Predicated region
    $region38: #{tpu_custom_call.1} parent=1 // pred_check
      _
    $region39: #{tpu_custom_call.1} parent=1 // pred_check_branch
      %121 = sbr.rel (0) target = $region41
    $region40: #{tpu_custom_call.1} parent=1 // pred_region
      %122 = dma.done [#allocation3], 256
    $region41: #{tpu_custom_call.1} parent=1 // pred_fallthru
      _
    // Predicated region
    $region42: #{tpu_custom_call.1} parent=1 // pred_check
      _
    $region43: #{tpu_custom_call.1} parent=1 // pred_check_branch
      %124 = sbr.rel (0) target = $region45
    $region44: #{tpu_custom_call.1} parent=1 // pred_region
      %125 = dma.done [#allocation6], 16384
    $region45: #{tpu_custom_call.1} parent=1 // pred_fallthru
      _
    // Predicated region
    $region46: #{tpu_custom_call.1} parent=1 // pred_check
      _
    $region47: #{tpu_custom_call.1} parent=1 // pred_check_branch
      %127 = sbr.rel (0) target = $region49
    $region48: #{tpu_custom_call.1} parent=1 // pred_region
      %128 = dma.done [#allocation6], 256
    $region49: #{tpu_custom_call.1} parent=1 // pred_fallthru
      _
    // Predicated region
    $region50: #{tpu_custom_call.1} parent=1 // pred_check
      _
    $region51: #{tpu_custom_call.1} parent=1 // pred_check_branch
      %130 = sbr.rel (0) target = $region53
    $region52: #{tpu_custom_call.1} parent=1 // pred_region
      %131 = dma.done [#allocation9], 65536
    $region53: #{tpu_custom_call.1} parent=1 // pred_fallthru
      _
    // Predicated region
    $region54: #{tpu_custom_call.1} parent=1 // pred_check
      _
    $region55: #{tpu_custom_call.1} parent=1 // pred_check_branch
      %133 = sbr.rel (0) target = $region57
    $region56: #{tpu_custom_call.1} parent=1 // pred_region
      %134 = dma.done [#allocation9], 64
    $region57: #{tpu_custom_call.1} parent=1 // pred_fallthru
      _
    // Predicated region
    $region58: #{tpu_custom_call.1} parent=1 // pred_check
      _
    $region59: #{tpu_custom_call.1} parent=1 // pred_check_branch
      %136 = sbr.rel (0) target = $region61
    $region60: #{tpu_custom_call.1} parent=1 // pred_region
      %137 = dma.done [#allocation12], 16384
    $region61: #{tpu_custom_call.1} parent=1 // pred_fallthru
      _
    // Predicated region
    $region62: #{tpu_custom_call.1} parent=1 // pred_check
      _
    $region63: #{tpu_custom_call.1} parent=1 // pred_check_branch
      %139 = sbr.rel (0) target = $region65
    $region64: #{tpu_custom_call.1} parent=1 // pred_region
      %140 = dma.done [#allocation12], 64
    $region65: #{tpu_custom_call.1} parent=1 // pred_fallthru
      _
    // Predicated region
    $region66: #{tpu_custom_call.1} parent=1 // pred_check
      _
    $region67: #{tpu_custom_call.1} parent=1 // pred_check_branch
      %142 = sbr.rel (0) target = $region69
    $region68: #{tpu_custom_call.1} parent=1 // pred_region
      %143 = dma.done [#allocation15], 4096
    $region69: #{tpu_custom_call.1} parent=1 // pred_fallthru
      _
    // Predicated region
    $region70: #{tpu_custom_call.1} parent=1 // pred_check
      _
    $region71: #{tpu_custom_call.1} parent=1 // pred_check_branch
      %145 = sbr.rel (0) target = $region73
    $region72: #{tpu_custom_call.1} parent=1 // pred_region
      %146 = dma.done [#allocation15], 16
    $region73: #{tpu_custom_call.1} parent=1 // pred_fallthru
      _
    %v148 = vld [vmem:[#allocation2] sm:$0xff]
    %v149 = vld [vmem:[#allocation2 + $0x8] sm:$0xff]
    %v150 = vpack.c.bf16 %v149, %v148
    %v151 = vld [vmem:[#allocation5] sm:$0xff]
    %v152 = vld [vmem:[#allocation5 + $0x8] sm:$0xff]
    %v153 = vld [vmem:[#allocation5 + $0x10] sm:$0xff]
    %v154 = vld [vmem:[#allocation5 + $0x18] sm:$0xff]
    %v155 = vld [vmem:[#allocation5 + $0x20] sm:$0xff]
    %v156 = vld [vmem:[#allocation5 + $0x28] sm:$0xff]
    %v157 = vld [vmem:[#allocation5 + $0x30] sm:$0xff]
    %v158 = vld [vmem:[#allocation5 + $0x38] sm:$0xff]
    %v159 = vld [vmem:[#allocation5 + $0x40] sm:$0xff]
    %v160 = vld [vmem:[#allocation5 + $0x48] sm:$0xff]
    %v161 = vld [vmem:[#allocation5 + $0x50] sm:$0xff]
    %v162 = vld [vmem:[#allocation5 + $0x58] sm:$0xff]
    %v163 = vld [vmem:[#allocation5 + $0x60] sm:$0xff]
    %v164 = vld [vmem:[#allocation5 + $0x68] sm:$0xff]
    %v165 = vld [vmem:[#allocation5 + $0x70] sm:$0xff]
    %v166 = vld [vmem:[#allocation5 + $0x78] sm:$0xff]
    %v167 = vld [vmem:[#allocation5 + $0x80] sm:$0xff]
    %v168 = vld [vmem:[#allocation5 + $0x88] sm:$0xff]
    %v169 = vld [vmem:[#allocation5 + $0x90] sm:$0xff]
    %v170 = vld [vmem:[#allocation5 + $0x98] sm:$0xff]
    %v171 = vld [vmem:[#allocation5 + $0xa0] sm:$0xff]
    %v172 = vld [vmem:[#allocation5 + $0xa8] sm:$0xff]
    %v173 = vld [vmem:[#allocation5 + $0xb0] sm:$0xff]
    %v174 = vld [vmem:[#allocation5 + $0xb8] sm:$0xff]
    %v175 = vld [vmem:[#allocation5 + $0xc0] sm:$0xff]
    %v176 = vld [vmem:[#allocation5 + $0xc8] sm:$0xff]
    %v177 = vld [vmem:[#allocation5 + $0xd0] sm:$0xff]
    %v178 = vld [vmem:[#allocation5 + $0xd8] sm:$0xff]
    %v179 = vld [vmem:[#allocation5 + $0xe0] sm:$0xff]
    %v180 = vld [vmem:[#allocation5 + $0xe8] sm:$0xff]
    %v181 = vld [vmem:[#allocation5 + $0xf0] sm:$0xff]
    %v182 = vld [vmem:[#allocation5 + $0xf8] sm:$0xff]
    %v183 = vld [vmem:[#allocation5 + $0x100] sm:$0xff]
    %v184 = vld [vmem:[#allocation5 + $0x108] sm:$0xff]
    %v185 = vld [vmem:[#allocation5 + $0x110] sm:$0xff]
    %v186 = vld [vmem:[#allocation5 + $0x118] sm:$0xff]
    %v187 = vld [vmem:[#allocation5 + $0x120] sm:$0xff]
    %v188 = vld [vmem:[#allocation5 + $0x128] sm:$0xff]
    %v189 = vld [vmem:[#allocation5 + $0x130] sm:$0xff]
    %v190 = vld [vmem:[#allocation5 + $0x138] sm:$0xff]
    %v191 = vld [vmem:[#allocation5 + $0x140] sm:$0xff]
    %v192 = vld [vmem:[#allocation5 + $0x148] sm:$0xff]
    %v193 = vld [vmem:[#allocation5 + $0x150] sm:$0xff]
    %v194 = vld [vmem:[#allocation5 + $0x158] sm:$0xff]
    %v195 = vld [vmem:[#allocation5 + $0x160] sm:$0xff]
    %v196 = vld [vmem:[#allocation5 + $0x168] sm:$0xff]
    %v197 = vld [vmem:[#allocation5 + $0x170] sm:$0xff]
    %v198 = vld [vmem:[#allocation5 + $0x178] sm:$0xff]
    %v199 = vld [vmem:[#allocation5 + $0x180] sm:$0xff]
    %v200 = vld [vmem:[#allocation5 + $0x188] sm:$0xff]
    %v201 = vld [vmem:[#allocation5 + $0x190] sm:$0xff]
    %v202 = vld [vmem:[#allocation5 + $0x198] sm:$0xff]
    %v203 = vld [vmem:[#allocation5 + $0x1a0] sm:$0xff]
    %v204 = vld [vmem:[#allocation5 + $0x1a8] sm:$0xff]
    %v205 = vld [vmem:[#allocation5 + $0x1b0] sm:$0xff]
    %v206 = vld [vmem:[#allocation5 + $0x1b8] sm:$0xff]
    %v207 = vld [vmem:[#allocation5 + $0x1c0] sm:$0xff]
    %v208 = vld [vmem:[#allocation5 + $0x1c8] sm:$0xff]
    %v209 = vld [vmem:[#allocation5 + $0x1d0] sm:$0xff]
    %v210 = vld [vmem:[#allocation5 + $0x1d8] sm:$0xff]
    %v211 = vld [vmem:[#allocation5 + $0x1e0] sm:$0xff]
    %v212 = vld [vmem:[#allocation5 + $0x1e8] sm:$0xff]
    %v213 = vld [vmem:[#allocation5 + $0x1f0] sm:$0xff]
    %v214 = vld [vmem:[#allocation5 + $0x1f8] sm:$0xff]
    %v215 = vld [vmem:[#allocation5 + $0x200] sm:$0xff]
    %v216 = vld [vmem:[#allocation5 + $0x208] sm:$0xff]
    %v217 = vld [vmem:[#allocation5 + $0x210] sm:$0xff]
    %v218 = vld [vmem:[#allocation5 + $0x218] sm:$0xff]
    %v219 = vld [vmem:[#allocation5 + $0x220] sm:$0xff]
    %v220 = vld [vmem:[#allocation5 + $0x228] sm:$0xff]
    %v221 = vld [vmem:[#allocation5 + $0x230] sm:$0xff]
    %v222 = vld [vmem:[#allocation5 + $0x238] sm:$0xff]
    %v223 = vld [vmem:[#allocation5 + $0x240] sm:$0xff]
    %v224 = vld [vmem:[#allocation5 + $0x248] sm:$0xff]
    %v225 = vld [vmem:[#allocation5 + $0x250] sm:$0xff]
    %v226 = vld [vmem:[#allocation5 + $0x258] sm:$0xff]
    %v227 = vld [vmem:[#allocation5 + $0x260] sm:$0xff]
    %v228 = vld [vmem:[#allocation5 + $0x268] sm:$0xff]
    %v229 = vld [vmem:[#allocation5 + $0x270] sm:$0xff]
    %v230 = vld [vmem:[#allocation5 + $0x278] sm:$0xff]
    %v231 = vld [vmem:[#allocation5 + $0x280] sm:$0xff]
    %v232 = vld [vmem:[#allocation5 + $0x288] sm:$0xff]
    %v233 = vld [vmem:[#allocation5 + $0x290] sm:$0xff]
    %v234 = vld [vmem:[#allocation5 + $0x298] sm:$0xff]
    %v235 = vld [vmem:[#allocation5 + $0x2a0] sm:$0xff]
    %v236 = vld [vmem:[#allocation5 + $0x2a8] sm:$0xff]
    %v237 = vld [vmem:[#allocation5 + $0x2b0] sm:$0xff]
    %v238 = vld [vmem:[#allocation5 + $0x2b8] sm:$0xff]
    %v239 = vld [vmem:[#allocation5 + $0x2c0] sm:$0xff]
    %v240 = vld [vmem:[#allocation5 + $0x2c8] sm:$0xff]
    %v241 = vld [vmem:[#allocation5 + $0x2d0] sm:$0xff]
    %v242 = vld [vmem:[#allocation5 + $0x2d8] sm:$0xff]
    %v243 = vld [vmem:[#allocation5 + $0x2e0] sm:$0xff]
    %v244 = vld [vmem:[#allocation5 + $0x2e8] sm:$0xff]
    %v245 = vld [vmem:[#allocation5 + $0x2f0] sm:$0xff]
    %v246 = vld [vmem:[#allocation5 + $0x2f8] sm:$0xff]
    %v247 = vld [vmem:[#allocation5 + $0x300] sm:$0xff]
    %v248 = vld [vmem:[#allocation5 + $0x308] sm:$0xff]
    %v249 = vld [vmem:[#allocation5 + $0x310] sm:$0xff]
    %v250 = vld [vmem:[#allocation5 + $0x318] sm:$0xff]
    %v251 = vld [vmem:[#allocation5 + $0x320] sm:$0xff]
    %v252 = vld [vmem:[#allocation5 + $0x328] sm:$0xff]
    %v253 = vld [vmem:[#allocation5 + $0x330] sm:$0xff]
    %v254 = vld [vmem:[#allocation5 + $0x338] sm:$0xff]
    %v255 = vld [vmem:[#allocation5 + $0x340] sm:$0xff]
    %v256 = vld [vmem:[#allocation5 + $0x348] sm:$0xff]
    %v257 = vld [vmem:[#allocation5 + $0x350] sm:$0xff]
    %v258 = vld [vmem:[#allocation5 + $0x358] sm:$0xff]
    %v259 = vld [vmem:[#allocation5 + $0x360] sm:$0xff]
    %v260 = vld [vmem:[#allocation5 + $0x368] sm:$0xff]
    %v261 = vld [vmem:[#allocation5 + $0x370] sm:$0xff]
    %v262 = vld [vmem:[#allocation5 + $0x378] sm:$0xff]
    %v263 = vld [vmem:[#allocation5 + $0x380] sm:$0xff]
    %v264 = vld [vmem:[#allocation5 + $0x388] sm:$0xff]
    %v265 = vld [vmem:[#allocation5 + $0x390] sm:$0xff]
    %v266 = vld [vmem:[#allocation5 + $0x398] sm:$0xff]
    %v267 = vld [vmem:[#allocation5 + $0x3a0] sm:$0xff]
    %v268 = vld [vmem:[#allocation5 + $0x3a8] sm:$0xff]
    %v269 = vld [vmem:[#allocation5 + $0x3b0] sm:$0xff]
    %v270 = vld [vmem:[#allocation5 + $0x3b8] sm:$0xff]
    %v271 = vld [vmem:[#allocation5 + $0x3c0] sm:$0xff]
    %v272 = vld [vmem:[#allocation5 + $0x3c8] sm:$0xff]
    %v273 = vld [vmem:[#allocation5 + $0x3d0] sm:$0xff]
    %v274 = vld [vmem:[#allocation5 + $0x3d8] sm:$0xff]
    %v275 = vld [vmem:[#allocation5 + $0x3e0] sm:$0xff]
    %v276 = vld [vmem:[#allocation5 + $0x3e8] sm:$0xff]
    %v277 = vld [vmem:[#allocation5 + $0x3f0] sm:$0xff]
    %v278 = vld [vmem:[#allocation5 + $0x3f8] sm:$0xff]
    %v279 = vld [vmem:[#allocation7] sm:$0xff]
    %v280 = vld [vmem:[#allocation7 + $0x8] sm:$0xff]
    %v283 = vlaneseq
    %v284 = vshrl.u32 %v283, 7
    %v285 = vsub.s32 0, %v284
    %v286 = vrot.slane %v279, %v285
    %v287 = vlaneseq
    %v288 = vshrl.u32 %v287, 7
    %v289 = vsub.s32 1, %v288
    %v290 = vrot.slane %v279, %v289
    %v291 = vlaneseq
    %v292 = vshrl.u32 %v291, 7
    %v293 = vsub.s32 2, %v292
    %v294 = vrot.slane %v279, %v293
    %v295 = vlaneseq
    %v296 = vshrl.u32 %v295, 7
    %v297 = vsub.s32 3, %v296
    %v298 = vrot.slane %v279, %v297
    %v299 = vlaneseq
    %v300 = vshrl.u32 %v299, 7
    %v301 = vsub.s32 4, %v300
    %v302 = vrot.slane %v279, %v301
    %v303 = vlaneseq
    %v304 = vshrl.u32 %v303, 7
    %v305 = vsub.s32 5, %v304
    %v306 = vrot.slane %v279, %v305
    %v307 = vlaneseq
    %v308 = vshrl.u32 %v307, 7
    %v309 = vsub.s32 6, %v308
    %v310 = vrot.slane %v279, %v309
    %v311 = vlaneseq
    %v312 = vshrl.u32 %v311, 7
    %v313 = vsub.s32 7, %v312
    %v314 = vrot.slane %v279, %v313
    %v315 = vlaneseq
    %v316 = vshrl.u32 %v315, 7
    %v317 = vsub.s32 0, %v316
    %v318 = vrot.slane %v280, %v317
    %v319 = vlaneseq
    %v320 = vshrl.u32 %v319, 7
    %v321 = vsub.s32 1, %v320
    %v322 = vrot.slane %v280, %v321
    %v323 = vlaneseq
    %v324 = vshrl.u32 %v323, 7
    %v325 = vsub.s32 2, %v324
    %v326 = vrot.slane %v280, %v325
    %v327 = vlaneseq
    %v328 = vshrl.u32 %v327, 7
    %v329 = vsub.s32 3, %v328
    %v330 = vrot.slane %v280, %v329
    %v331 = vlaneseq
    %v332 = vshrl.u32 %v331, 7
    %v333 = vsub.s32 4, %v332
    %v334 = vrot.slane %v280, %v333
    %v335 = vlaneseq
    %v336 = vshrl.u32 %v335, 7
    %v337 = vsub.s32 5, %v336
    %v338 = vrot.slane %v280, %v337
    %v339 = vlaneseq
    %v340 = vshrl.u32 %v339, 7
    %v341 = vsub.s32 6, %v340
    %v342 = vrot.slane %v280, %v341
    %v343 = vlaneseq
    %v344 = vshrl.u32 %v343, 7
    %v345 = vsub.s32 7, %v344
    %v346 = vrot.slane %v280, %v345
    %v491 = vunpack.c.l.b16 %v151
    %v492 = vunpack.c.h.b16 %v151
    %v493 = vunpack.c.l.b16 %v152
    %v494 = vunpack.c.h.b16 %v152
    %v495 = vunpack.c.l.b16 %v153
    %v496 = vunpack.c.h.b16 %v153
    %v497 = vunpack.c.l.b16 %v154
    %v498 = vunpack.c.h.b16 %v154
    %v499 = vunpack.c.l.b16 %v155
    %v500 = vunpack.c.h.b16 %v155
    %v501 = vunpack.c.l.b16 %v156
    %v502 = vunpack.c.h.b16 %v156
    %v503 = vunpack.c.l.b16 %v157
    %v504 = vunpack.c.h.b16 %v157
    %v505 = vunpack.c.l.b16 %v158
    %v506 = vunpack.c.h.b16 %v158
    %v507 = vunpack.c.l.b16 %v159
    %v508 = vunpack.c.h.b16 %v159
    %v509 = vunpack.c.l.b16 %v160
    %v510 = vunpack.c.h.b16 %v160
    %v511 = vunpack.c.l.b16 %v161
    %v512 = vunpack.c.h.b16 %v161
    %v513 = vunpack.c.l.b16 %v162
    %v514 = vunpack.c.h.b16 %v162
    %v515 = vunpack.c.l.b16 %v163
    %v516 = vunpack.c.h.b16 %v163
    %v517 = vunpack.c.l.b16 %v164
    %v518 = vunpack.c.h.b16 %v164
    %v519 = vunpack.c.l.b16 %v165
    %v520 = vunpack.c.h.b16 %v165
    %v521 = vunpack.c.l.b16 %v166
    %v522 = vunpack.c.h.b16 %v166
    %v523 = vunpack.c.l.b16 %v167
    %v524 = vunpack.c.h.b16 %v167
    %v525 = vunpack.c.l.b16 %v168
    %v526 = vunpack.c.h.b16 %v168
    %v527 = vunpack.c.l.b16 %v169
    %v528 = vunpack.c.h.b16 %v169
    %v529 = vunpack.c.l.b16 %v170
    %v530 = vunpack.c.h.b16 %v170
    %v531 = vunpack.c.l.b16 %v171
    %v532 = vunpack.c.h.b16 %v171
    %v533 = vunpack.c.l.b16 %v172
    %v534 = vunpack.c.h.b16 %v172
    %v535 = vunpack.c.l.b16 %v173
    %v536 = vunpack.c.h.b16 %v173
    %v537 = vunpack.c.l.b16 %v174
    %v538 = vunpack.c.h.b16 %v174
    %v539 = vunpack.c.l.b16 %v175
    %v540 = vunpack.c.h.b16 %v175
    %v541 = vunpack.c.l.b16 %v176
    %v542 = vunpack.c.h.b16 %v176
    %v543 = vunpack.c.l.b16 %v177
    %v544 = vunpack.c.h.b16 %v177
    %v545 = vunpack.c.l.b16 %v178
    %v546 = vunpack.c.h.b16 %v178
    %v547 = vunpack.c.l.b16 %v179
    %v548 = vunpack.c.h.b16 %v179
    %v549 = vunpack.c.l.b16 %v180
    %v550 = vunpack.c.h.b16 %v180
    %v551 = vunpack.c.l.b16 %v181
    %v552 = vunpack.c.h.b16 %v181
    %v553 = vunpack.c.l.b16 %v182
    %v554 = vunpack.c.h.b16 %v182
    %v555 = vunpack.c.l.b16 %v183
    %v556 = vunpack.c.h.b16 %v183
    %v557 = vunpack.c.l.b16 %v184
    %v558 = vunpack.c.h.b16 %v184
    %v559 = vunpack.c.l.b16 %v185
    %v560 = vunpack.c.h.b16 %v185
    %v561 = vunpack.c.l.b16 %v186
    %v562 = vunpack.c.h.b16 %v186
    %v563 = vunpack.c.l.b16 %v187
    %v564 = vunpack.c.h.b16 %v187
    %v565 = vunpack.c.l.b16 %v188
    %v566 = vunpack.c.h.b16 %v188
    %v567 = vunpack.c.l.b16 %v189
    %v568 = vunpack.c.h.b16 %v189
    %v569 = vunpack.c.l.b16 %v190
    %v570 = vunpack.c.h.b16 %v190
    %v571 = vunpack.c.l.b16 %v191
    %v572 = vunpack.c.h.b16 %v191
    %v573 = vunpack.c.l.b16 %v192
    %v574 = vunpack.c.h.b16 %v192
    %v575 = vunpack.c.l.b16 %v193
    %v576 = vunpack.c.h.b16 %v193
    %v577 = vunpack.c.l.b16 %v194
    %v578 = vunpack.c.h.b16 %v194
    %v579 = vunpack.c.l.b16 %v195
    %v580 = vunpack.c.h.b16 %v195
    %v581 = vunpack.c.l.b16 %v196
    %v582 = vunpack.c.h.b16 %v196
    %v583 = vunpack.c.l.b16 %v197
    %v584 = vunpack.c.h.b16 %v197
    %v585 = vunpack.c.l.b16 %v198
    %v586 = vunpack.c.h.b16 %v198
    %v587 = vunpack.c.l.b16 %v199
    %v588 = vunpack.c.h.b16 %v199
    %v589 = vunpack.c.l.b16 %v200
    %v590 = vunpack.c.h.b16 %v200
    %v591 = vunpack.c.l.b16 %v201
    %v592 = vunpack.c.h.b16 %v201
    %v593 = vunpack.c.l.b16 %v202
    %v594 = vunpack.c.h.b16 %v202
    %v595 = vunpack.c.l.b16 %v203
    %v596 = vunpack.c.h.b16 %v203
    %v597 = vunpack.c.l.b16 %v204
    %v598 = vunpack.c.h.b16 %v204
    %v599 = vunpack.c.l.b16 %v205
    %v600 = vunpack.c.h.b16 %v205
    %v601 = vunpack.c.l.b16 %v206
    %v602 = vunpack.c.h.b16 %v206
    %v603 = vunpack.c.l.b16 %v207
    %v604 = vunpack.c.h.b16 %v207
    %v605 = vunpack.c.l.b16 %v208
    %v606 = vunpack.c.h.b16 %v208
    %v607 = vunpack.c.l.b16 %v209
    %v608 = vunpack.c.h.b16 %v209
    %v609 = vunpack.c.l.b16 %v210
    %v610 = vunpack.c.h.b16 %v210
    %v611 = vunpack.c.l.b16 %v211
    %v612 = vunpack.c.h.b16 %v211
    %v613 = vunpack.c.l.b16 %v212
    %v614 = vunpack.c.h.b16 %v212
    %v615 = vunpack.c.l.b16 %v213
    %v616 = vunpack.c.h.b16 %v213
    %v617 = vunpack.c.l.b16 %v214
    %v618 = vunpack.c.h.b16 %v214
    %v619 = vunpack.c.l.b16 %v215
    %v620 = vunpack.c.h.b16 %v215
    %v621 = vunpack.c.l.b16 %v216
    %v622 = vunpack.c.h.b16 %v216
    %v623 = vunpack.c.l.b16 %v217
    %v624 = vunpack.c.h.b16 %v217
    %v625 = vunpack.c.l.b16 %v218
    %v626 = vunpack.c.h.b16 %v218
    %v627 = vunpack.c.l.b16 %v219
    %v628 = vunpack.c.h.b16 %v219
    %v629 = vunpack.c.l.b16 %v220
    %v630 = vunpack.c.h.b16 %v220
    %v631 = vunpack.c.l.b16 %v221
    %v632 = vunpack.c.h.b16 %v221
    %v633 = vunpack.c.l.b16 %v222
    %v634 = vunpack.c.h.b16 %v222
    %v635 = vunpack.c.l.b16 %v223
    %v636 = vunpack.c.h.b16 %v223
    %v637 = vunpack.c.l.b16 %v224
    %v638 = vunpack.c.h.b16 %v224
    %v639 = vunpack.c.l.b16 %v225
    %v640 = vunpack.c.h.b16 %v225
    %v641 = vunpack.c.l.b16 %v226
    %v642 = vunpack.c.h.b16 %v226
    %v643 = vunpack.c.l.b16 %v227
    %v644 = vunpack.c.h.b16 %v227
    %v645 = vunpack.c.l.b16 %v228
    %v646 = vunpack.c.h.b16 %v228
    %v647 = vunpack.c.l.b16 %v229
    %v648 = vunpack.c.h.b16 %v229
    %v649 = vunpack.c.l.b16 %v230
    %v650 = vunpack.c.h.b16 %v230
    %v651 = vunpack.c.l.b16 %v231
    %v652 = vunpack.c.h.b16 %v231
    %v653 = vunpack.c.l.b16 %v232
    %v654 = vunpack.c.h.b16 %v232
    %v655 = vunpack.c.l.b16 %v233
    %v656 = vunpack.c.h.b16 %v233
    %v657 = vunpack.c.l.b16 %v234
    %v658 = vunpack.c.h.b16 %v234
    %v659 = vunpack.c.l.b16 %v235
    %v660 = vunpack.c.h.b16 %v235
    %v661 = vunpack.c.l.b16 %v236
    %v662 = vunpack.c.h.b16 %v236
    %v663 = vunpack.c.l.b16 %v237
    %v664 = vunpack.c.h.b16 %v237
    %v665 = vunpack.c.l.b16 %v238
    %v666 = vunpack.c.h.b16 %v238
    %v667 = vunpack.c.l.b16 %v239
    %v668 = vunpack.c.h.b16 %v239
    %v669 = vunpack.c.l.b16 %v240
    %v670 = vunpack.c.h.b16 %v240
    %v671 = vunpack.c.l.b16 %v241
    %v672 = vunpack.c.h.b16 %v241
    %v673 = vunpack.c.l.b16 %v242
    %v674 = vunpack.c.h.b16 %v242
    %v675 = vunpack.c.l.b16 %v243
    %v676 = vunpack.c.h.b16 %v243
    %v677 = vunpack.c.l.b16 %v244
    %v678 = vunpack.c.h.b16 %v244
    %v679 = vunpack.c.l.b16 %v245
    %v680 = vunpack.c.h.b16 %v245
    %v681 = vunpack.c.l.b16 %v246
    %v682 = vunpack.c.h.b16 %v246
    %v683 = vunpack.c.l.b16 %v247
    %v684 = vunpack.c.h.b16 %v247
    %v685 = vunpack.c.l.b16 %v248
    %v686 = vunpack.c.h.b16 %v248
    %v687 = vunpack.c.l.b16 %v249
    %v688 = vunpack.c.h.b16 %v249
    %v689 = vunpack.c.l.b16 %v250
    %v690 = vunpack.c.h.b16 %v250
    %v691 = vunpack.c.l.b16 %v251
    %v692 = vunpack.c.h.b16 %v251
    %v693 = vunpack.c.l.b16 %v252
    %v694 = vunpack.c.h.b16 %v252
    %v695 = vunpack.c.l.b16 %v253
    %v696 = vunpack.c.h.b16 %v253
    %v697 = vunpack.c.l.b16 %v254
    %v698 = vunpack.c.h.b16 %v254
    %v699 = vunpack.c.l.b16 %v255
    %v700 = vunpack.c.h.b16 %v255
    %v701 = vunpack.c.l.b16 %v256
    %v702 = vunpack.c.h.b16 %v256
    %v703 = vunpack.c.l.b16 %v257
    %v704 = vunpack.c.h.b16 %v257
    %v705 = vunpack.c.l.b16 %v258
    %v706 = vunpack.c.h.b16 %v258
    %v707 = vunpack.c.l.b16 %v259
    %v708 = vunpack.c.h.b16 %v259
    %v709 = vunpack.c.l.b16 %v260
    %v710 = vunpack.c.h.b16 %v260
    %v711 = vunpack.c.l.b16 %v261
    %v712 = vunpack.c.h.b16 %v261
    %v713 = vunpack.c.l.b16 %v262
    %v714 = vunpack.c.h.b16 %v262
    %v715 = vunpack.c.l.b16 %v263
    %v716 = vunpack.c.h.b16 %v263
    %v717 = vunpack.c.l.b16 %v264
    %v718 = vunpack.c.h.b16 %v264
    %v719 = vunpack.c.l.b16 %v265
    %v720 = vunpack.c.h.b16 %v265
    %v721 = vunpack.c.l.b16 %v266
    %v722 = vunpack.c.h.b16 %v266
    %v723 = vunpack.c.l.b16 %v267
    %v724 = vunpack.c.h.b16 %v267
    %v725 = vunpack.c.l.b16 %v268
    %v726 = vunpack.c.h.b16 %v268
    %v727 = vunpack.c.l.b16 %v269
    %v728 = vunpack.c.h.b16 %v269
    %v729 = vunpack.c.l.b16 %v270
    %v730 = vunpack.c.h.b16 %v270
    %v731 = vunpack.c.l.b16 %v271
    %v732 = vunpack.c.h.b16 %v271
    %v733 = vunpack.c.l.b16 %v272
    %v734 = vunpack.c.h.b16 %v272
    %v735 = vunpack.c.l.b16 %v273
    %v736 = vunpack.c.h.b16 %v273
    %v737 = vunpack.c.l.b16 %v274
    %v738 = vunpack.c.h.b16 %v274
    %v739 = vunpack.c.l.b16 %v275
    %v740 = vunpack.c.h.b16 %v275
    %v741 = vunpack.c.l.b16 %v276
    %v742 = vunpack.c.h.b16 %v276
    %v743 = vunpack.c.l.b16 %v277
    %v744 = vunpack.c.h.b16 %v277
    %v745 = vunpack.c.l.b16 %v278
    %v746 = vunpack.c.h.b16 %v278
    %v747 = vpack.c.b16 %v507, %v491
    %v748 = vpack.c.b16 %v508, %v492
    %v749 = vpack.c.b16 %v509, %v493
    %v750 = vpack.c.b16 %v510, %v494
    %v751 = vpack.c.b16 %v511, %v495
    %v752 = vpack.c.b16 %v512, %v496
    %v753 = vpack.c.b16 %v513, %v497
    %v754 = vpack.c.b16 %v514, %v498
    %v755 = vpack.c.b16 %v515, %v499
    %v756 = vpack.c.b16 %v516, %v500
    %v757 = vpack.c.b16 %v517, %v501
    %v758 = vpack.c.b16 %v518, %v502
    %v759 = vpack.c.b16 %v519, %v503
    %v760 = vpack.c.b16 %v520, %v504
    %v761 = vpack.c.b16 %v521, %v505
    %v762 = vpack.c.b16 %v522, %v506
    %v763 = vpack.c.b16 %v539, %v523
    %v764 = vpack.c.b16 %v540, %v524
    %v765 = vpack.c.b16 %v541, %v525
    %v766 = vpack.c.b16 %v542, %v526
    %v767 = vpack.c.b16 %v543, %v527
    %v768 = vpack.c.b16 %v544, %v528
    %v769 = vpack.c.b16 %v545, %v529
    %v770 = vpack.c.b16 %v546, %v530
    %v771 = vpack.c.b16 %v547, %v531
    %v772 = vpack.c.b16 %v548, %v532
    %v773 = vpack.c.b16 %v549, %v533
    %v774 = vpack.c.b16 %v550, %v534
    %v775 = vpack.c.b16 %v551, %v535
    %v776 = vpack.c.b16 %v552, %v536
    %v777 = vpack.c.b16 %v553, %v537
    %v778 = vpack.c.b16 %v554, %v538
    %v779 = vpack.c.b16 %v571, %v555
    %v780 = vpack.c.b16 %v572, %v556
    %v781 = vpack.c.b16 %v573, %v557
    %v782 = vpack.c.b16 %v574, %v558
    %v783 = vpack.c.b16 %v575, %v559
    %v784 = vpack.c.b16 %v576, %v560
    %v785 = vpack.c.b16 %v577, %v561
    %v786 = vpack.c.b16 %v578, %v562
    %v787 = vpack.c.b16 %v579, %v563
    %v788 = vpack.c.b16 %v580, %v564
    %v789 = vpack.c.b16 %v581, %v565
    %v790 = vpack.c.b16 %v582, %v566
    %v791 = vpack.c.b16 %v583, %v567
    %v792 = vpack.c.b16 %v584, %v568
    %v793 = vpack.c.b16 %v585, %v569
    %v794 = vpack.c.b16 %v586, %v570
    %v795 = vpack.c.b16 %v603, %v587
    %v796 = vpack.c.b16 %v604, %v588
    %v797 = vpack.c.b16 %v605, %v589
    %v798 = vpack.c.b16 %v606, %v590
    %v799 = vpack.c.b16 %v607, %v591
    %v800 = vpack.c.b16 %v608, %v592
    %v801 = vpack.c.b16 %v609, %v593
    %v802 = vpack.c.b16 %v610, %v594
    %v803 = vpack.c.b16 %v611, %v595
    %v804 = vpack.c.b16 %v612, %v596
    %v805 = vpack.c.b16 %v613, %v597
    %v806 = vpack.c.b16 %v614, %v598
    %v807 = vpack.c.b16 %v615, %v599
    %v808 = vpack.c.b16 %v616, %v600
    %v809 = vpack.c.b16 %v617, %v601
    %v810 = vpack.c.b16 %v618, %v602
    %v811 = vpack.c.b16 %v635, %v619
    %v812 = vpack.c.b16 %v636, %v620
    %v813 = vpack.c.b16 %v637, %v621
    %v814 = vpack.c.b16 %v638, %v622
    %v815 = vpack.c.b16 %v639, %v623
    %v816 = vpack.c.b16 %v640, %v624
    %v817 = vpack.c.b16 %v641, %v625
    %v818 = vpack.c.b16 %v642, %v626
    %v819 = vpack.c.b16 %v643, %v627
    %v820 = vpack.c.b16 %v644, %v628
    %v821 = vpack.c.b16 %v645, %v629
    %v822 = vpack.c.b16 %v646, %v630
    %v823 = vpack.c.b16 %v647, %v631
    %v824 = vpack.c.b16 %v648, %v632
    %v825 = vpack.c.b16 %v649, %v633
    %v826 = vpack.c.b16 %v650, %v634
    %v827 = vpack.c.b16 %v667, %v651
    %v828 = vpack.c.b16 %v668, %v652
    %v829 = vpack.c.b16 %v669, %v653
    %v830 = vpack.c.b16 %v670, %v654
    %v831 = vpack.c.b16 %v671, %v655
    %v832 = vpack.c.b16 %v672, %v656
    %v833 = vpack.c.b16 %v673, %v657
    %v834 = vpack.c.b16 %v674, %v658
    %v835 = vpack.c.b16 %v675, %v659
    %v836 = vpack.c.b16 %v676, %v660
    %v837 = vpack.c.b16 %v677, %v661
    %v838 = vpack.c.b16 %v678, %v662
    %v839 = vpack.c.b16 %v679, %v663
    %v840 = vpack.c.b16 %v680, %v664
    %v841 = vpack.c.b16 %v681, %v665
    %v842 = vpack.c.b16 %v682, %v666
    %v843 = vpack.c.b16 %v699, %v683
    %v844 = vpack.c.b16 %v700, %v684
    %v845 = vpack.c.b16 %v701, %v685
    %v846 = vpack.c.b16 %v702, %v686
    %v847 = vpack.c.b16 %v703, %v687
    %v848 = vpack.c.b16 %v704, %v688
    %v849 = vpack.c.b16 %v705, %v689
    %v850 = vpack.c.b16 %v706, %v690
    %v851 = vpack.c.b16 %v707, %v691
    %v852 = vpack.c.b16 %v708, %v692
    %v853 = vpack.c.b16 %v709, %v693
    %v854 = vpack.c.b16 %v710, %v694
    %v855 = vpack.c.b16 %v711, %v695
    %v856 = vpack.c.b16 %v712, %v696
    %v857 = vpack.c.b16 %v713, %v697
    %v858 = vpack.c.b16 %v714, %v698
    %v859 = vpack.c.b16 %v731, %v715
    %v860 = vpack.c.b16 %v732, %v716
    %v861 = vpack.c.b16 %v733, %v717
    %v862 = vpack.c.b16 %v734, %v718
    %v863 = vpack.c.b16 %v735, %v719
    %v864 = vpack.c.b16 %v736, %v720
    %v865 = vpack.c.b16 %v737, %v721
    %v866 = vpack.c.b16 %v738, %v722
    %v867 = vpack.c.b16 %v739, %v723
    %v868 = vpack.c.b16 %v740, %v724
    %v869 = vpack.c.b16 %v741, %v725
    %v870 = vpack.c.b16 %v742, %v726
    %v871 = vpack.c.b16 %v743, %v727
    %v872 = vpack.c.b16 %v744, %v728
    %v873 = vpack.c.b16 %v745, %v729
    %v874 = vpack.c.b16 %v746, %v730
    %1003 = vmatprep.subr.bf16.mxu0 %v748
    %1004 = vmatpush1.bf16.msra.mxu0 %v747
    %1005 = vmatprep.subr.bf16.mxu0 %v764
    %1006 = vmatpush1.bf16.msra.mxu0 %v763
    %1007 = vmatprep.subr.bf16.mxu0 %v780
    %1008 = vmatpush1.bf16.msra.mxu0 %v779
    %1009 = vmatprep.subr.bf16.mxu0 %v796
    %1010 = vmatpush1.bf16.msra.mxu0 %v795
    %1011 = vmatprep.subr.bf16.mxu0 %v812
    %1012 = vmatpush1.bf16.msra.mxu0 %v811
    %1013 = vmatprep.subr.bf16.mxu0 %v828
    %1014 = vmatpush1.bf16.msra.mxu0 %v827
    %1015 = vmatprep.subr.bf16.mxu0 %v844
    %1016 = vmatpush1.bf16.msra.mxu0 %v843
    %1017 = vmatprep.subr.bf16.mxu0 %v860
    %1018 = vmatpush1.bf16.msra.mxu0 %v859
    %1019 = vmatprep.subr.bf16.mxu0 0
    %1020 = vmatpush1.bf16.msra.mxu0 0
    %1021 = vmatprep.subr.bf16.mxu0 0
    %1022 = vmatpush1.bf16.msra.mxu0 0
    %1023 = vmatprep.subr.bf16.mxu0 0
    %1024 = vmatpush1.bf16.msra.mxu0 0
    %1025 = vmatprep.subr.bf16.mxu0 0
    %1026 = vmatpush1.bf16.msra.mxu0 0
    %1027 = vmatprep.subr.bf16.mxu0 0
    %1028 = vmatpush1.bf16.msra.mxu0 0
    %1029 = vmatprep.subr.bf16.mxu0 0
    %1030 = vmatpush1.bf16.msra.mxu0 0
    %1031 = vmatprep.subr.bf16.mxu0 0
    %1032 = vmatpush1.bf16.msra.mxu0 0
    %1033 = vmatprep.subr.bf16.mxu0 0
    %1034 = vmatpush1.bf16.msra.mxu0 0
    %1035 = vmatprep.mubr.bf16.mxu0 0
    %1036 = vmatmul.mubr.bf16.gmra.mrb[0].mxu0 %v150
    %v1037 = vpop.f32.mrb[0].mxu0
    %v1038 = vadd.f32 %v286, %v1037
    %v1039 = vpop.f32.mrb[0].mxu0
    %v1040 = vadd.f32 %v290, %v1039
    %v1041 = vpop.f32.mrb[0].mxu0
    %v1042 = vadd.f32 %v286, %v1041
    %v1043 = vpop.f32.mrb[0].mxu0
    %v1044 = vadd.f32 %v290, %v1043
    %1045 = vdwg.mxu0
    %1046 = vmatprep.subr.bf16.mxu0 %v750
    %1047 = vmatpush1.bf16.msra.mxu0 %v749
    %1048 = vmatprep.subr.bf16.mxu0 %v766
    %1049 = vmatpush1.bf16.msra.mxu0 %v765
    %1050 = vmatprep.subr.bf16.mxu0 %v782
    %1051 = vmatpush1.bf16.msra.mxu0 %v781
    %1052 = vmatprep.subr.bf16.mxu0 %v798
    %1053 = vmatpush1.bf16.msra.mxu0 %v797
    %1054 = vmatprep.subr.bf16.mxu0 %v814
    %1055 = vmatpush1.bf16.msra.mxu0 %v813
    %1056 = vmatprep.subr.bf16.mxu0 %v830
    %1057 = vmatpush1.bf16.msra.mxu0 %v829
    %1058 = vmatprep.subr.bf16.mxu0 %v846
    %1059 = vmatpush1.bf16.msra.mxu0 %v845
    %1060 = vmatprep.subr.bf16.mxu0 %v862
    %1061 = vmatpush1.bf16.msra.mxu0 %v861
    %1062 = vmatprep.subr.bf16.mxu0 0
    %1063 = vmatpush1.bf16.msra.mxu0 0
    %1064 = vmatprep.subr.bf16.mxu0 0
    %1065 = vmatpush1.bf16.msra.mxu0 0
    %1066 = vmatprep.subr.bf16.mxu0 0
    %1067 = vmatpush1.bf16.msra.mxu0 0
    %1068 = vmatprep.subr.bf16.mxu0 0
    %1069 = vmatpush1.bf16.msra.mxu0 0
    %1070 = vmatprep.subr.bf16.mxu0 0
    %1071 = vmatpush1.bf16.msra.mxu0 0
    %1072 = vmatprep.subr.bf16.mxu0 0
    %1073 = vmatpush1.bf16.msra.mxu0 0
    %1074 = vmatprep.subr.bf16.mxu0 0
    %1075 = vmatpush1.bf16.msra.mxu0 0
    %1076 = vmatprep.subr.bf16.mxu0 0
    %1077 = vmatpush1.bf16.msra.mxu0 0
    %1078 = vmatprep.mubr.bf16.mxu0 0
    %1079 = vmatmul.mubr.bf16.gmra.mrb[0].mxu0 %v150
    %v1080 = vpop.f32.mrb[0].mxu0
    %v1081 = vadd.f32 %v294, %v1080
    %v1082 = vpop.f32.mrb[0].mxu0
    %v1083 = vadd.f32 %v298, %v1082
    %v1084 = vpop.f32.mrb[0].mxu0
    %v1085 = vadd.f32 %v294, %v1084
    %v1086 = vpop.f32.mrb[0].mxu0
    %v1087 = vadd.f32 %v298, %v1086
    %1088 = vdwg.mxu0
    %1089 = vmatprep.subr.bf16.mxu0 %v752
    %1090 = vmatpush1.bf16.msra.mxu0 %v751
    %1091 = vmatprep.subr.bf16.mxu0 %v768
    %1092 = vmatpush1.bf16.msra.mxu0 %v767
    %1093 = vmatprep.subr.bf16.mxu0 %v784
    %1094 = vmatpush1.bf16.msra.mxu0 %v783
    %1095 = vmatprep.subr.bf16.mxu0 %v800
    %1096 = vmatpush1.bf16.msra.mxu0 %v799
    %1097 = vmatprep.subr.bf16.mxu0 %v816
    %1098 = vmatpush1.bf16.msra.mxu0 %v815
    %1099 = vmatprep.subr.bf16.mxu0 %v832
    %1100 = vmatpush1.bf16.msra.mxu0 %v831
    %1101 = vmatprep.subr.bf16.mxu0 %v848
    %1102 = vmatpush1.bf16.msra.mxu0 %v847
    %1103 = vmatprep.subr.bf16.mxu0 %v864
    %1104 = vmatpush1.bf16.msra.mxu0 %v863
    %1105 = vmatprep.subr.bf16.mxu0 0
    %1106 = vmatpush1.bf16.msra.mxu0 0
    %1107 = vmatprep.subr.bf16.mxu0 0
    %1108 = vmatpush1.bf16.msra.mxu0 0
    %1109 = vmatprep.subr.bf16.mxu0 0
    %1110 = vmatpush1.bf16.msra.mxu0 0
    %1111 = vmatprep.subr.bf16.mxu0 0
    %1112 = vmatpush1.bf16.msra.mxu0 0
    %1113 = vmatprep.subr.bf16.mxu0 0
    %1114 = vmatpush1.bf16.msra.mxu0 0
    %1115 = vmatprep.subr.bf16.mxu0 0
    %1116 = vmatpush1.bf16.msra.mxu0 0
    %1117 = vmatprep.subr.bf16.mxu0 0
    %1118 = vmatpush1.bf16.msra.mxu0 0
    %1119 = vmatprep.subr.bf16.mxu0 0
    %1120 = vmatpush1.bf16.msra.mxu0 0
    %1121 = vmatprep.mubr.bf16.mxu0 0
    %1122 = vmatmul.mubr.bf16.gmra.mrb[0].mxu0 %v150
    %v1123 = vpop.f32.mrb[0].mxu0
    %v1124 = vadd.f32 %v302, %v1123
    %v1125 = vpop.f32.mrb[0].mxu0
    %v1126 = vadd.f32 %v306, %v1125
    %v1127 = vpop.f32.mrb[0].mxu0
    %v1128 = vadd.f32 %v302, %v1127
    %v1129 = vpop.f32.mrb[0].mxu0
    %v1130 = vadd.f32 %v306, %v1129
    %1131 = vdwg.mxu0
    %1132 = vmatprep.subr.bf16.mxu0 %v754
    %1133 = vmatpush1.bf16.msra.mxu0 %v753
    %1134 = vmatprep.subr.bf16.mxu0 %v770
    %1135 = vmatpush1.bf16.msra.mxu0 %v769
    %1136 = vmatprep.subr.bf16.mxu0 %v786
    %1137 = vmatpush1.bf16.msra.mxu0 %v785
    %1138 = vmatprep.subr.bf16.mxu0 %v802
    %1139 = vmatpush1.bf16.msra.mxu0 %v801
    %1140 = vmatprep.subr.bf16.mxu0 %v818
    %1141 = vmatpush1.bf16.msra.mxu0 %v817
    %1142 = vmatprep.subr.bf16.mxu0 %v834
    %1143 = vmatpush1.bf16.msra.mxu0 %v833
    %1144 = vmatprep.subr.bf16.mxu0 %v850
    %1145 = vmatpush1.bf16.msra.mxu0 %v849
    %1146 = vmatprep.subr.bf16.mxu0 %v866
    %1147 = vmatpush1.bf16.msra.mxu0 %v865
    %1148 = vmatprep.subr.bf16.mxu0 0
    %1149 = vmatpush1.bf16.msra.mxu0 0
    %1150 = vmatprep.subr.bf16.mxu0 0
    %1151 = vmatpush1.bf16.msra.mxu0 0
    %1152 = vmatprep.subr.bf16.mxu0 0
    %1153 = vmatpush1.bf16.msra.mxu0 0
    %1154 = vmatprep.subr.bf16.mxu0 0
    %1155 = vmatpush1.bf16.msra.mxu0 0
    %1156 = vmatprep.subr.bf16.mxu0 0
    %1157 = vmatpush1.bf16.msra.mxu0 0
    %1158 = vmatprep.subr.bf16.mxu0 0
    %1159 = vmatpush1.bf16.msra.mxu0 0
    %1160 = vmatprep.subr.bf16.mxu0 0
    %1161 = vmatpush1.bf16.msra.mxu0 0
    %1162 = vmatprep.subr.bf16.mxu0 0
    %1163 = vmatpush1.bf16.msra.mxu0 0
    %1164 = vmatprep.mubr.bf16.mxu0 0
    %1165 = vmatmul.mubr.bf16.gmra.mrb[0].mxu0 %v150
    %v1166 = vpop.f32.mrb[0].mxu0
    %v1167 = vadd.f32 %v310, %v1166
    %v1168 = vpop.f32.mrb[0].mxu0
    %v1169 = vadd.f32 %v314, %v1168
    %v1170 = vpop.f32.mrb[0].mxu0
    %v1171 = vadd.f32 %v310, %v1170
    %v1172 = vpop.f32.mrb[0].mxu0
    %v1173 = vadd.f32 %v314, %v1172
    %1174 = vdwg.mxu0
    %1175 = vmatprep.subr.bf16.mxu0 %v756
    %1176 = vmatpush1.bf16.msra.mxu0 %v755
    %1177 = vmatprep.subr.bf16.mxu0 %v772
    %1178 = vmatpush1.bf16.msra.mxu0 %v771
    %1179 = vmatprep.subr.bf16.mxu0 %v788
    %1180 = vmatpush1.bf16.msra.mxu0 %v787
    %1181 = vmatprep.subr.bf16.mxu0 %v804
    %1182 = vmatpush1.bf16.msra.mxu0 %v803
    %1183 = vmatprep.subr.bf16.mxu0 %v820
    %1184 = vmatpush1.bf16.msra.mxu0 %v819
    %1185 = vmatprep.subr.bf16.mxu0 %v836
    %1186 = vmatpush1.bf16.msra.mxu0 %v835
    %1187 = vmatprep.subr.bf16.mxu0 %v852
    %1188 = vmatpush1.bf16.msra.mxu0 %v851
    %1189 = vmatprep.subr.bf16.mxu0 %v868
    %1190 = vmatpush1.bf16.msra.mxu0 %v867
    %1191 = vmatprep.subr.bf16.mxu0 0
    %1192 = vmatpush1.bf16.msra.mxu0 0
    %1193 = vmatprep.subr.bf16.mxu0 0
    %1194 = vmatpush1.bf16.msra.mxu0 0
    %1195 = vmatprep.subr.bf16.mxu0 0
    %1196 = vmatpush1.bf16.msra.mxu0 0
    %1197 = vmatprep.subr.bf16.mxu0 0
    %1198 = vmatpush1.bf16.msra.mxu0 0
    %1199 = vmatprep.subr.bf16.mxu0 0
    %1200 = vmatpush1.bf16.msra.mxu0 0
    %1201 = vmatprep.subr.bf16.mxu0 0
    %1202 = vmatpush1.bf16.msra.mxu0 0
    %1203 = vmatprep.subr.bf16.mxu0 0
    %1204 = vmatpush1.bf16.msra.mxu0 0
    %1205 = vmatprep.subr.bf16.mxu0 0
    %1206 = vmatpush1.bf16.msra.mxu0 0
    %1207 = vmatprep.mubr.bf16.mxu0 0
    %1208 = vmatmul.mubr.bf16.gmra.mrb[0].mxu0 %v150
    %v1209 = vpop.f32.mrb[0].mxu0
    %v1210 = vadd.f32 %v318, %v1209
    %v1211 = vpop.f32.mrb[0].mxu0
    %v1212 = vadd.f32 %v322, %v1211
    %v1213 = vpop.f32.mrb[0].mxu0
    %v1214 = vadd.f32 %v318, %v1213
    %v1215 = vpop.f32.mrb[0].mxu0
    %v1216 = vadd.f32 %v322, %v1215
    %1217 = vdwg.mxu0
    %1218 = vmatprep.subr.bf16.mxu0 %v758
    %1219 = vmatpush1.bf16.msra.mxu0 %v757
    %1220 = vmatprep.subr.bf16.mxu0 %v774
    %1221 = vmatpush1.bf16.msra.mxu0 %v773
    %1222 = vmatprep.subr.bf16.mxu0 %v790
    %1223 = vmatpush1.bf16.msra.mxu0 %v789
    %1224 = vmatprep.subr.bf16.mxu0 %v806
    %1225 = vmatpush1.bf16.msra.mxu0 %v805
    %1226 = vmatprep.subr.bf16.mxu0 %v822
    %1227 = vmatpush1.bf16.msra.mxu0 %v821
    %1228 = vmatprep.subr.bf16.mxu0 %v838
    %1229 = vmatpush1.bf16.msra.mxu0 %v837
    %1230 = vmatprep.subr.bf16.mxu0 %v854
    %1231 = vmatpush1.bf16.msra.mxu0 %v853
    %1232 = vmatprep.subr.bf16.mxu0 %v870
    %1233 = vmatpush1.bf16.msra.mxu0 %v869
    %1234 = vmatprep.subr.bf16.mxu0 0
    %1235 = vmatpush1.bf16.msra.mxu0 0
    %1236 = vmatprep.subr.bf16.mxu0 0
    %1237 = vmatpush1.bf16.msra.mxu0 0
    %1238 = vmatprep.subr.bf16.mxu0 0
    %1239 = vmatpush1.bf16.msra.mxu0 0
    %1240 = vmatprep.subr.bf16.mxu0 0
    %1241 = vmatpush1.bf16.msra.mxu0 0
    %1242 = vmatprep.subr.bf16.mxu0 0
    %1243 = vmatpush1.bf16.msra.mxu0 0
    %1244 = vmatprep.subr.bf16.mxu0 0
    %1245 = vmatpush1.bf16.msra.mxu0 0
    %1246 = vmatprep.subr.bf16.mxu0 0
    %1247 = vmatpush1.bf16.msra.mxu0 0
    %1248 = vmatprep.subr.bf16.mxu0 0
    %1249 = vmatpush1.bf16.msra.mxu0 0
    %1250 = vmatprep.mubr.bf16.mxu0 0
    %1251 = vmatmul.mubr.bf16.gmra.mrb[0].mxu0 %v150
    %v1252 = vpop.f32.mrb[0].mxu0
    %v1253 = vadd.f32 %v326, %v1252
    %v1254 = vpop.f32.mrb[0].mxu0
    %v1255 = vadd.f32 %v330, %v1254
    %v1256 = vpop.f32.mrb[0].mxu0
    %v1257 = vadd.f32 %v326, %v1256
    %v1258 = vpop.f32.mrb[0].mxu0
    %v1259 = vadd.f32 %v330, %v1258
    %1260 = vdwg.mxu0
    %1261 = vmatprep.subr.bf16.mxu0 %v760
    %1262 = vmatpush1.bf16.msra.mxu0 %v759
    %1263 = vmatprep.subr.bf16.mxu0 %v776
    %1264 = vmatpush1.bf16.msra.mxu0 %v775
    %1265 = vmatprep.subr.bf16.mxu0 %v792
    %1266 = vmatpush1.bf16.msra.mxu0 %v791
    %1267 = vmatprep.subr.bf16.mxu0 %v808
    %1268 = vmatpush1.bf16.msra.mxu0 %v807
    %1269 = vmatprep.subr.bf16.mxu0 %v824
    %1270 = vmatpush1.bf16.msra.mxu0 %v823
    %1271 = vmatprep.subr.bf16.mxu0 %v840
    %1272 = vmatpush1.bf16.msra.mxu0 %v839
    %1273 = vmatprep.subr.bf16.mxu0 %v856
    %1274 = vmatpush1.bf16.msra.mxu0 %v855
    %1275 = vmatprep.subr.bf16.mxu0 %v872
    %1276 = vmatpush1.bf16.msra.mxu0 %v871
    %1277 = vmatprep.subr.bf16.mxu0 0
    %1278 = vmatpush1.bf16.msra.mxu0 0
    %1279 = vmatprep.subr.bf16.mxu0 0
    %1280 = vmatpush1.bf16.msra.mxu0 0
    %1281 = vmatprep.subr.bf16.mxu0 0
    %1282 = vmatpush1.bf16.msra.mxu0 0
    %1283 = vmatprep.subr.bf16.mxu0 0
    %1284 = vmatpush1.bf16.msra.mxu0 0
    %1285 = vmatprep.subr.bf16.mxu0 0
    %1286 = vmatpush1.bf16.msra.mxu0 0
    %1287 = vmatprep.subr.bf16.mxu0 0
    %1288 = vmatpush1.bf16.msra.mxu0 0
    %1289 = vmatprep.subr.bf16.mxu0 0
    %1290 = vmatpush1.bf16.msra.mxu0 0
    %1291 = vmatprep.subr.bf16.mxu0 0
    %1292 = vmatpush1.bf16.msra.mxu0 0
    %1293 = vmatprep.mubr.bf16.mxu0 0
    %1294 = vmatmul.mubr.bf16.gmra.mrb[0].mxu0 %v150
    %v1295 = vpop.f32.mrb[0].mxu0
    %v1296 = vadd.f32 %v334, %v1295
    %v1297 = vpop.f32.mrb[0].mxu0
    %v1298 = vadd.f32 %v338, %v1297
    %v1299 = vpop.f32.mrb[0].mxu0
    %v1300 = vadd.f32 %v334, %v1299
    %v1301 = vpop.f32.mrb[0].mxu0
    %v1302 = vadd.f32 %v338, %v1301
    %1303 = vdwg.mxu0
    %1304 = vmatprep.subr.bf16.mxu0 %v762
    %1305 = vmatpush1.bf16.msra.mxu0 %v761
    %1306 = vmatprep.subr.bf16.mxu0 %v778
    %1307 = vmatpush1.bf16.msra.mxu0 %v777
    %1308 = vmatprep.subr.bf16.mxu0 %v794
    %1309 = vmatpush1.bf16.msra.mxu0 %v793
    %1310 = vmatprep.subr.bf16.mxu0 %v810
    %1311 = vmatpush1.bf16.msra.mxu0 %v809
    %1312 = vmatprep.subr.bf16.mxu0 %v826
    %1313 = vmatpush1.bf16.msra.mxu0 %v825
    %1314 = vmatprep.subr.bf16.mxu0 %v842
    %1315 = vmatpush1.bf16.msra.mxu0 %v841
    %1316 = vmatprep.subr.bf16.mxu0 %v858
    %1317 = vmatpush1.bf16.msra.mxu0 %v857
    %1318 = vmatprep.subr.bf16.mxu0 %v874
    %1319 = vmatpush1.bf16.msra.mxu0 %v873
    %1320 = vmatprep.subr.bf16.mxu0 0
    %1321 = vmatpush1.bf16.msra.mxu0 0
    %1322 = vmatprep.subr.bf16.mxu0 0
    %1323 = vmatpush1.bf16.msra.mxu0 0
    %1324 = vmatprep.subr.bf16.mxu0 0
    %1325 = vmatpush1.bf16.msra.mxu0 0
    %1326 = vmatprep.subr.bf16.mxu0 0
    %1327 = vmatpush1.bf16.msra.mxu0 0
    %1328 = vmatprep.subr.bf16.mxu0 0
    %1329 = vmatpush1.bf16.msra.mxu0 0
    %1330 = vmatprep.subr.bf16.mxu0 0
    %1331 = vmatpush1.bf16.msra.mxu0 0
    %1332 = vmatprep.subr.bf16.mxu0 0
    %1333 = vmatpush1.bf16.msra.mxu0 0
    %1334 = vmatprep.subr.bf16.mxu0 0
    %1335 = vmatpush1.bf16.msra.mxu0 0
    %1336 = vmatprep.mubr.bf16.mxu0 0
    %1337 = vmatmul.mubr.bf16.gmra.mrb[0].mxu0 %v150
    %v1338 = vpop.f32.mrb[0].mxu0
    %v1339 = vadd.f32 %v342, %v1338
    %v1340 = vpop.f32.mrb[0].mxu0
    %v1341 = vadd.f32 %v346, %v1340
    %v1342 = vpop.f32.mrb[0].mxu0
    %v1343 = vadd.f32 %v342, %v1342
    %v1344 = vpop.f32.mrb[0].mxu0
    %v1345 = vadd.f32 %v346, %v1344
    %1346 = vdwg.mxu0
    %v1347 = vmax.f32 %v1038, 0.0
    %v1348 = vmax.f32 %v1040, 0.0
    %v1349 = vmax.f32 %v1081, 0.0
    %v1350 = vmax.f32 %v1083, 0.0
    %v1351 = vmax.f32 %v1124, 0.0
    %v1352 = vmax.f32 %v1126, 0.0
    %v1353 = vmax.f32 %v1167, 0.0
    %v1354 = vmax.f32 %v1169, 0.0
    %v1355 = vmax.f32 %v1210, 0.0
    %v1356 = vmax.f32 %v1212, 0.0
    %v1357 = vmax.f32 %v1253, 0.0
    %v1358 = vmax.f32 %v1255, 0.0
    %v1359 = vmax.f32 %v1296, 0.0
    %v1360 = vmax.f32 %v1298, 0.0
    %v1361 = vmax.f32 %v1339, 0.0
    %v1362 = vmax.f32 %v1341, 0.0
    %v1363 = vmax.f32 %v1042, 0.0
    %v1364 = vmax.f32 %v1044, 0.0
    %v1365 = vmax.f32 %v1085, 0.0
    %v1366 = vmax.f32 %v1087, 0.0
    %v1367 = vmax.f32 %v1128, 0.0
    %v1368 = vmax.f32 %v1130, 0.0
    %v1369 = vmax.f32 %v1171, 0.0
    %v1370 = vmax.f32 %v1173, 0.0
    %v1371 = vmax.f32 %v1214, 0.0
    %v1372 = vmax.f32 %v1216, 0.0
    %v1373 = vmax.f32 %v1257, 0.0
    %v1374 = vmax.f32 %v1259, 0.0
    %v1375 = vmax.f32 %v1300, 0.0
    %v1376 = vmax.f32 %v1302, 0.0
    %v1377 = vmax.f32 %v1343, 0.0
    %v1378 = vmax.f32 %v1345, 0.0
    %v1379 = vpack.c.bf16 %v1363, %v1347
    %v1380 = vpack.c.bf16 %v1364, %v1348
    %v1381 = vpack.c.bf16 %v1365, %v1349
    %v1382 = vpack.c.bf16 %v1366, %v1350
    %v1383 = vpack.c.bf16 %v1367, %v1351
    %v1384 = vpack.c.bf16 %v1368, %v1352
    %v1385 = vpack.c.bf16 %v1369, %v1353
    %v1386 = vpack.c.bf16 %v1370, %v1354
    %v1387 = vpack.c.bf16 %v1371, %v1355
    %v1388 = vpack.c.bf16 %v1372, %v1356
    %v1389 = vpack.c.bf16 %v1373, %v1357
    %v1390 = vpack.c.bf16 %v1374, %v1358
    %v1391 = vpack.c.bf16 %v1375, %v1359
    %v1392 = vpack.c.bf16 %v1376, %v1360
    %v1393 = vpack.c.bf16 %v1377, %v1361
    %v1394 = vpack.c.bf16 %v1378, %v1362
    %v1395 = vld [vmem:[#allocation8] sm:$0xff]
    %v1396 = vld [vmem:[#allocation8 + $0x8] sm:$0xff]
    %v1397 = vld [vmem:[#allocation8 + $0x10] sm:$0xff]
    %v1398 = vld [vmem:[#allocation8 + $0x18] sm:$0xff]
    %v1399 = vld [vmem:[#allocation8 + $0x20] sm:$0xff]
    %v1400 = vld [vmem:[#allocation8 + $0x28] sm:$0xff]
    %v1401 = vld [vmem:[#allocation8 + $0x30] sm:$0xff]
    %v1402 = vld [vmem:[#allocation8 + $0x38] sm:$0xff]
    %v1403 = vld [vmem:[#allocation8 + $0x40] sm:$0xff]
    %v1404 = vld [vmem:[#allocation8 + $0x48] sm:$0xff]
    %v1405 = vld [vmem:[#allocation8 + $0x50] sm:$0xff]
    %v1406 = vld [vmem:[#allocation8 + $0x58] sm:$0xff]
    %v1407 = vld [vmem:[#allocation8 + $0x60] sm:$0xff]
    %v1408 = vld [vmem:[#allocation8 + $0x68] sm:$0xff]
    %v1409 = vld [vmem:[#allocation8 + $0x70] sm:$0xff]
    %v1410 = vld [vmem:[#allocation8 + $0x78] sm:$0xff]
    %v1411 = vld [vmem:[#allocation8 + $0x80] sm:$0xff]
    %v1412 = vld [vmem:[#allocation8 + $0x88] sm:$0xff]
    %v1413 = vld [vmem:[#allocation8 + $0x90] sm:$0xff]
    %v1414 = vld [vmem:[#allocation8 + $0x98] sm:$0xff]
    %v1415 = vld [vmem:[#allocation8 + $0xa0] sm:$0xff]
    %v1416 = vld [vmem:[#allocation8 + $0xa8] sm:$0xff]
    %v1417 = vld [vmem:[#allocation8 + $0xb0] sm:$0xff]
    %v1418 = vld [vmem:[#allocation8 + $0xb8] sm:$0xff]
    %v1419 = vld [vmem:[#allocation8 + $0xc0] sm:$0xff]
    %v1420 = vld [vmem:[#allocation8 + $0xc8] sm:$0xff]
    %v1421 = vld [vmem:[#allocation8 + $0xd0] sm:$0xff]
    %v1422 = vld [vmem:[#allocation8 + $0xd8] sm:$0xff]
    %v1423 = vld [vmem:[#allocation8 + $0xe0] sm:$0xff]
    %v1424 = vld [vmem:[#allocation8 + $0xe8] sm:$0xff]
    %v1425 = vld [vmem:[#allocation8 + $0xf0] sm:$0xff]
    %v1426 = vld [vmem:[#allocation8 + $0xf8] sm:$0xff]
    %v1427 = vld [vmem:[#allocation8 + $0x100] sm:$0xff]
    %v1428 = vld [vmem:[#allocation8 + $0x108] sm:$0xff]
    %v1429 = vld [vmem:[#allocation8 + $0x110] sm:$0xff]
    %v1430 = vld [vmem:[#allocation8 + $0x118] sm:$0xff]
    %v1431 = vld [vmem:[#allocation8 + $0x120] sm:$0xff]
    %v1432 = vld [vmem:[#allocation8 + $0x128] sm:$0xff]
    %v1433 = vld [vmem:[#allocation8 + $0x130] sm:$0xff]
    %v1434 = vld [vmem:[#allocation8 + $0x138] sm:$0xff]
    %v1435 = vld [vmem:[#allocation8 + $0x140] sm:$0xff]
    %v1436 = vld [vmem:[#allocation8 + $0x148] sm:$0xff]
    %v1437 = vld [vmem:[#allocation8 + $0x150] sm:$0xff]
    %v1438 = vld [vmem:[#allocation8 + $0x158] sm:$0xff]
    %v1439 = vld [vmem:[#allocation8 + $0x160] sm:$0xff]
    %v1440 = vld [vmem:[#allocation8 + $0x168] sm:$0xff]
    %v1441 = vld [vmem:[#allocation8 + $0x170] sm:$0xff]
    %v1442 = vld [vmem:[#allocation8 + $0x178] sm:$0xff]
    %v1443 = vld [vmem:[#allocation8 + $0x180] sm:$0xff]
    %v1444 = vld [vmem:[#allocation8 + $0x188] sm:$0xff]
    %v1445 = vld [vmem:[#allocation8 + $0x190] sm:$0xff]
    %v1446 = vld [vmem:[#allocation8 + $0x198] sm:$0xff]
    %v1447 = vld [vmem:[#allocation8 + $0x1a0] sm:$0xff]
    %v1448 = vld [vmem:[#allocation8 + $0x1a8] sm:$0xff]
    %v1449 = vld [vmem:[#allocation8 + $0x1b0] sm:$0xff]
    %v1450 = vld [vmem:[#allocation8 + $0x1b8] sm:$0xff]
    %v1451 = vld [vmem:[#allocation8 + $0x1c0] sm:$0xff]
    %v1452 = vld [vmem:[#allocation8 + $0x1c8] sm:$0xff]
    %v1453 = vld [vmem:[#allocation8 + $0x1d0] sm:$0xff]
    %v1454 = vld [vmem:[#allocation8 + $0x1d8] sm:$0xff]
    %v1455 = vld [vmem:[#allocation8 + $0x1e0] sm:$0xff]
    %v1456 = vld [vmem:[#allocation8 + $0x1e8] sm:$0xff]
    %v1457 = vld [vmem:[#allocation8 + $0x1f0] sm:$0xff]
    %v1458 = vld [vmem:[#allocation8 + $0x1f8] sm:$0xff]
    %v1459 = vld [vmem:[#allocation8 + $0x200] sm:$0xff]
    %v1460 = vld [vmem:[#allocation8 + $0x208] sm:$0xff]
    %v1461 = vld [vmem:[#allocation8 + $0x210] sm:$0xff]
    %v1462 = vld [vmem:[#allocation8 + $0x218] sm:$0xff]
    %v1463 = vld [vmem:[#allocation8 + $0x220] sm:$0xff]
    %v1464 = vld [vmem:[#allocation8 + $0x228] sm:$0xff]
    %v1465 = vld [vmem:[#allocation8 + $0x230] sm:$0xff]
    %v1466 = vld [vmem:[#allocation8 + $0x238] sm:$0xff]
    %v1467 = vld [vmem:[#allocation8 + $0x240] sm:$0xff]
    %v1468 = vld [vmem:[#allocation8 + $0x248] sm:$0xff]
    %v1469 = vld [vmem:[#allocation8 + $0x250] sm:$0xff]
    %v1470 = vld [vmem:[#allocation8 + $0x258] sm:$0xff]
    %v1471 = vld [vmem:[#allocation8 + $0x260] sm:$0xff]
    %v1472 = vld [vmem:[#allocation8 + $0x268] sm:$0xff]
    %v1473 = vld [vmem:[#allocation8 + $0x270] sm:$0xff]
    %v1474 = vld [vmem:[#allocation8 + $0x278] sm:$0xff]
    %v1475 = vld [vmem:[#allocation8 + $0x280] sm:$0xff]
    %v1476 = vld [vmem:[#allocation8 + $0x288] sm:$0xff]
    %v1477 = vld [vmem:[#allocation8 + $0x290] sm:$0xff]
    %v1478 = vld [vmem:[#allocation8 + $0x298] sm:$0xff]
    %v1479 = vld [vmem:[#allocation8 + $0x2a0] sm:$0xff]
    %v1480 = vld [vmem:[#allocation8 + $0x2a8] sm:$0xff]
    %v1481 = vld [vmem:[#allocation8 + $0x2b0] sm:$0xff]
    %v1482 = vld [vmem:[#allocation8 + $0x2b8] sm:$0xff]
    %v1483 = vld [vmem:[#allocation8 + $0x2c0] sm:$0xff]
    %v1484 = vld [vmem:[#allocation8 + $0x2c8] sm:$0xff]
    %v1485 = vld [vmem:[#allocation8 + $0x2d0] sm:$0xff]
    %v1486 = vld [vmem:[#allocation8 + $0x2d8] sm:$0xff]
    %v1487 = vld [vmem:[#allocation8 + $0x2e0] sm:$0xff]
    %v1488 = vld [vmem:[#allocation8 + $0x2e8] sm:$0xff]
    %v1489 = vld [vmem:[#allocation8 + $0x2f0] sm:$0xff]
    %v1490 = vld [vmem:[#allocation8 + $0x2f8] sm:$0xff]
    %v1491 = vld [vmem:[#allocation8 + $0x300] sm:$0xff]
    %v1492 = vld [vmem:[#allocation8 + $0x308] sm:$0xff]
    %v1493 = vld [vmem:[#allocation8 + $0x310] sm:$0xff]
    %v1494 = vld [vmem:[#allocation8 + $0x318] sm:$0xff]
    %v1495 = vld [vmem:[#allocation8 + $0x320] sm:$0xff]
    %v1496 = vld [vmem:[#allocation8 + $0x328] sm:$0xff]
    %v1497 = vld [vmem:[#allocation8 + $0x330] sm:$0xff]
    %v1498 = vld [vmem:[#allocation8 + $0x338] sm:$0xff]
    %v1499 = vld [vmem:[#allocation8 + $0x340] sm:$0xff]
    %v1500 = vld [vmem:[#allocation8 + $0x348] sm:$0xff]
    %v1501 = vld [vmem:[#allocation8 + $0x350] sm:$0xff]
    %v1502 = vld [vmem:[#allocation8 + $0x358] sm:$0xff]
    %v1503 = vld [vmem:[#allocation8 + $0x360] sm:$0xff]
    %v1504 = vld [vmem:[#allocation8 + $0x368] sm:$0xff]
    %v1505 = vld [vmem:[#allocation8 + $0x370] sm:$0xff]
    %v1506 = vld [vmem:[#allocation8 + $0x378] sm:$0xff]
    %v1507 = vld [vmem:[#allocation8 + $0x380] sm:$0xff]
    %v1508 = vld [vmem:[#allocation8 + $0x388] sm:$0xff]
    %v1509 = vld [vmem:[#allocation8 + $0x390] sm:$0xff]
    %v1510 = vld [vmem:[#allocation8 + $0x398] sm:$0xff]
    %v1511 = vld [vmem:[#allocation8 + $0x3a0] sm:$0xff]
    %v1512 = vld [vmem:[#allocation8 + $0x3a8] sm:$0xff]
    %v1513 = vld [vmem:[#allocation8 + $0x3b0] sm:$0xff]
    %v1514 = vld [vmem:[#allocation8 + $0x3b8] sm:$0xff]
    %v1515 = vld [vmem:[#allocation8 + $0x3c0] sm:$0xff]
    %v1516 = vld [vmem:[#allocation8 + $0x3c8] sm:$0xff]
    %v1517 = vld [vmem:[#allocation8 + $0x3d0] sm:$0xff]
    %v1518 = vld [vmem:[#allocation8 + $0x3d8] sm:$0xff]
    %v1519 = vld [vmem:[#allocation8 + $0x3e0] sm:$0xff]
    %v1520 = vld [vmem:[#allocation8 + $0x3e8] sm:$0xff]
    %v1521 = vld [vmem:[#allocation8 + $0x3f0] sm:$0xff]
    %v1522 = vld [vmem:[#allocation8 + $0x3f8] sm:$0xff]
    %v1523 = vld [vmem:[#allocation8 + $0x400] sm:$0xff]
    %v1524 = vld [vmem:[#allocation8 + $0x408] sm:$0xff]
    %v1525 = vld [vmem:[#allocation8 + $0x410] sm:$0xff]
    %v1526 = vld [vmem:[#allocation8 + $0x418] sm:$0xff]
    %v1527 = vld [vmem:[#allocation8 + $0x420] sm:$0xff]
    %v1528 = vld [vmem:[#allocation8 + $0x428] sm:$0xff]
    %v1529 = vld [vmem:[#allocation8 + $0x430] sm:$0xff]
    %v1530 = vld [vmem:[#allocation8 + $0x438] sm:$0xff]
    %v1531 = vld [vmem:[#allocation8 + $0x440] sm:$0xff]
    %v1532 = vld [vmem:[#allocation8 + $0x448] sm:$0xff]
    %v1533 = vld [vmem:[#allocation8 + $0x450] sm:$0xff]
    %v1534 = vld [vmem:[#allocation8 + $0x458] sm:$0xff]
    %v1535 = vld [vmem:[#allocation8 + $0x460] sm:$0xff]
    %v1536 = vld [vmem:[#allocation8 + $0x468] sm:$0xff]
    %v1537 = vld [vmem:[#allocation8 + $0x470] sm:$0xff]
    %v1538 = vld [vmem:[#allocation8 + $0x478] sm:$0xff]
    %v1539 = vld [vmem:[#allocation8 + $0x480] sm:$0xff]
    %v1540 = vld [vmem:[#allocation8 + $0x488] sm:$0xff]
    %v1541 = vld [vmem:[#allocation8 + $0x490] sm:$0xff]
    %v1542 = vld [vmem:[#allocation8 + $0x498] sm:$0xff]
    %v1543 = vld [vmem:[#allocation8 + $0x4a0] sm:$0xff]
    %v1544 = vld [vmem:[#allocation8 + $0x4a8] sm:$0xff]
    %v1545 = vld [vmem:[#allocation8 + $0x4b0] sm:$0xff]
    %v1546 = vld [vmem:[#allocation8 + $0x4b8] sm:$0xff]
    %v1547 = vld [vmem:[#allocation8 + $0x4c0] sm:$0xff]
    %v1548 = vld [vmem:[#allocation8 + $0x4c8] sm:$0xff]
    %v1549 = vld [vmem:[#allocation8 + $0x4d0] sm:$0xff]
    %v1550 = vld [vmem:[#allocation8 + $0x4d8] sm:$0xff]
    %v1551 = vld [vmem:[#allocation8 + $0x4e0] sm:$0xff]
    %v1552 = vld [vmem:[#allocation8 + $0x4e8] sm:$0xff]
    %v1553 = vld [vmem:[#allocation8 + $0x4f0] sm:$0xff]
    %v1554 = vld [vmem:[#allocation8 + $0x4f8] sm:$0xff]
    %v1555 = vld [vmem:[#allocation8 + $0x500] sm:$0xff]
    %v1556 = vld [vmem:[#allocation8 + $0x508] sm:$0xff]
    %v1557 = vld [vmem:[#allocation8 + $0x510] sm:$0xff]
    %v1558 = vld [vmem:[#allocation8 + $0x518] sm:$0xff]
    %v1559 = vld [vmem:[#allocation8 + $0x520] sm:$0xff]
    %v1560 = vld [vmem:[#allocation8 + $0x528] sm:$0xff]
    %v1561 = vld [vmem:[#allocation8 + $0x530] sm:$0xff]
    %v1562 = vld [vmem:[#allocation8 + $0x538] sm:$0xff]
    %v1563 = vld [vmem:[#allocation8 + $0x540] sm:$0xff]
    %v1564 = vld [vmem:[#allocation8 + $0x548] sm:$0xff]
    %v1565 = vld [vmem:[#allocation8 + $0x550] sm:$0xff]
    %v1566 = vld [vmem:[#allocation8 + $0x558] sm:$0xff]
    %v1567 = vld [vmem:[#allocation8 + $0x560] sm:$0xff]
    %v1568 = vld [vmem:[#allocation8 + $0x568] sm:$0xff]
    %v1569 = vld [vmem:[#allocation8 + $0x570] sm:$0xff]
    %v1570 = vld [vmem:[#allocation8 + $0x578] sm:$0xff]
    %v1571 = vld [vmem:[#allocation8 + $0x580] sm:$0xff]
    %v1572 = vld [vmem:[#allocation8 + $0x588] sm:$0xff]
    %v1573 = vld [vmem:[#allocation8 + $0x590] sm:$0xff]
    %v1574 = vld [vmem:[#allocation8 + $0x598] sm:$0xff]
    %v1575 = vld [vmem:[#allocation8 + $0x5a0] sm:$0xff]
    %v1576 = vld [vmem:[#allocation8 + $0x5a8] sm:$0xff]
    %v1577 = vld [vmem:[#allocation8 + $0x5b0] sm:$0xff]
    %v1578 = vld [vmem:[#allocation8 + $0x5b8] sm:$0xff]
    %v1579 = vld [vmem:[#allocation8 + $0x5c0] sm:$0xff]
    %v1580 = vld [vmem:[#allocation8 + $0x5c8] sm:$0xff]
    %v1581 = vld [vmem:[#allocation8 + $0x5d0] sm:$0xff]
    %v1582 = vld [vmem:[#allocation8 + $0x5d8] sm:$0xff]
    %v1583 = vld [vmem:[#allocation8 + $0x5e0] sm:$0xff]
    %v1584 = vld [vmem:[#allocation8 + $0x5e8] sm:$0xff]
    %v1585 = vld [vmem:[#allocation8 + $0x5f0] sm:$0xff]
    %v1586 = vld [vmem:[#allocation8 + $0x5f8] sm:$0xff]
    %v1587 = vld [vmem:[#allocation8 + $0x600] sm:$0xff]
    %v1588 = vld [vmem:[#allocation8 + $0x608] sm:$0xff]
    %v1589 = vld [vmem:[#allocation8 + $0x610] sm:$0xff]
    %v1590 = vld [vmem:[#allocation8 + $0x618] sm:$0xff]
    %v1591 = vld [vmem:[#allocation8 + $0x620] sm:$0xff]
    %v1592 = vld [vmem:[#allocation8 + $0x628] sm:$0xff]
    %v1593 = vld [vmem:[#allocation8 + $0x630] sm:$0xff]
    %v1594 = vld [vmem:[#allocation8 + $0x638] sm:$0xff]
    %v1595 = vld [vmem:[#allocation8 + $0x640] sm:$0xff]
    %v1596 = vld [vmem:[#allocation8 + $0x648] sm:$0xff]
    %v1597 = vld [vmem:[#allocation8 + $0x650] sm:$0xff]
    %v1598 = vld [vmem:[#allocation8 + $0x658] sm:$0xff]
    %v1599 = vld [vmem:[#allocation8 + $0x660] sm:$0xff]
    %v1600 = vld [vmem:[#allocation8 + $0x668] sm:$0xff]
    %v1601 = vld [vmem:[#allocation8 + $0x670] sm:$0xff]
    %v1602 = vld [vmem:[#allocation8 + $0x678] sm:$0xff]
    %v1603 = vld [vmem:[#allocation8 + $0x680] sm:$0xff]
    %v1604 = vld [vmem:[#allocation8 + $0x688] sm:$0xff]
    %v1605 = vld [vmem:[#allocation8 + $0x690] sm:$0xff]
    %v1606 = vld [vmem:[#allocation8 + $0x698] sm:$0xff]
    %v1607 = vld [vmem:[#allocation8 + $0x6a0] sm:$0xff]
    %v1608 = vld [vmem:[#allocation8 + $0x6a8] sm:$0xff]
    %v1609 = vld [vmem:[#allocation8 + $0x6b0] sm:$0xff]
    %v1610 = vld [vmem:[#allocation8 + $0x6b8] sm:$0xff]
    %v1611 = vld [vmem:[#allocation8 + $0x6c0] sm:$0xff]
    %v1612 = vld [vmem:[#allocation8 + $0x6c8] sm:$0xff]
    %v1613 = vld [vmem:[#allocation8 + $0x6d0] sm:$0xff]
    %v1614 = vld [vmem:[#allocation8 + $0x6d8] sm:$0xff]
    %v1615 = vld [vmem:[#allocation8 + $0x6e0] sm:$0xff]
    %v1616 = vld [vmem:[#allocation8 + $0x6e8] sm:$0xff]
    %v1617 = vld [vmem:[#allocation8 + $0x6f0] sm:$0xff]
    %v1618 = vld [vmem:[#allocation8 + $0x6f8] sm:$0xff]
    %v1619 = vld [vmem:[#allocation8 + $0x700] sm:$0xff]
    %v1620 = vld [vmem:[#allocation8 + $0x708] sm:$0xff]
    %v1621 = vld [vmem:[#allocation8 + $0x710] sm:$0xff]
    %v1622 = vld [vmem:[#allocation8 + $0x718] sm:$0xff]
    %v1623 = vld [vmem:[#allocation8 + $0x720] sm:$0xff]
    %v1624 = vld [vmem:[#allocation8 + $0x728] sm:$0xff]
    %v1625 = vld [vmem:[#allocation8 + $0x730] sm:$0xff]
    %v1626 = vld [vmem:[#allocation8 + $0x738] sm:$0xff]
    %v1627 = vld [vmem:[#allocation8 + $0x740] sm:$0xff]
    %v1628 = vld [vmem:[#allocation8 + $0x748] sm:$0xff]
    %v1629 = vld [vmem:[#allocation8 + $0x750] sm:$0xff]
    %v1630 = vld [vmem:[#allocation8 + $0x758] sm:$0xff]
    %v1631 = vld [vmem:[#allocation8 + $0x760] sm:$0xff]
    %v1632 = vld [vmem:[#allocation8 + $0x768] sm:$0xff]
    %v1633 = vld [vmem:[#allocation8 + $0x770] sm:$0xff]
    %v1634 = vld [vmem:[#allocation8 + $0x778] sm:$0xff]
    %v1635 = vld [vmem:[#allocation8 + $0x780] sm:$0xff]
    %v1636 = vld [vmem:[#allocation8 + $0x788] sm:$0xff]
    %v1637 = vld [vmem:[#allocation8 + $0x790] sm:$0xff]
    %v1638 = vld [vmem:[#allocation8 + $0x798] sm:$0xff]
    %v1639 = vld [vmem:[#allocation8 + $0x7a0] sm:$0xff]
    %v1640 = vld [vmem:[#allocation8 + $0x7a8] sm:$0xff]
    %v1641 = vld [vmem:[#allocation8 + $0x7b0] sm:$0xff]
    %v1642 = vld [vmem:[#allocation8 + $0x7b8] sm:$0xff]
    %v1643 = vld [vmem:[#allocation8 + $0x7c0] sm:$0xff]
    %v1644 = vld [vmem:[#allocation8 + $0x7c8] sm:$0xff]
    %v1645 = vld [vmem:[#allocation8 + $0x7d0] sm:$0xff]
    %v1646 = vld [vmem:[#allocation8 + $0x7d8] sm:$0xff]
    %v1647 = vld [vmem:[#allocation8 + $0x7e0] sm:$0xff]
    %v1648 = vld [vmem:[#allocation8 + $0x7e8] sm:$0xff]
    %v1649 = vld [vmem:[#allocation8 + $0x7f0] sm:$0xff]
    %v1650 = vld [vmem:[#allocation8 + $0x7f8] sm:$0xff]
    %v1651 = vld [vmem:[#allocation8 + $0x800] sm:$0xff]
    %v1652 = vld [vmem:[#allocation8 + $0x808] sm:$0xff]
    %v1653 = vld [vmem:[#allocation8 + $0x810] sm:$0xff]
    %v1654 = vld [vmem:[#allocation8 + $0x818] sm:$0xff]
    %v1655 = vld [vmem:[#allocation8 + $0x820] sm:$0xff]
    %v1656 = vld [vmem:[#allocation8 + $0x828] sm:$0xff]
    %v1657 = vld [vmem:[#allocation8 + $0x830] sm:$0xff]
    %v1658 = vld [vmem:[#allocation8 + $0x838] sm:$0xff]
    %v1659 = vld [vmem:[#allocation8 + $0x840] sm:$0xff]
    %v1660 = vld [vmem:[#allocation8 + $0x848] sm:$0xff]
    %v1661 = vld [vmem:[#allocation8 + $0x850] sm:$0xff]
    %v1662 = vld [vmem:[#allocation8 + $0x858] sm:$0xff]
    %v1663 = vld [vmem:[#allocation8 + $0x860] sm:$0xff]
    %v1664 = vld [vmem:[#allocation8 + $0x868] sm:$0xff]
    %v1665 = vld [vmem:[#allocation8 + $0x870] sm:$0xff]
    %v1666 = vld [vmem:[#allocation8 + $0x878] sm:$0xff]
    %v1667 = vld [vmem:[#allocation8 + $0x880] sm:$0xff]
    %v1668 = vld [vmem:[#allocation8 + $0x888] sm:$0xff]
    %v1669 = vld [vmem:[#allocation8 + $0x890] sm:$0xff]
    %v1670 = vld [vmem:[#allocation8 + $0x898] sm:$0xff]
    %v1671 = vld [vmem:[#allocation8 + $0x8a0] sm:$0xff]
    %v1672 = vld [vmem:[#allocation8 + $0x8a8] sm:$0xff]
    %v1673 = vld [vmem:[#allocation8 + $0x8b0] sm:$0xff]
    %v1674 = vld [vmem:[#allocation8 + $0x8b8] sm:$0xff]
    %v1675 = vld [vmem:[#allocation8 + $0x8c0] sm:$0xff]
    %v1676 = vld [vmem:[#allocation8 + $0x8c8] sm:$0xff]
    %v1677 = vld [vmem:[#allocation8 + $0x8d0] sm:$0xff]
    %v1678 = vld [vmem:[#allocation8 + $0x8d8] sm:$0xff]
    %v1679 = vld [vmem:[#allocation8 + $0x8e0] sm:$0xff]
    %v1680 = vld [vmem:[#allocation8 + $0x8e8] sm:$0xff]
    %v1681 = vld [vmem:[#allocation8 + $0x8f0] sm:$0xff]
    %v1682 = vld [vmem:[#allocation8 + $0x8f8] sm:$0xff]
    %v1683 = vld [vmem:[#allocation8 + $0x900] sm:$0xff]
    %v1684 = vld [vmem:[#allocation8 + $0x908] sm:$0xff]
    %v1685 = vld [vmem:[#allocation8 + $0x910] sm:$0xff]
    %v1686 = vld [vmem:[#allocation8 + $0x918] sm:$0xff]
    %v1687 = vld [vmem:[#allocation8 + $0x920] sm:$0xff]
    %v1688 = vld [vmem:[#allocation8 + $0x928] sm:$0xff]
    %v1689 = vld [vmem:[#allocation8 + $0x930] sm:$0xff]
    %v1690 = vld [vmem:[#allocation8 + $0x938] sm:$0xff]
    %v1691 = vld [vmem:[#allocation8 + $0x940] sm:$0xff]
    %v1692 = vld [vmem:[#allocation8 + $0x948] sm:$0xff]
    %v1693 = vld [vmem:[#allocation8 + $0x950] sm:$0xff]
    %v1694 = vld [vmem:[#allocation8 + $0x958] sm:$0xff]
    %v1695 = vld [vmem:[#allocation8 + $0x960] sm:$0xff]
    %v1696 = vld [vmem:[#allocation8 + $0x968] sm:$0xff]
    %v1697 = vld [vmem:[#allocation8 + $0x970] sm:$0xff]
    %v1698 = vld [vmem:[#allocation8 + $0x978] sm:$0xff]
    %v1699 = vld [vmem:[#allocation8 + $0x980] sm:$0xff]
    %v1700 = vld [vmem:[#allocation8 + $0x988] sm:$0xff]
    %v1701 = vld [vmem:[#allocation8 + $0x990] sm:$0xff]
    %v1702 = vld [vmem:[#allocation8 + $0x998] sm:$0xff]
    %v1703 = vld [vmem:[#allocation8 + $0x9a0] sm:$0xff]
    %v1704 = vld [vmem:[#allocation8 + $0x9a8] sm:$0xff]
    %v1705 = vld [vmem:[#allocation8 + $0x9b0] sm:$0xff]
    %v1706 = vld [vmem:[#allocation8 + $0x9b8] sm:$0xff]
    %v1707 = vld [vmem:[#allocation8 + $0x9c0] sm:$0xff]
    %v1708 = vld [vmem:[#allocation8 + $0x9c8] sm:$0xff]
    %v1709 = vld [vmem:[#allocation8 + $0x9d0] sm:$0xff]
    %v1710 = vld [vmem:[#allocation8 + $0x9d8] sm:$0xff]
    %v1711 = vld [vmem:[#allocation8 + $0x9e0] sm:$0xff]
    %v1712 = vld [vmem:[#allocation8 + $0x9e8] sm:$0xff]
    %v1713 = vld [vmem:[#allocation8 + $0x9f0] sm:$0xff]
    %v1714 = vld [vmem:[#allocation8 + $0x9f8] sm:$0xff]
    %v1715 = vld [vmem:[#allocation8 + $0xa00] sm:$0xff]
    %v1716 = vld [vmem:[#allocation8 + $0xa08] sm:$0xff]
    %v1717 = vld [vmem:[#allocation8 + $0xa10] sm:$0xff]
    %v1718 = vld [vmem:[#allocation8 + $0xa18] sm:$0xff]
    %v1719 = vld [vmem:[#allocation8 + $0xa20] sm:$0xff]
    %v1720 = vld [vmem:[#allocation8 + $0xa28] sm:$0xff]
    %v1721 = vld [vmem:[#allocation8 + $0xa30] sm:$0xff]
    %v1722 = vld [vmem:[#allocation8 + $0xa38] sm:$0xff]
    %v1723 = vld [vmem:[#allocation8 + $0xa40] sm:$0xff]
    %v1724 = vld [vmem:[#allocation8 + $0xa48] sm:$0xff]
    %v1725 = vld [vmem:[#allocation8 + $0xa50] sm:$0xff]
    %v1726 = vld [vmem:[#allocation8 + $0xa58] sm:$0xff]
    %v1727 = vld [vmem:[#allocation8 + $0xa60] sm:$0xff]
    %v1728 = vld [vmem:[#allocation8 + $0xa68] sm:$0xff]
    %v1729 = vld [vmem:[#allocation8 + $0xa70] sm:$0xff]
    %v1730 = vld [vmem:[#allocation8 + $0xa78] sm:$0xff]
    %v1731 = vld [vmem:[#allocation8 + $0xa80] sm:$0xff]
    %v1732 = vld [vmem:[#allocation8 + $0xa88] sm:$0xff]
    %v1733 = vld [vmem:[#allocation8 + $0xa90] sm:$0xff]
    %v1734 = vld [vmem:[#allocation8 + $0xa98] sm:$0xff]
    %v1735 = vld [vmem:[#allocation8 + $0xaa0] sm:$0xff]
    %v1736 = vld [vmem:[#allocation8 + $0xaa8] sm:$0xff]
    %v1737 = vld [vmem:[#allocation8 + $0xab0] sm:$0xff]
    %v1738 = vld [vmem:[#allocation8 + $0xab8] sm:$0xff]
    %v1739 = vld [vmem:[#allocation8 + $0xac0] sm:$0xff]
    %v1740 = vld [vmem:[#allocation8 + $0xac8] sm:$0xff]
    %v1741 = vld [vmem:[#allocation8 + $0xad0] sm:$0xff]
    %v1742 = vld [vmem:[#allocation8 + $0xad8] sm:$0xff]
    %v1743 = vld [vmem:[#allocation8 + $0xae0] sm:$0xff]
    %v1744 = vld [vmem:[#allocation8 + $0xae8] sm:$0xff]
    %v1745 = vld [vmem:[#allocation8 + $0xaf0] sm:$0xff]
    %v1746 = vld [vmem:[#allocation8 + $0xaf8] sm:$0xff]
    %v1747 = vld [vmem:[#allocation8 + $0xb00] sm:$0xff]
    %v1748 = vld [vmem:[#allocation8 + $0xb08] sm:$0xff]
    %v1749 = vld [vmem:[#allocation8 + $0xb10] sm:$0xff]
    %v1750 = vld [vmem:[#allocation8 + $0xb18] sm:$0xff]
    %v1751 = vld [vmem:[#allocation8 + $0xb20] sm:$0xff]
    %v1752 = vld [vmem:[#allocation8 + $0xb28] sm:$0xff]
    %v1753 = vld [vmem:[#allocation8 + $0xb30] sm:$0xff]
    %v1754 = vld [vmem:[#allocation8 + $0xb38] sm:$0xff]
    %v1755 = vld [vmem:[#allocation8 + $0xb40] sm:$0xff]
    %v1756 = vld [vmem:[#allocation8 + $0xb48] sm:$0xff]
    %v1757 = vld [vmem:[#allocation8 + $0xb50] sm:$0xff]
    %v1758 = vld [vmem:[#allocation8 + $0xb58] sm:$0xff]
    %v1759 = vld [vmem:[#allocation8 + $0xb60] sm:$0xff]
    %v1760 = vld [vmem:[#allocation8 + $0xb68] sm:$0xff]
    %v1761 = vld [vmem:[#allocation8 + $0xb70] sm:$0xff]
    %v1762 = vld [vmem:[#allocation8 + $0xb78] sm:$0xff]
    %v1763 = vld [vmem:[#allocation8 + $0xb80] sm:$0xff]
    %v1764 = vld [vmem:[#allocation8 + $0xb88] sm:$0xff]
    %v1765 = vld [vmem:[#allocation8 + $0xb90] sm:$0xff]
    %v1766 = vld [vmem:[#allocation8 + $0xb98] sm:$0xff]
    %v1767 = vld [vmem:[#allocation8 + $0xba0] sm:$0xff]
    %v1768 = vld [vmem:[#allocation8 + $0xba8] sm:$0xff]
    %v1769 = vld [vmem:[#allocation8 + $0xbb0] sm:$0xff]
    %v1770 = vld [vmem:[#allocation8 + $0xbb8] sm:$0xff]
    %v1771 = vld [vmem:[#allocation8 + $0xbc0] sm:$0xff]
    %v1772 = vld [vmem:[#allocation8 + $0xbc8] sm:$0xff]
    %v1773 = vld [vmem:[#allocation8 + $0xbd0] sm:$0xff]
    %v1774 = vld [vmem:[#allocation8 + $0xbd8] sm:$0xff]
    %v1775 = vld [vmem:[#allocation8 + $0xbe0] sm:$0xff]
    %v1776 = vld [vmem:[#allocation8 + $0xbe8] sm:$0xff]
    %v1777 = vld [vmem:[#allocation8 + $0xbf0] sm:$0xff]
    %v1778 = vld [vmem:[#allocation8 + $0xbf8] sm:$0xff]
    %v1779 = vld [vmem:[#allocation8 + $0xc00] sm:$0xff]
    %v1780 = vld [vmem:[#allocation8 + $0xc08] sm:$0xff]
    %v1781 = vld [vmem:[#allocation8 + $0xc10] sm:$0xff]
    %v1782 = vld [vmem:[#allocation8 + $0xc18] sm:$0xff]
    %v1783 = vld [vmem:[#allocation8 + $0xc20] sm:$0xff]
    %v1784 = vld [vmem:[#allocation8 + $0xc28] sm:$0xff]
    %v1785 = vld [vmem:[#allocation8 + $0xc30] sm:$0xff]
    %v1786 = vld [vmem:[#allocation8 + $0xc38] sm:$0xff]
    %v1787 = vld [vmem:[#allocation8 + $0xc40] sm:$0xff]
    %v1788 = vld [vmem:[#allocation8 + $0xc48] sm:$0xff]
    %v1789 = vld [vmem:[#allocation8 + $0xc50] sm:$0xff]
    %v1790 = vld [vmem:[#allocation8 + $0xc58] sm:$0xff]
    %v1791 = vld [vmem:[#allocation8 + $0xc60] sm:$0xff]
    %v1792 = vld [vmem:[#allocation8 + $0xc68] sm:$0xff]
    %v1793 = vld [vmem:[#allocation8 + $0xc70] sm:$0xff]
    %v1794 = vld [vmem:[#allocation8 + $0xc78] sm:$0xff]
    %v1795 = vld [vmem:[#allocation8 + $0xc80] sm:$0xff]
    %v1796 = vld [vmem:[#allocation8 + $0xc88] sm:$0xff]
    %v1797 = vld [vmem:[#allocation8 + $0xc90] sm:$0xff]
    %v1798 = vld [vmem:[#allocation8 + $0xc98] sm:$0xff]
    %v1799 = vld [vmem:[#allocation8 + $0xca0] sm:$0xff]
    %v1800 = vld [vmem:[#allocation8 + $0xca8] sm:$0xff]
    %v1801 = vld [vmem:[#allocation8 + $0xcb0] sm:$0xff]
    %v1802 = vld [vmem:[#allocation8 + $0xcb8] sm:$0xff]
    %v1803 = vld [vmem:[#allocation8 + $0xcc0] sm:$0xff]
    %v1804 = vld [vmem:[#allocation8 + $0xcc8] sm:$0xff]
    %v1805 = vld [vmem:[#allocation8 + $0xcd0] sm:$0xff]
    %v1806 = vld [vmem:[#allocation8 + $0xcd8] sm:$0xff]
    %v1807 = vld [vmem:[#allocation8 + $0xce0] sm:$0xff]
    %v1808 = vld [vmem:[#allocation8 + $0xce8] sm:$0xff]
    %v1809 = vld [vmem:[#allocation8 + $0xcf0] sm:$0xff]
    %v1810 = vld [vmem:[#allocation8 + $0xcf8] sm:$0xff]
    %v1811 = vld [vmem:[#allocation8 + $0xd00] sm:$0xff]
    %v1812 = vld [vmem:[#allocation8 + $0xd08] sm:$0xff]
    %v1813 = vld [vmem:[#allocation8 + $0xd10] sm:$0xff]
    %v1814 = vld [vmem:[#allocation8 + $0xd18] sm:$0xff]
    %v1815 = vld [vmem:[#allocation8 + $0xd20] sm:$0xff]
    %v1816 = vld [vmem:[#allocation8 + $0xd28] sm:$0xff]
    %v1817 = vld [vmem:[#allocation8 + $0xd30] sm:$0xff]
    %v1818 = vld [vmem:[#allocation8 + $0xd38] sm:$0xff]
    %v1819 = vld [vmem:[#allocation8 + $0xd40] sm:$0xff]
    %v1820 = vld [vmem:[#allocation8 + $0xd48] sm:$0xff]
    %v1821 = vld [vmem:[#allocation8 + $0xd50] sm:$0xff]
    %v1822 = vld [vmem:[#allocation8 + $0xd58] sm:$0xff]
    %v1823 = vld [vmem:[#allocation8 + $0xd60] sm:$0xff]
    %v1824 = vld [vmem:[#allocation8 + $0xd68] sm:$0xff]
    %v1825 = vld [vmem:[#allocation8 + $0xd70] sm:$0xff]
    %v1826 = vld [vmem:[#allocation8 + $0xd78] sm:$0xff]
    %v1827 = vld [vmem:[#allocation8 + $0xd80] sm:$0xff]
    %v1828 = vld [vmem:[#allocation8 + $0xd88] sm:$0xff]
    %v1829 = vld [vmem:[#allocation8 + $0xd90] sm:$0xff]
    %v1830 = vld [vmem:[#allocation8 + $0xd98] sm:$0xff]
    %v1831 = vld [vmem:[#allocation8 + $0xda0] sm:$0xff]
    %v1832 = vld [vmem:[#allocation8 + $0xda8] sm:$0xff]
    %v1833 = vld [vmem:[#allocation8 + $0xdb0] sm:$0xff]
    %v1834 = vld [vmem:[#allocation8 + $0xdb8] sm:$0xff]
    %v1835 = vld [vmem:[#allocation8 + $0xdc0] sm:$0xff]
    %v1836 = vld [vmem:[#allocation8 + $0xdc8] sm:$0xff]
    %v1837 = vld [vmem:[#allocation8 + $0xdd0] sm:$0xff]
    %v1838 = vld [vmem:[#allocation8 + $0xdd8] sm:$0xff]
    %v1839 = vld [vmem:[#allocation8 + $0xde0] sm:$0xff]
    %v1840 = vld [vmem:[#allocation8 + $0xde8] sm:$0xff]
    %v1841 = vld [vmem:[#allocation8 + $0xdf0] sm:$0xff]
    %v1842 = vld [vmem:[#allocation8 + $0xdf8] sm:$0xff]
    %v1843 = vld [vmem:[#allocation8 + $0xe00] sm:$0xff]
    %v1844 = vld [vmem:[#allocation8 + $0xe08] sm:$0xff]
    %v1845 = vld [vmem:[#allocation8 + $0xe10] sm:$0xff]
    %v1846 = vld [vmem:[#allocation8 + $0xe18] sm:$0xff]
    %v1847 = vld [vmem:[#allocation8 + $0xe20] sm:$0xff]
    %v1848 = vld [vmem:[#allocation8 + $0xe28] sm:$0xff]
    %v1849 = vld [vmem:[#allocation8 + $0xe30] sm:$0xff]
    %v1850 = vld [vmem:[#allocation8 + $0xe38] sm:$0xff]
    %v1851 = vld [vmem:[#allocation8 + $0xe40] sm:$0xff]
    %v1852 = vld [vmem:[#allocation8 + $0xe48] sm:$0xff]
    %v1853 = vld [vmem:[#allocation8 + $0xe50] sm:$0xff]
    %v1854 = vld [vmem:[#allocation8 + $0xe58] sm:$0xff]
    %v1855 = vld [vmem:[#allocation8 + $0xe60] sm:$0xff]
    %v1856 = vld [vmem:[#allocation8 + $0xe68] sm:$0xff]
    %v1857 = vld [vmem:[#allocation8 + $0xe70] sm:$0xff]
    %v1858 = vld [vmem:[#allocation8 + $0xe78] sm:$0xff]
    %v1859 = vld [vmem:[#allocation8 + $0xe80] sm:$0xff]
    %v1860 = vld [vmem:[#allocation8 + $0xe88] sm:$0xff]
    %v1861 = vld [vmem:[#allocation8 + $0xe90] sm:$0xff]
    %v1862 = vld [vmem:[#allocation8 + $0xe98] sm:$0xff]
    %v1863 = vld [vmem:[#allocation8 + $0xea0] sm:$0xff]
    %v1864 = vld [vmem:[#allocation8 + $0xea8] sm:$0xff]
    %v1865 = vld [vmem:[#allocation8 + $0xeb0] sm:$0xff]
    %v1866 = vld [vmem:[#allocation8 + $0xeb8] sm:$0xff]
    %v1867 = vld [vmem:[#allocation8 + $0xec0] sm:$0xff]
    %v1868 = vld [vmem:[#allocation8 + $0xec8] sm:$0xff]
    %v1869 = vld [vmem:[#allocation8 + $0xed0] sm:$0xff]
    %v1870 = vld [vmem:[#allocation8 + $0xed8] sm:$0xff]
    %v1871 = vld [vmem:[#allocation8 + $0xee0] sm:$0xff]
    %v1872 = vld [vmem:[#allocation8 + $0xee8] sm:$0xff]
    %v1873 = vld [vmem:[#allocation8 + $0xef0] sm:$0xff]
    %v1874 = vld [vmem:[#allocation8 + $0xef8] sm:$0xff]
    %v1875 = vld [vmem:[#allocation8 + $0xf00] sm:$0xff]
    %v1876 = vld [vmem:[#allocation8 + $0xf08] sm:$0xff]
    %v1877 = vld [vmem:[#allocation8 + $0xf10] sm:$0xff]
    %v1878 = vld [vmem:[#allocation8 + $0xf18] sm:$0xff]
    %v1879 = vld [vmem:[#allocation8 + $0xf20] sm:$0xff]
    %v1880 = vld [vmem:[#allocation8 + $0xf28] sm:$0xff]
    %v1881 = vld [vmem:[#allocation8 + $0xf30] sm:$0xff]
    %v1882 = vld [vmem:[#allocation8 + $0xf38] sm:$0xff]
    %v1883 = vld [vmem:[#allocation8 + $0xf40] sm:$0xff]
    %v1884 = vld [vmem:[#allocation8 + $0xf48] sm:$0xff]
    %v1885 = vld [vmem:[#allocation8 + $0xf50] sm:$0xff]
    %v1886 = vld [vmem:[#allocation8 + $0xf58] sm:$0xff]
    %v1887 = vld [vmem:[#allocation8 + $0xf60] sm:$0xff]
    %v1888 = vld [vmem:[#allocation8 + $0xf68] sm:$0xff]
    %v1889 = vld [vmem:[#allocation8 + $0xf70] sm:$0xff]
    %v1890 = vld [vmem:[#allocation8 + $0xf78] sm:$0xff]
    %v1891 = vld [vmem:[#allocation8 + $0xf80] sm:$0xff]
    %v1892 = vld [vmem:[#allocation8 + $0xf88] sm:$0xff]
    %v1893 = vld [vmem:[#allocation8 + $0xf90] sm:$0xff]
    %v1894 = vld [vmem:[#allocation8 + $0xf98] sm:$0xff]
    %v1895 = vld [vmem:[#allocation8 + $0xfa0] sm:$0xff]
    %v1896 = vld [vmem:[#allocation8 + $0xfa8] sm:$0xff]
    %v1897 = vld [vmem:[#allocation8 + $0xfb0] sm:$0xff]
    %v1898 = vld [vmem:[#allocation8 + $0xfb8] sm:$0xff]
    %v1899 = vld [vmem:[#allocation8 + $0xfc0] sm:$0xff]
    %v1900 = vld [vmem:[#allocation8 + $0xfc8] sm:$0xff]
    %v1901 = vld [vmem:[#allocation8 + $0xfd0] sm:$0xff]
    %v1902 = vld [vmem:[#allocation8 + $0xfd8] sm:$0xff]
    %v1903 = vld [vmem:[#allocation8 + $0xfe0] sm:$0xff]
    %v1904 = vld [vmem:[#allocation8 + $0xfe8] sm:$0xff]
    %v1905 = vld [vmem:[#allocation8 + $0xff0] sm:$0xff]
    %v1906 = vld [vmem:[#allocation8 + $0xff8] sm:$0xff]
    %v1907 = vld [vmem:[#allocation10] sm:$0xf]
    %v1909 = vlaneseq
    %v1910 = vshrl.u32 %v1909, 7
    %v1911 = vsub.s32 0, %v1910
    %v1912 = vrot.slane %v1907, %v1911
    %v1913 = vlaneseq
    %v1914 = vshrl.u32 %v1913, 7
    %v1915 = vsub.s32 1, %v1914
    %v1916 = vrot.slane %v1907, %v1915
    %v1917 = vlaneseq
    %v1918 = vshrl.u32 %v1917, 7
    %v1919 = vsub.s32 2, %v1918
    %v1920 = vrot.slane %v1907, %v1919
    %v1921 = vlaneseq
    %v1922 = vshrl.u32 %v1921, 7
    %v1923 = vsub.s32 3, %v1922
    %v1924 = vrot.slane %v1907, %v1923
    %v2441 = vunpack.c.l.b16 %v1395
    %v2442 = vunpack.c.h.b16 %v1395
    %v2443 = vunpack.c.l.b16 %v1396
    %v2444 = vunpack.c.h.b16 %v1396
    %v2445 = vunpack.c.l.b16 %v1397
    %v2446 = vunpack.c.h.b16 %v1397
    %v2447 = vunpack.c.l.b16 %v1398
    %v2448 = vunpack.c.h.b16 %v1398
    %v2449 = vunpack.c.l.b16 %v1399
    %v2450 = vunpack.c.h.b16 %v1399
    %v2451 = vunpack.c.l.b16 %v1400
    %v2452 = vunpack.c.h.b16 %v1400
    %v2453 = vunpack.c.l.b16 %v1401
    %v2454 = vunpack.c.h.b16 %v1401
    %v2455 = vunpack.c.l.b16 %v1402
    %v2456 = vunpack.c.h.b16 %v1402
    %v2457 = vunpack.c.l.b16 %v1403
    %v2458 = vunpack.c.h.b16 %v1403
    %v2459 = vunpack.c.l.b16 %v1404
    %v2460 = vunpack.c.h.b16 %v1404
    %v2461 = vunpack.c.l.b16 %v1405
    %v2462 = vunpack.c.h.b16 %v1405
    %v2463 = vunpack.c.l.b16 %v1406
    %v2464 = vunpack.c.h.b16 %v1406
    %v2465 = vunpack.c.l.b16 %v1407
    %v2466 = vunpack.c.h.b16 %v1407
    %v2467 = vunpack.c.l.b16 %v1408
    %v2468 = vunpack.c.h.b16 %v1408
    %v2469 = vunpack.c.l.b16 %v1409
    %v2470 = vunpack.c.h.b16 %v1409
    %v2471 = vunpack.c.l.b16 %v1410
    %v2472 = vunpack.c.h.b16 %v1410
    %v2473 = vunpack.c.l.b16 %v1411
    %v2474 = vunpack.c.h.b16 %v1411
    %v2475 = vunpack.c.l.b16 %v1412
    %v2476 = vunpack.c.h.b16 %v1412
    %v2477 = vunpack.c.l.b16 %v1413
    %v2478 = vunpack.c.h.b16 %v1413
    %v2479 = vunpack.c.l.b16 %v1414
    %v2480 = vunpack.c.h.b16 %v1414
    %v2481 = vunpack.c.l.b16 %v1415
    %v2482 = vunpack.c.h.b16 %v1415
    %v2483 = vunpack.c.l.b16 %v1416
    %v2484 = vunpack.c.h.b16 %v1416
    %v2485 = vunpack.c.l.b16 %v1417
    %v2486 = vunpack.c.h.b16 %v1417
    %v2487 = vunpack.c.l.b16 %v1418
    %v2488 = vunpack.c.h.b16 %v1418
    %v2489 = vunpack.c.l.b16 %v1419
    %v2490 = vunpack.c.h.b16 %v1419
    %v2491 = vunpack.c.l.b16 %v1420
    %v2492 = vunpack.c.h.b16 %v1420
    %v2493 = vunpack.c.l.b16 %v1421
    %v2494 = vunpack.c.h.b16 %v1421
    %v2495 = vunpack.c.l.b16 %v1422
    %v2496 = vunpack.c.h.b16 %v1422
    %v2497 = vunpack.c.l.b16 %v1423
    %v2498 = vunpack.c.h.b16 %v1423
    %v2499 = vunpack.c.l.b16 %v1424
    %v2500 = vunpack.c.h.b16 %v1424
    %v2501 = vunpack.c.l.b16 %v1425
    %v2502 = vunpack.c.h.b16 %v1425
    %v2503 = vunpack.c.l.b16 %v1426
    %v2504 = vunpack.c.h.b16 %v1426
    %v2505 = vunpack.c.l.b16 %v1427
    %v2506 = vunpack.c.h.b16 %v1427
    %v2507 = vunpack.c.l.b16 %v1428
    %v2508 = vunpack.c.h.b16 %v1428
    %v2509 = vunpack.c.l.b16 %v1429
    %v2510 = vunpack.c.h.b16 %v1429
    %v2511 = vunpack.c.l.b16 %v1430
    %v2512 = vunpack.c.h.b16 %v1430
    %v2513 = vunpack.c.l.b16 %v1431
    %v2514 = vunpack.c.h.b16 %v1431
    %v2515 = vunpack.c.l.b16 %v1432
    %v2516 = vunpack.c.h.b16 %v1432
    %v2517 = vunpack.c.l.b16 %v1433
    %v2518 = vunpack.c.h.b16 %v1433
    %v2519 = vunpack.c.l.b16 %v1434
    %v2520 = vunpack.c.h.b16 %v1434
    %v2521 = vunpack.c.l.b16 %v1435
    %v2522 = vunpack.c.h.b16 %v1435
    %v2523 = vunpack.c.l.b16 %v1436
    %v2524 = vunpack.c.h.b16 %v1436
    %v2525 = vunpack.c.l.b16 %v1437
    %v2526 = vunpack.c.h.b16 %v1437
    %v2527 = vunpack.c.l.b16 %v1438
    %v2528 = vunpack.c.h.b16 %v1438
    %v2529 = vunpack.c.l.b16 %v1439
    %v2530 = vunpack.c.h.b16 %v1439
    %v2531 = vunpack.c.l.b16 %v1440
    %v2532 = vunpack.c.h.b16 %v1440
    %v2533 = vunpack.c.l.b16 %v1441
    %v2534 = vunpack.c.h.b16 %v1441
    %v2535 = vunpack.c.l.b16 %v1442
    %v2536 = vunpack.c.h.b16 %v1442
    %v2537 = vunpack.c.l.b16 %v1443
    %v2538 = vunpack.c.h.b16 %v1443
    %v2539 = vunpack.c.l.b16 %v1444
    %v2540 = vunpack.c.h.b16 %v1444
    %v2541 = vunpack.c.l.b16 %v1445
    %v2542 = vunpack.c.h.b16 %v1445
    %v2543 = vunpack.c.l.b16 %v1446
    %v2544 = vunpack.c.h.b16 %v1446
    %v2545 = vunpack.c.l.b16 %v1447
    %v2546 = vunpack.c.h.b16 %v1447
    %v2547 = vunpack.c.l.b16 %v1448
    %v2548 = vunpack.c.h.b16 %v1448
    %v2549 = vunpack.c.l.b16 %v1449
    %v2550 = vunpack.c.h.b16 %v1449
    %v2551 = vunpack.c.l.b16 %v1450
    %v2552 = vunpack.c.h.b16 %v1450
    %v2553 = vunpack.c.l.b16 %v1451
    %v2554 = vunpack.c.h.b16 %v1451
    %v2555 = vunpack.c.l.b16 %v1452
    %v2556 = vunpack.c.h.b16 %v1452
    %v2557 = vunpack.c.l.b16 %v1453
    %v2558 = vunpack.c.h.b16 %v1453
    %v2559 = vunpack.c.l.b16 %v1454
    %v2560 = vunpack.c.h.b16 %v1454
    %v2561 = vunpack.c.l.b16 %v1455
    %v2562 = vunpack.c.h.b16 %v1455
    %v2563 = vunpack.c.l.b16 %v1456
    %v2564 = vunpack.c.h.b16 %v1456
    %v2565 = vunpack.c.l.b16 %v1457
    %v2566 = vunpack.c.h.b16 %v1457
    %v2567 = vunpack.c.l.b16 %v1458
    %v2568 = vunpack.c.h.b16 %v1458
    %v2569 = vunpack.c.l.b16 %v1459
    %v2570 = vunpack.c.h.b16 %v1459
    %v2571 = vunpack.c.l.b16 %v1460
    %v2572 = vunpack.c.h.b16 %v1460
    %v2573 = vunpack.c.l.b16 %v1461
    %v2574 = vunpack.c.h.b16 %v1461
    %v2575 = vunpack.c.l.b16 %v1462
    %v2576 = vunpack.c.h.b16 %v1462
    %v2577 = vunpack.c.l.b16 %v1463
    %v2578 = vunpack.c.h.b16 %v1463
    %v2579 = vunpack.c.l.b16 %v1464
    %v2580 = vunpack.c.h.b16 %v1464
    %v2581 = vunpack.c.l.b16 %v1465
    %v2582 = vunpack.c.h.b16 %v1465
    %v2583 = vunpack.c.l.b16 %v1466
    %v2584 = vunpack.c.h.b16 %v1466
    %v2585 = vunpack.c.l.b16 %v1467
    %v2586 = vunpack.c.h.b16 %v1467
    %v2587 = vunpack.c.l.b16 %v1468
    %v2588 = vunpack.c.h.b16 %v1468
    %v2589 = vunpack.c.l.b16 %v1469
    %v2590 = vunpack.c.h.b16 %v1469
    %v2591 = vunpack.c.l.b16 %v1470
    %v2592 = vunpack.c.h.b16 %v1470
    %v2593 = vunpack.c.l.b16 %v1471
    %v2594 = vunpack.c.h.b16 %v1471
    %v2595 = vunpack.c.l.b16 %v1472
    %v2596 = vunpack.c.h.b16 %v1472
    %v2597 = vunpack.c.l.b16 %v1473
    %v2598 = vunpack.c.h.b16 %v1473
    %v2599 = vunpack.c.l.b16 %v1474
    %v2600 = vunpack.c.h.b16 %v1474
    %v2601 = vunpack.c.l.b16 %v1475
    %v2602 = vunpack.c.h.b16 %v1475
    %v2603 = vunpack.c.l.b16 %v1476
    %v2604 = vunpack.c.h.b16 %v1476
    %v2605 = vunpack.c.l.b16 %v1477
    %v2606 = vunpack.c.h.b16 %v1477
    %v2607 = vunpack.c.l.b16 %v1478
    %v2608 = vunpack.c.h.b16 %v1478
    %v2609 = vunpack.c.l.b16 %v1479
    %v2610 = vunpack.c.h.b16 %v1479
    %v2611 = vunpack.c.l.b16 %v1480
    %v2612 = vunpack.c.h.b16 %v1480
    %v2613 = vunpack.c.l.b16 %v1481
    %v2614 = vunpack.c.h.b16 %v1481
    %v2615 = vunpack.c.l.b16 %v1482
    %v2616 = vunpack.c.h.b16 %v1482
    %v2617 = vunpack.c.l.b16 %v1483
    %v2618 = vunpack.c.h.b16 %v1483
    %v2619 = vunpack.c.l.b16 %v1484
    %v2620 = vunpack.c.h.b16 %v1484
    %v2621 = vunpack.c.l.b16 %v1485
    %v2622 = vunpack.c.h.b16 %v1485
    %v2623 = vunpack.c.l.b16 %v1486
    %v2624 = vunpack.c.h.b16 %v1486
    %v2625 = vunpack.c.l.b16 %v1487
    %v2626 = vunpack.c.h.b16 %v1487
    %v2627 = vunpack.c.l.b16 %v1488
    %v2628 = vunpack.c.h.b16 %v1488
    %v2629 = vunpack.c.l.b16 %v1489
    %v2630 = vunpack.c.h.b16 %v1489
    %v2631 = vunpack.c.l.b16 %v1490
    %v2632 = vunpack.c.h.b16 %v1490
    %v2633 = vunpack.c.l.b16 %v1491
    %v2634 = vunpack.c.h.b16 %v1491
    %v2635 = vunpack.c.l.b16 %v1492
    %v2636 = vunpack.c.h.b16 %v1492
    %v2637 = vunpack.c.l.b16 %v1493
    %v2638 = vunpack.c.h.b16 %v1493
    %v2639 = vunpack.c.l.b16 %v1494
    %v2640 = vunpack.c.h.b16 %v1494
    %v2641 = vunpack.c.l.b16 %v1495
    %v2642 = vunpack.c.h.b16 %v1495
    %v2643 = vunpack.c.l.b16 %v1496
    %v2644 = vunpack.c.h.b16 %v1496
    %v2645 = vunpack.c.l.b16 %v1497
    %v2646 = vunpack.c.h.b16 %v1497
    %v2647 = vunpack.c.l.b16 %v1498
    %v2648 = vunpack.c.h.b16 %v1498
    %v2649 = vunpack.c.l.b16 %v1499
    %v2650 = vunpack.c.h.b16 %v1499
    %v2651 = vunpack.c.l.b16 %v1500
    %v2652 = vunpack.c.h.b16 %v1500
    %v2653 = vunpack.c.l.b16 %v1501
    %v2654 = vunpack.c.h.b16 %v1501
    %v2655 = vunpack.c.l.b16 %v1502
    %v2656 = vunpack.c.h.b16 %v1502
    %v2657 = vunpack.c.l.b16 %v1503
    %v2658 = vunpack.c.h.b16 %v1503
    %v2659 = vunpack.c.l.b16 %v1504
    %v2660 = vunpack.c.h.b16 %v1504
    %v2661 = vunpack.c.l.b16 %v1505
    %v2662 = vunpack.c.h.b16 %v1505
    %v2663 = vunpack.c.l.b16 %v1506
    %v2664 = vunpack.c.h.b16 %v1506
    %v2665 = vunpack.c.l.b16 %v1507
    %v2666 = vunpack.c.h.b16 %v1507
    %v2667 = vunpack.c.l.b16 %v1508
    %v2668 = vunpack.c.h.b16 %v1508
    %v2669 = vunpack.c.l.b16 %v1509
    %v2670 = vunpack.c.h.b16 %v1509
    %v2671 = vunpack.c.l.b16 %v1510
    %v2672 = vunpack.c.h.b16 %v1510
    %v2673 = vunpack.c.l.b16 %v1511
    %v2674 = vunpack.c.h.b16 %v1511
    %v2675 = vunpack.c.l.b16 %v1512
    %v2676 = vunpack.c.h.b16 %v1512
    %v2677 = vunpack.c.l.b16 %v1513
    %v2678 = vunpack.c.h.b16 %v1513
    %v2679 = vunpack.c.l.b16 %v1514
    %v2680 = vunpack.c.h.b16 %v1514
    %v2681 = vunpack.c.l.b16 %v1515
    %v2682 = vunpack.c.h.b16 %v1515
    %v2683 = vunpack.c.l.b16 %v1516
    %v2684 = vunpack.c.h.b16 %v1516
    %v2685 = vunpack.c.l.b16 %v1517
    %v2686 = vunpack.c.h.b16 %v1517
    %v2687 = vunpack.c.l.b16 %v1518
    %v2688 = vunpack.c.h.b16 %v1518
    %v2689 = vunpack.c.l.b16 %v1519
    %v2690 = vunpack.c.h.b16 %v1519
    %v2691 = vunpack.c.l.b16 %v1520
    %v2692 = vunpack.c.h.b16 %v1520
    %v2693 = vunpack.c.l.b16 %v1521
    %v2694 = vunpack.c.h.b16 %v1521
    %v2695 = vunpack.c.l.b16 %v1522
    %v2696 = vunpack.c.h.b16 %v1522
    %v2697 = vunpack.c.l.b16 %v1523
    %v2698 = vunpack.c.h.b16 %v1523
    %v2699 = vunpack.c.l.b16 %v1524
    %v2700 = vunpack.c.h.b16 %v1524
    %v2701 = vunpack.c.l.b16 %v1525
    %v2702 = vunpack.c.h.b16 %v1525
    %v2703 = vunpack.c.l.b16 %v1526
    %v2704 = vunpack.c.h.b16 %v1526
    %v2705 = vunpack.c.l.b16 %v1527
    %v2706 = vunpack.c.h.b16 %v1527
    %v2707 = vunpack.c.l.b16 %v1528
    %v2708 = vunpack.c.h.b16 %v1528
    %v2709 = vunpack.c.l.b16 %v1529
    %v2710 = vunpack.c.h.b16 %v1529
    %v2711 = vunpack.c.l.b16 %v1530
    %v2712 = vunpack.c.h.b16 %v1530
    %v2713 = vunpack.c.l.b16 %v1531
    %v2714 = vunpack.c.h.b16 %v1531
    %v2715 = vunpack.c.l.b16 %v1532
    %v2716 = vunpack.c.h.b16 %v1532
    %v2717 = vunpack.c.l.b16 %v1533
    %v2718 = vunpack.c.h.b16 %v1533
    %v2719 = vunpack.c.l.b16 %v1534
    %v2720 = vunpack.c.h.b16 %v1534
    %v2721 = vunpack.c.l.b16 %v1535
    %v2722 = vunpack.c.h.b16 %v1535
    %v2723 = vunpack.c.l.b16 %v1536
    %v2724 = vunpack.c.h.b16 %v1536
    %v2725 = vunpack.c.l.b16 %v1537
    %v2726 = vunpack.c.h.b16 %v1537
    %v2727 = vunpack.c.l.b16 %v1538
    %v2728 = vunpack.c.h.b16 %v1538
    %v2729 = vunpack.c.l.b16 %v1539
    %v2730 = vunpack.c.h.b16 %v1539
    %v2731 = vunpack.c.l.b16 %v1540
    %v2732 = vunpack.c.h.b16 %v1540
    %v2733 = vunpack.c.l.b16 %v1541
    %v2734 = vunpack.c.h.b16 %v1541
    %v2735 = vunpack.c.l.b16 %v1542
    %v2736 = vunpack.c.h.b16 %v1542
    %v2737 = vunpack.c.l.b16 %v1543
    %v2738 = vunpack.c.h.b16 %v1543
    %v2739 = vunpack.c.l.b16 %v1544
    %v2740 = vunpack.c.h.b16 %v1544
    %v2741 = vunpack.c.l.b16 %v1545
    %v2742 = vunpack.c.h.b16 %v1545
    %v2743 = vunpack.c.l.b16 %v1546
    %v2744 = vunpack.c.h.b16 %v1546
    %v2745 = vunpack.c.l.b16 %v1547
    %v2746 = vunpack.c.h.b16 %v1547
    %v2747 = vunpack.c.l.b16 %v1548
    %v2748 = vunpack.c.h.b16 %v1548
    %v2749 = vunpack.c.l.b16 %v1549
    %v2750 = vunpack.c.h.b16 %v1549
    %v2751 = vunpack.c.l.b16 %v1550
    %v2752 = vunpack.c.h.b16 %v1550
    %v2753 = vunpack.c.l.b16 %v1551
    %v2754 = vunpack.c.h.b16 %v1551
    %v2755 = vunpack.c.l.b16 %v1552
    %v2756 = vunpack.c.h.b16 %v1552
    %v2757 = vunpack.c.l.b16 %v1553
    %v2758 = vunpack.c.h.b16 %v1553
    %v2759 = vunpack.c.l.b16 %v1554
    %v2760 = vunpack.c.h.b16 %v1554
    %v2761 = vunpack.c.l.b16 %v1555
    %v2762 = vunpack.c.h.b16 %v1555
    %v2763 = vunpack.c.l.b16 %v1556
    %v2764 = vunpack.c.h.b16 %v1556
    %v2765 = vunpack.c.l.b16 %v1557
    %v2766 = vunpack.c.h.b16 %v1557
    %v2767 = vunpack.c.l.b16 %v1558
    %v2768 = vunpack.c.h.b16 %v1558
    %v2769 = vunpack.c.l.b16 %v1559
    %v2770 = vunpack.c.h.b16 %v1559
    %v2771 = vunpack.c.l.b16 %v1560
    %v2772 = vunpack.c.h.b16 %v1560
    %v2773 = vunpack.c.l.b16 %v1561
    %v2774 = vunpack.c.h.b16 %v1561
    %v2775 = vunpack.c.l.b16 %v1562
    %v2776 = vunpack.c.h.b16 %v1562
    %v2777 = vunpack.c.l.b16 %v1563
    %v2778 = vunpack.c.h.b16 %v1563
    %v2779 = vunpack.c.l.b16 %v1564
    %v2780 = vunpack.c.h.b16 %v1564
    %v2781 = vunpack.c.l.b16 %v1565
    %v2782 = vunpack.c.h.b16 %v1565
    %v2783 = vunpack.c.l.b16 %v1566
    %v2784 = vunpack.c.h.b16 %v1566
    %v2785 = vunpack.c.l.b16 %v1567
    %v2786 = vunpack.c.h.b16 %v1567
    %v2787 = vunpack.c.l.b16 %v1568
    %v2788 = vunpack.c.h.b16 %v1568
    %v2789 = vunpack.c.l.b16 %v1569
    %v2790 = vunpack.c.h.b16 %v1569
    %v2791 = vunpack.c.l.b16 %v1570
    %v2792 = vunpack.c.h.b16 %v1570
    %v2793 = vunpack.c.l.b16 %v1571
    %v2794 = vunpack.c.h.b16 %v1571
    %v2795 = vunpack.c.l.b16 %v1572
    %v2796 = vunpack.c.h.b16 %v1572
    %v2797 = vunpack.c.l.b16 %v1573
    %v2798 = vunpack.c.h.b16 %v1573
    %v2799 = vunpack.c.l.b16 %v1574
    %v2800 = vunpack.c.h.b16 %v1574
    %v2801 = vunpack.c.l.b16 %v1575
    %v2802 = vunpack.c.h.b16 %v1575
    %v2803 = vunpack.c.l.b16 %v1576
    %v2804 = vunpack.c.h.b16 %v1576
    %v2805 = vunpack.c.l.b16 %v1577
    %v2806 = vunpack.c.h.b16 %v1577
    %v2807 = vunpack.c.l.b16 %v1578
    %v2808 = vunpack.c.h.b16 %v1578
    %v2809 = vunpack.c.l.b16 %v1579
    %v2810 = vunpack.c.h.b16 %v1579
    %v2811 = vunpack.c.l.b16 %v1580
    %v2812 = vunpack.c.h.b16 %v1580
    %v2813 = vunpack.c.l.b16 %v1581
    %v2814 = vunpack.c.h.b16 %v1581
    %v2815 = vunpack.c.l.b16 %v1582
    %v2816 = vunpack.c.h.b16 %v1582
    %v2817 = vunpack.c.l.b16 %v1583
    %v2818 = vunpack.c.h.b16 %v1583
    %v2819 = vunpack.c.l.b16 %v1584
    %v2820 = vunpack.c.h.b16 %v1584
    %v2821 = vunpack.c.l.b16 %v1585
    %v2822 = vunpack.c.h.b16 %v1585
    %v2823 = vunpack.c.l.b16 %v1586
    %v2824 = vunpack.c.h.b16 %v1586
    %v2825 = vunpack.c.l.b16 %v1587
    %v2826 = vunpack.c.h.b16 %v1587
    %v2827 = vunpack.c.l.b16 %v1588
    %v2828 = vunpack.c.h.b16 %v1588
    %v2829 = vunpack.c.l.b16 %v1589
    %v2830 = vunpack.c.h.b16 %v1589
    %v2831 = vunpack.c.l.b16 %v1590
    %v2832 = vunpack.c.h.b16 %v1590
    %v2833 = vunpack.c.l.b16 %v1591
    %v2834 = vunpack.c.h.b16 %v1591
    %v2835 = vunpack.c.l.b16 %v1592
    %v2836 = vunpack.c.h.b16 %v1592
    %v2837 = vunpack.c.l.b16 %v1593
    %v2838 = vunpack.c.h.b16 %v1593
    %v2839 = vunpack.c.l.b16 %v1594
    %v2840 = vunpack.c.h.b16 %v1594
    %v2841 = vunpack.c.l.b16 %v1595
    %v2842 = vunpack.c.h.b16 %v1595
    %v2843 = vunpack.c.l.b16 %v1596
    %v2844 = vunpack.c.h.b16 %v1596
    %v2845 = vunpack.c.l.b16 %v1597
    %v2846 = vunpack.c.h.b16 %v1597
    %v2847 = vunpack.c.l.b16 %v1598
    %v2848 = vunpack.c.h.b16 %v1598
    %v2849 = vunpack.c.l.b16 %v1599
    %v2850 = vunpack.c.h.b16 %v1599
    %v2851 = vunpack.c.l.b16 %v1600
    %v2852 = vunpack.c.h.b16 %v1600
    %v2853 = vunpack.c.l.b16 %v1601
    %v2854 = vunpack.c.h.b16 %v1601
    %v2855 = vunpack.c.l.b16 %v1602
    %v2856 = vunpack.c.h.b16 %v1602
    %v2857 = vunpack.c.l.b16 %v1603
    %v2858 = vunpack.c.h.b16 %v1603
    %v2859 = vunpack.c.l.b16 %v1604
    %v2860 = vunpack.c.h.b16 %v1604
    %v2861 = vunpack.c.l.b16 %v1605
    %v2862 = vunpack.c.h.b16 %v1605
    %v2863 = vunpack.c.l.b16 %v1606
    %v2864 = vunpack.c.h.b16 %v1606
    %v2865 = vunpack.c.l.b16 %v1607
    %v2866 = vunpack.c.h.b16 %v1607
    %v2867 = vunpack.c.l.b16 %v1608
    %v2868 = vunpack.c.h.b16 %v1608
    %v2869 = vunpack.c.l.b16 %v1609
    %v2870 = vunpack.c.h.b16 %v1609
    %v2871 = vunpack.c.l.b16 %v1610
    %v2872 = vunpack.c.h.b16 %v1610
    %v2873 = vunpack.c.l.b16 %v1611
    %v2874 = vunpack.c.h.b16 %v1611
    %v2875 = vunpack.c.l.b16 %v1612
    %v2876 = vunpack.c.h.b16 %v1612
    %v2877 = vunpack.c.l.b16 %v1613
    %v2878 = vunpack.c.h.b16 %v1613
    %v2879 = vunpack.c.l.b16 %v1614
    %v2880 = vunpack.c.h.b16 %v1614
    %v2881 = vunpack.c.l.b16 %v1615
    %v2882 = vunpack.c.h.b16 %v1615
    %v2883 = vunpack.c.l.b16 %v1616
    %v2884 = vunpack.c.h.b16 %v1616
    %v2885 = vunpack.c.l.b16 %v1617
    %v2886 = vunpack.c.h.b16 %v1617
    %v2887 = vunpack.c.l.b16 %v1618
    %v2888 = vunpack.c.h.b16 %v1618
    %v2889 = vunpack.c.l.b16 %v1619
    %v2890 = vunpack.c.h.b16 %v1619
    %v2891 = vunpack.c.l.b16 %v1620
    %v2892 = vunpack.c.h.b16 %v1620
    %v2893 = vunpack.c.l.b16 %v1621
    %v2894 = vunpack.c.h.b16 %v1621
    %v2895 = vunpack.c.l.b16 %v1622
    %v2896 = vunpack.c.h.b16 %v1622
    %v2897 = vunpack.c.l.b16 %v1623
    %v2898 = vunpack.c.h.b16 %v1623
    %v2899 = vunpack.c.l.b16 %v1624
    %v2900 = vunpack.c.h.b16 %v1624
    %v2901 = vunpack.c.l.b16 %v1625
    %v2902 = vunpack.c.h.b16 %v1625
    %v2903 = vunpack.c.l.b16 %v1626
    %v2904 = vunpack.c.h.b16 %v1626
    %v2905 = vunpack.c.l.b16 %v1627
    %v2906 = vunpack.c.h.b16 %v1627
    %v2907 = vunpack.c.l.b16 %v1628
    %v2908 = vunpack.c.h.b16 %v1628
    %v2909 = vunpack.c.l.b16 %v1629
    %v2910 = vunpack.c.h.b16 %v1629
    %v2911 = vunpack.c.l.b16 %v1630
    %v2912 = vunpack.c.h.b16 %v1630
    %v2913 = vunpack.c.l.b16 %v1631
    %v2914 = vunpack.c.h.b16 %v1631
    %v2915 = vunpack.c.l.b16 %v1632
    %v2916 = vunpack.c.h.b16 %v1632
    %v2917 = vunpack.c.l.b16 %v1633
    %v2918 = vunpack.c.h.b16 %v1633
    %v2919 = vunpack.c.l.b16 %v1634
    %v2920 = vunpack.c.h.b16 %v1634
    %v2921 = vunpack.c.l.b16 %v1635
    %v2922 = vunpack.c.h.b16 %v1635
    %v2923 = vunpack.c.l.b16 %v1636
    %v2924 = vunpack.c.h.b16 %v1636
    %v2925 = vunpack.c.l.b16 %v1637
    %v2926 = vunpack.c.h.b16 %v1637
    %v2927 = vunpack.c.l.b16 %v1638
    %v2928 = vunpack.c.h.b16 %v1638
    %v2929 = vunpack.c.l.b16 %v1639
    %v2930 = vunpack.c.h.b16 %v1639
    %v2931 = vunpack.c.l.b16 %v1640
    %v2932 = vunpack.c.h.b16 %v1640
    %v2933 = vunpack.c.l.b16 %v1641
    %v2934 = vunpack.c.h.b16 %v1641
    %v2935 = vunpack.c.l.b16 %v1642
    %v2936 = vunpack.c.h.b16 %v1642
    %v2937 = vunpack.c.l.b16 %v1643
    %v2938 = vunpack.c.h.b16 %v1643
    %v2939 = vunpack.c.l.b16 %v1644
    %v2940 = vunpack.c.h.b16 %v1644
    %v2941 = vunpack.c.l.b16 %v1645
    %v2942 = vunpack.c.h.b16 %v1645
    %v2943 = vunpack.c.l.b16 %v1646
    %v2944 = vunpack.c.h.b16 %v1646
    %v2945 = vunpack.c.l.b16 %v1647
    %v2946 = vunpack.c.h.b16 %v1647
    %v2947 = vunpack.c.l.b16 %v1648
    %v2948 = vunpack.c.h.b16 %v1648
    %v2949 = vunpack.c.l.b16 %v1649
    %v2950 = vunpack.c.h.b16 %v1649
    %v2951 = vunpack.c.l.b16 %v1650
    %v2952 = vunpack.c.h.b16 %v1650
    %v2953 = vunpack.c.l.b16 %v1651
    %v2954 = vunpack.c.h.b16 %v1651
    %v2955 = vunpack.c.l.b16 %v1652
    %v2956 = vunpack.c.h.b16 %v1652
    %v2957 = vunpack.c.l.b16 %v1653
    %v2958 = vunpack.c.h.b16 %v1653
    %v2959 = vunpack.c.l.b16 %v1654
    %v2960 = vunpack.c.h.b16 %v1654
    %v2961 = vunpack.c.l.b16 %v1655
    %v2962 = vunpack.c.h.b16 %v1655
    %v2963 = vunpack.c.l.b16 %v1656
    %v2964 = vunpack.c.h.b16 %v1656
    %v2965 = vunpack.c.l.b16 %v1657
    %v2966 = vunpack.c.h.b16 %v1657
    %v2967 = vunpack.c.l.b16 %v1658
    %v2968 = vunpack.c.h.b16 %v1658
    %v2969 = vunpack.c.l.b16 %v1659
    %v2970 = vunpack.c.h.b16 %v1659
    %v2971 = vunpack.c.l.b16 %v1660
    %v2972 = vunpack.c.h.b16 %v1660
    %v2973 = vunpack.c.l.b16 %v1661
    %v2974 = vunpack.c.h.b16 %v1661
    %v2975 = vunpack.c.l.b16 %v1662
    %v2976 = vunpack.c.h.b16 %v1662
    %v2977 = vunpack.c.l.b16 %v1663
    %v2978 = vunpack.c.h.b16 %v1663
    %v2979 = vunpack.c.l.b16 %v1664
    %v2980 = vunpack.c.h.b16 %v1664
    %v2981 = vunpack.c.l.b16 %v1665
    %v2982 = vunpack.c.h.b16 %v1665
    %v2983 = vunpack.c.l.b16 %v1666
    %v2984 = vunpack.c.h.b16 %v1666
    %v2985 = vunpack.c.l.b16 %v1667
    %v2986 = vunpack.c.h.b16 %v1667
    %v2987 = vunpack.c.l.b16 %v1668
    %v2988 = vunpack.c.h.b16 %v1668
    %v2989 = vunpack.c.l.b16 %v1669
    %v2990 = vunpack.c.h.b16 %v1669
    %v2991 = vunpack.c.l.b16 %v1670
    %v2992 = vunpack.c.h.b16 %v1670
    %v2993 = vunpack.c.l.b16 %v1671
    %v2994 = vunpack.c.h.b16 %v1671
    %v2995 = vunpack.c.l.b16 %v1672
    %v2996 = vunpack.c.h.b16 %v1672
    %v2997 = vunpack.c.l.b16 %v1673
    %v2998 = vunpack.c.h.b16 %v1673
    %v2999 = vunpack.c.l.b16 %v1674
    %v3000 = vunpack.c.h.b16 %v1674
    %v3001 = vunpack.c.l.b16 %v1675
    %v3002 = vunpack.c.h.b16 %v1675
    %v3003 = vunpack.c.l.b16 %v1676
    %v3004 = vunpack.c.h.b16 %v1676
    %v3005 = vunpack.c.l.b16 %v1677
    %v3006 = vunpack.c.h.b16 %v1677
    %v3007 = vunpack.c.l.b16 %v1678
    %v3008 = vunpack.c.h.b16 %v1678
    %v3009 = vunpack.c.l.b16 %v1679
    %v3010 = vunpack.c.h.b16 %v1679
    %v3011 = vunpack.c.l.b16 %v1680
    %v3012 = vunpack.c.h.b16 %v1680
    %v3013 = vunpack.c.l.b16 %v1681
    %v3014 = vunpack.c.h.b16 %v1681
    %v3015 = vunpack.c.l.b16 %v1682
    %v3016 = vunpack.c.h.b16 %v1682
    %v3017 = vunpack.c.l.b16 %v1683
    %v3018 = vunpack.c.h.b16 %v1683
    %v3019 = vunpack.c.l.b16 %v1684
    %v3020 = vunpack.c.h.b16 %v1684
    %v3021 = vunpack.c.l.b16 %v1685
    %v3022 = vunpack.c.h.b16 %v1685
    %v3023 = vunpack.c.l.b16 %v1686
    %v3024 = vunpack.c.h.b16 %v1686
    %v3025 = vunpack.c.l.b16 %v1687
    %v3026 = vunpack.c.h.b16 %v1687
    %v3027 = vunpack.c.l.b16 %v1688
    %v3028 = vunpack.c.h.b16 %v1688
    %v3029 = vunpack.c.l.b16 %v1689
    %v3030 = vunpack.c.h.b16 %v1689
    %v3031 = vunpack.c.l.b16 %v1690
    %v3032 = vunpack.c.h.b16 %v1690
    %v3033 = vunpack.c.l.b16 %v1691
    %v3034 = vunpack.c.h.b16 %v1691
    %v3035 = vunpack.c.l.b16 %v1692
    %v3036 = vunpack.c.h.b16 %v1692
    %v3037 = vunpack.c.l.b16 %v1693
    %v3038 = vunpack.c.h.b16 %v1693
    %v3039 = vunpack.c.l.b16 %v1694
    %v3040 = vunpack.c.h.b16 %v1694
    %v3041 = vunpack.c.l.b16 %v1695
    %v3042 = vunpack.c.h.b16 %v1695
    %v3043 = vunpack.c.l.b16 %v1696
    %v3044 = vunpack.c.h.b16 %v1696
    %v3045 = vunpack.c.l.b16 %v1697
    %v3046 = vunpack.c.h.b16 %v1697
    %v3047 = vunpack.c.l.b16 %v1698
    %v3048 = vunpack.c.h.b16 %v1698
    %v3049 = vunpack.c.l.b16 %v1699
    %v3050 = vunpack.c.h.b16 %v1699
    %v3051 = vunpack.c.l.b16 %v1700
    %v3052 = vunpack.c.h.b16 %v1700
    %v3053 = vunpack.c.l.b16 %v1701
    %v3054 = vunpack.c.h.b16 %v1701
    %v3055 = vunpack.c.l.b16 %v1702
    %v3056 = vunpack.c.h.b16 %v1702
    %v3057 = vunpack.c.l.b16 %v1703
    %v3058 = vunpack.c.h.b16 %v1703
    %v3059 = vunpack.c.l.b16 %v1704
    %v3060 = vunpack.c.h.b16 %v1704
    %v3061 = vunpack.c.l.b16 %v1705
    %v3062 = vunpack.c.h.b16 %v1705
    %v3063 = vunpack.c.l.b16 %v1706
    %v3064 = vunpack.c.h.b16 %v1706
    %v3065 = vunpack.c.l.b16 %v1707
    %v3066 = vunpack.c.h.b16 %v1707
    %v3067 = vunpack.c.l.b16 %v1708
    %v3068 = vunpack.c.h.b16 %v1708
    %v3069 = vunpack.c.l.b16 %v1709
    %v3070 = vunpack.c.h.b16 %v1709
    %v3071 = vunpack.c.l.b16 %v1710
    %v3072 = vunpack.c.h.b16 %v1710
    %v3073 = vunpack.c.l.b16 %v1711
    %v3074 = vunpack.c.h.b16 %v1711
    %v3075 = vunpack.c.l.b16 %v1712
    %v3076 = vunpack.c.h.b16 %v1712
    %v3077 = vunpack.c.l.b16 %v1713
    %v3078 = vunpack.c.h.b16 %v1713
    %v3079 = vunpack.c.l.b16 %v1714
    %v3080 = vunpack.c.h.b16 %v1714
    %v3081 = vunpack.c.l.b16 %v1715
    %v3082 = vunpack.c.h.b16 %v1715
    %v3083 = vunpack.c.l.b16 %v1716
    %v3084 = vunpack.c.h.b16 %v1716
    %v3085 = vunpack.c.l.b16 %v1717
    %v3086 = vunpack.c.h.b16 %v1717
    %v3087 = vunpack.c.l.b16 %v1718
    %v3088 = vunpack.c.h.b16 %v1718
    %v3089 = vunpack.c.l.b16 %v1719
    %v3090 = vunpack.c.h.b16 %v1719
    %v3091 = vunpack.c.l.b16 %v1720
    %v3092 = vunpack.c.h.b16 %v1720
    %v3093 = vunpack.c.l.b16 %v1721
    %v3094 = vunpack.c.h.b16 %v1721
    %v3095 = vunpack.c.l.b16 %v1722
    %v3096 = vunpack.c.h.b16 %v1722
    %v3097 = vunpack.c.l.b16 %v1723
    %v3098 = vunpack.c.h.b16 %v1723
    %v3099 = vunpack.c.l.b16 %v1724
    %v3100 = vunpack.c.h.b16 %v1724
    %v3101 = vunpack.c.l.b16 %v1725
    %v3102 = vunpack.c.h.b16 %v1725
    %v3103 = vunpack.c.l.b16 %v1726
    %v3104 = vunpack.c.h.b16 %v1726
    %v3105 = vunpack.c.l.b16 %v1727
    %v3106 = vunpack.c.h.b16 %v1727
    %v3107 = vunpack.c.l.b16 %v1728
    %v3108 = vunpack.c.h.b16 %v1728
    %v3109 = vunpack.c.l.b16 %v1729
    %v3110 = vunpack.c.h.b16 %v1729
    %v3111 = vunpack.c.l.b16 %v1730
    %v3112 = vunpack.c.h.b16 %v1730
    %v3113 = vunpack.c.l.b16 %v1731
    %v3114 = vunpack.c.h.b16 %v1731
    %v3115 = vunpack.c.l.b16 %v1732
    %v3116 = vunpack.c.h.b16 %v1732
    %v3117 = vunpack.c.l.b16 %v1733
    %v3118 = vunpack.c.h.b16 %v1733
    %v3119 = vunpack.c.l.b16 %v1734
    %v3120 = vunpack.c.h.b16 %v1734
    %v3121 = vunpack.c.l.b16 %v1735
    %v3122 = vunpack.c.h.b16 %v1735
    %v3123 = vunpack.c.l.b16 %v1736
    %v3124 = vunpack.c.h.b16 %v1736
    %v3125 = vunpack.c.l.b16 %v1737
    %v3126 = vunpack.c.h.b16 %v1737
    %v3127 = vunpack.c.l.b16 %v1738
    %v3128 = vunpack.c.h.b16 %v1738
    %v3129 = vunpack.c.l.b16 %v1739
    %v3130 = vunpack.c.h.b16 %v1739
    %v3131 = vunpack.c.l.b16 %v1740
    %v3132 = vunpack.c.h.b16 %v1740
    %v3133 = vunpack.c.l.b16 %v1741
    %v3134 = vunpack.c.h.b16 %v1741
    %v3135 = vunpack.c.l.b16 %v1742
    %v3136 = vunpack.c.h.b16 %v1742
    %v3137 = vunpack.c.l.b16 %v1743
    %v3138 = vunpack.c.h.b16 %v1743
    %v3139 = vunpack.c.l.b16 %v1744
    %v3140 = vunpack.c.h.b16 %v1744
    %v3141 = vunpack.c.l.b16 %v1745
    %v3142 = vunpack.c.h.b16 %v1745
    %v3143 = vunpack.c.l.b16 %v1746
    %v3144 = vunpack.c.h.b16 %v1746
    %v3145 = vunpack.c.l.b16 %v1747
    %v3146 = vunpack.c.h.b16 %v1747
    %v3147 = vunpack.c.l.b16 %v1748
    %v3148 = vunpack.c.h.b16 %v1748
    %v3149 = vunpack.c.l.b16 %v1749
    %v3150 = vunpack.c.h.b16 %v1749
    %v3151 = vunpack.c.l.b16 %v1750
    %v3152 = vunpack.c.h.b16 %v1750
    %v3153 = vunpack.c.l.b16 %v1751
    %v3154 = vunpack.c.h.b16 %v1751
    %v3155 = vunpack.c.l.b16 %v1752
    %v3156 = vunpack.c.h.b16 %v1752
    %v3157 = vunpack.c.l.b16 %v1753
    %v3158 = vunpack.c.h.b16 %v1753
    %v3159 = vunpack.c.l.b16 %v1754
    %v3160 = vunpack.c.h.b16 %v1754
    %v3161 = vunpack.c.l.b16 %v1755
    %v3162 = vunpack.c.h.b16 %v1755
    %v3163 = vunpack.c.l.b16 %v1756
    %v3164 = vunpack.c.h.b16 %v1756
    %v3165 = vunpack.c.l.b16 %v1757
    %v3166 = vunpack.c.h.b16 %v1757
    %v3167 = vunpack.c.l.b16 %v1758
    %v3168 = vunpack.c.h.b16 %v1758
    %v3169 = vunpack.c.l.b16 %v1759
    %v3170 = vunpack.c.h.b16 %v1759
    %v3171 = vunpack.c.l.b16 %v1760
    %v3172 = vunpack.c.h.b16 %v1760
    %v3173 = vunpack.c.l.b16 %v1761
    %v3174 = vunpack.c.h.b16 %v1761
    %v3175 = vunpack.c.l.b16 %v1762
    %v3176 = vunpack.c.h.b16 %v1762
    %v3177 = vunpack.c.l.b16 %v1763
    %v3178 = vunpack.c.h.b16 %v1763
    %v3179 = vunpack.c.l.b16 %v1764
    %v3180 = vunpack.c.h.b16 %v1764
    %v3181 = vunpack.c.l.b16 %v1765
    %v3182 = vunpack.c.h.b16 %v1765
    %v3183 = vunpack.c.l.b16 %v1766
    %v3184 = vunpack.c.h.b16 %v1766
    %v3185 = vunpack.c.l.b16 %v1767
    %v3186 = vunpack.c.h.b16 %v1767
    %v3187 = vunpack.c.l.b16 %v1768
    %v3188 = vunpack.c.h.b16 %v1768
    %v3189 = vunpack.c.l.b16 %v1769
    %v3190 = vunpack.c.h.b16 %v1769
    %v3191 = vunpack.c.l.b16 %v1770
    %v3192 = vunpack.c.h.b16 %v1770
    %v3193 = vunpack.c.l.b16 %v1771
    %v3194 = vunpack.c.h.b16 %v1771
    %v3195 = vunpack.c.l.b16 %v1772
    %v3196 = vunpack.c.h.b16 %v1772
    %v3197 = vunpack.c.l.b16 %v1773
    %v3198 = vunpack.c.h.b16 %v1773
    %v3199 = vunpack.c.l.b16 %v1774
    %v3200 = vunpack.c.h.b16 %v1774
    %v3201 = vunpack.c.l.b16 %v1775
    %v3202 = vunpack.c.h.b16 %v1775
    %v3203 = vunpack.c.l.b16 %v1776
    %v3204 = vunpack.c.h.b16 %v1776
    %v3205 = vunpack.c.l.b16 %v1777
    %v3206 = vunpack.c.h.b16 %v1777
    %v3207 = vunpack.c.l.b16 %v1778
    %v3208 = vunpack.c.h.b16 %v1778
    %v3209 = vunpack.c.l.b16 %v1779
    %v3210 = vunpack.c.h.b16 %v1779
    %v3211 = vunpack.c.l.b16 %v1780
    %v3212 = vunpack.c.h.b16 %v1780
    %v3213 = vunpack.c.l.b16 %v1781
    %v3214 = vunpack.c.h.b16 %v1781
    %v3215 = vunpack.c.l.b16 %v1782
    %v3216 = vunpack.c.h.b16 %v1782
    %v3217 = vunpack.c.l.b16 %v1783
    %v3218 = vunpack.c.h.b16 %v1783
    %v3219 = vunpack.c.l.b16 %v1784
    %v3220 = vunpack.c.h.b16 %v1784
    %v3221 = vunpack.c.l.b16 %v1785
    %v3222 = vunpack.c.h.b16 %v1785
    %v3223 = vunpack.c.l.b16 %v1786
    %v3224 = vunpack.c.h.b16 %v1786
    %v3225 = vunpack.c.l.b16 %v1787
    %v3226 = vunpack.c.h.b16 %v1787
    %v3227 = vunpack.c.l.b16 %v1788
    %v3228 = vunpack.c.h.b16 %v1788
    %v3229 = vunpack.c.l.b16 %v1789
    %v3230 = vunpack.c.h.b16 %v1789
    %v3231 = vunpack.c.l.b16 %v1790
    %v3232 = vunpack.c.h.b16 %v1790
    %v3233 = vunpack.c.l.b16 %v1791
    %v3234 = vunpack.c.h.b16 %v1791
    %v3235 = vunpack.c.l.b16 %v1792
    %v3236 = vunpack.c.h.b16 %v1792
    %v3237 = vunpack.c.l.b16 %v1793
    %v3238 = vunpack.c.h.b16 %v1793
    %v3239 = vunpack.c.l.b16 %v1794
    %v3240 = vunpack.c.h.b16 %v1794
    %v3241 = vunpack.c.l.b16 %v1795
    %v3242 = vunpack.c.h.b16 %v1795
    %v3243 = vunpack.c.l.b16 %v1796
    %v3244 = vunpack.c.h.b16 %v1796
    %v3245 = vunpack.c.l.b16 %v1797
    %v3246 = vunpack.c.h.b16 %v1797
    %v3247 = vunpack.c.l.b16 %v1798
    %v3248 = vunpack.c.h.b16 %v1798
    %v3249 = vunpack.c.l.b16 %v1799
    %v3250 = vunpack.c.h.b16 %v1799
    %v3251 = vunpack.c.l.b16 %v1800
    %v3252 = vunpack.c.h.b16 %v1800
    %v3253 = vunpack.c.l.b16 %v1801
    %v3254 = vunpack.c.h.b16 %v1801
    %v3255 = vunpack.c.l.b16 %v1802
    %v3256 = vunpack.c.h.b16 %v1802
    %v3257 = vunpack.c.l.b16 %v1803
    %v3258 = vunpack.c.h.b16 %v1803
    %v3259 = vunpack.c.l.b16 %v1804
    %v3260 = vunpack.c.h.b16 %v1804
    %v3261 = vunpack.c.l.b16 %v1805
    %v3262 = vunpack.c.h.b16 %v1805
    %v3263 = vunpack.c.l.b16 %v1806
    %v3264 = vunpack.c.h.b16 %v1806
    %v3265 = vunpack.c.l.b16 %v1807
    %v3266 = vunpack.c.h.b16 %v1807
    %v3267 = vunpack.c.l.b16 %v1808
    %v3268 = vunpack.c.h.b16 %v1808
    %v3269 = vunpack.c.l.b16 %v1809
    %v3270 = vunpack.c.h.b16 %v1809
    %v3271 = vunpack.c.l.b16 %v1810
    %v3272 = vunpack.c.h.b16 %v1810
    %v3273 = vunpack.c.l.b16 %v1811
    %v3274 = vunpack.c.h.b16 %v1811
    %v3275 = vunpack.c.l.b16 %v1812
    %v3276 = vunpack.c.h.b16 %v1812
    %v3277 = vunpack.c.l.b16 %v1813
    %v3278 = vunpack.c.h.b16 %v1813
    %v3279 = vunpack.c.l.b16 %v1814
    %v3280 = vunpack.c.h.b16 %v1814
    %v3281 = vunpack.c.l.b16 %v1815
    %v3282 = vunpack.c.h.b16 %v1815
    %v3283 = vunpack.c.l.b16 %v1816
    %v3284 = vunpack.c.h.b16 %v1816
    %v3285 = vunpack.c.l.b16 %v1817
    %v3286 = vunpack.c.h.b16 %v1817
    %v3287 = vunpack.c.l.b16 %v1818
    %v3288 = vunpack.c.h.b16 %v1818
    %v3289 = vunpack.c.l.b16 %v1819
    %v3290 = vunpack.c.h.b16 %v1819
    %v3291 = vunpack.c.l.b16 %v1820
    %v3292 = vunpack.c.h.b16 %v1820
    %v3293 = vunpack.c.l.b16 %v1821
    %v3294 = vunpack.c.h.b16 %v1821
    %v3295 = vunpack.c.l.b16 %v1822
    %v3296 = vunpack.c.h.b16 %v1822
    %v3297 = vunpack.c.l.b16 %v1823
    %v3298 = vunpack.c.h.b16 %v1823
    %v3299 = vunpack.c.l.b16 %v1824
    %v3300 = vunpack.c.h.b16 %v1824
    %v3301 = vunpack.c.l.b16 %v1825
    %v3302 = vunpack.c.h.b16 %v1825
    %v3303 = vunpack.c.l.b16 %v1826
    %v3304 = vunpack.c.h.b16 %v1826
    %v3305 = vunpack.c.l.b16 %v1827
    %v3306 = vunpack.c.h.b16 %v1827
    %v3307 = vunpack.c.l.b16 %v1828
    %v3308 = vunpack.c.h.b16 %v1828
    %v3309 = vunpack.c.l.b16 %v1829
    %v3310 = vunpack.c.h.b16 %v1829
    %v3311 = vunpack.c.l.b16 %v1830
    %v3312 = vunpack.c.h.b16 %v1830
    %v3313 = vunpack.c.l.b16 %v1831
    %v3314 = vunpack.c.h.b16 %v1831
    %v3315 = vunpack.c.l.b16 %v1832
    %v3316 = vunpack.c.h.b16 %v1832
    %v3317 = vunpack.c.l.b16 %v1833
    %v3318 = vunpack.c.h.b16 %v1833
    %v3319 = vunpack.c.l.b16 %v1834
    %v3320 = vunpack.c.h.b16 %v1834
    %v3321 = vunpack.c.l.b16 %v1835
    %v3322 = vunpack.c.h.b16 %v1835
    %v3323 = vunpack.c.l.b16 %v1836
    %v3324 = vunpack.c.h.b16 %v1836
    %v3325 = vunpack.c.l.b16 %v1837
    %v3326 = vunpack.c.h.b16 %v1837
    %v3327 = vunpack.c.l.b16 %v1838
    %v3328 = vunpack.c.h.b16 %v1838
    %v3329 = vunpack.c.l.b16 %v1839
    %v3330 = vunpack.c.h.b16 %v1839
    %v3331 = vunpack.c.l.b16 %v1840
    %v3332 = vunpack.c.h.b16 %v1840
    %v3333 = vunpack.c.l.b16 %v1841
    %v3334 = vunpack.c.h.b16 %v1841
    %v3335 = vunpack.c.l.b16 %v1842
    %v3336 = vunpack.c.h.b16 %v1842
    %v3337 = vunpack.c.l.b16 %v1843
    %v3338 = vunpack.c.h.b16 %v1843
    %v3339 = vunpack.c.l.b16 %v1844
    %v3340 = vunpack.c.h.b16 %v1844
    %v3341 = vunpack.c.l.b16 %v1845
    %v3342 = vunpack.c.h.b16 %v1845
    %v3343 = vunpack.c.l.b16 %v1846
    %v3344 = vunpack.c.h.b16 %v1846
    %v3345 = vunpack.c.l.b16 %v1847
    %v3346 = vunpack.c.h.b16 %v1847
    %v3347 = vunpack.c.l.b16 %v1848
    %v3348 = vunpack.c.h.b16 %v1848
    %v3349 = vunpack.c.l.b16 %v1849
    %v3350 = vunpack.c.h.b16 %v1849
    %v3351 = vunpack.c.l.b16 %v1850
    %v3352 = vunpack.c.h.b16 %v1850
    %v3353 = vunpack.c.l.b16 %v1851
    %v3354 = vunpack.c.h.b16 %v1851
    %v3355 = vunpack.c.l.b16 %v1852
    %v3356 = vunpack.c.h.b16 %v1852
    %v3357 = vunpack.c.l.b16 %v1853
    %v3358 = vunpack.c.h.b16 %v1853
    %v3359 = vunpack.c.l.b16 %v1854
    %v3360 = vunpack.c.h.b16 %v1854
    %v3361 = vunpack.c.l.b16 %v1855
    %v3362 = vunpack.c.h.b16 %v1855
    %v3363 = vunpack.c.l.b16 %v1856
    %v3364 = vunpack.c.h.b16 %v1856
    %v3365 = vunpack.c.l.b16 %v1857
    %v3366 = vunpack.c.h.b16 %v1857
    %v3367 = vunpack.c.l.b16 %v1858
    %v3368 = vunpack.c.h.b16 %v1858
    %v3369 = vunpack.c.l.b16 %v1859
    %v3370 = vunpack.c.h.b16 %v1859
    %v3371 = vunpack.c.l.b16 %v1860
    %v3372 = vunpack.c.h.b16 %v1860
    %v3373 = vunpack.c.l.b16 %v1861
    %v3374 = vunpack.c.h.b16 %v1861
    %v3375 = vunpack.c.l.b16 %v1862
    %v3376 = vunpack.c.h.b16 %v1862
    %v3377 = vunpack.c.l.b16 %v1863
    %v3378 = vunpack.c.h.b16 %v1863
    %v3379 = vunpack.c.l.b16 %v1864
    %v3380 = vunpack.c.h.b16 %v1864
    %v3381 = vunpack.c.l.b16 %v1865
    %v3382 = vunpack.c.h.b16 %v1865
    %v3383 = vunpack.c.l.b16 %v1866
    %v3384 = vunpack.c.h.b16 %v1866
    %v3385 = vunpack.c.l.b16 %v1867
    %v3386 = vunpack.c.h.b16 %v1867
    %v3387 = vunpack.c.l.b16 %v1868
    %v3388 = vunpack.c.h.b16 %v1868
    %v3389 = vunpack.c.l.b16 %v1869
    %v3390 = vunpack.c.h.b16 %v1869
    %v3391 = vunpack.c.l.b16 %v1870
    %v3392 = vunpack.c.h.b16 %v1870
    %v3393 = vunpack.c.l.b16 %v1871
    %v3394 = vunpack.c.h.b16 %v1871
    %v3395 = vunpack.c.l.b16 %v1872
    %v3396 = vunpack.c.h.b16 %v1872
    %v3397 = vunpack.c.l.b16 %v1873
    %v3398 = vunpack.c.h.b16 %v1873
    %v3399 = vunpack.c.l.b16 %v1874
    %v3400 = vunpack.c.h.b16 %v1874
    %v3401 = vunpack.c.l.b16 %v1875
    %v3402 = vunpack.c.h.b16 %v1875
    %v3403 = vunpack.c.l.b16 %v1876
    %v3404 = vunpack.c.h.b16 %v1876
    %v3405 = vunpack.c.l.b16 %v1877
    %v3406 = vunpack.c.h.b16 %v1877
    %v3407 = vunpack.c.l.b16 %v1878
    %v3408 = vunpack.c.h.b16 %v1878
    %v3409 = vunpack.c.l.b16 %v1879
    %v3410 = vunpack.c.h.b16 %v1879
    %v3411 = vunpack.c.l.b16 %v1880
    %v3412 = vunpack.c.h.b16 %v1880
    %v3413 = vunpack.c.l.b16 %v1881
    %v3414 = vunpack.c.h.b16 %v1881
    %v3415 = vunpack.c.l.b16 %v1882
    %v3416 = vunpack.c.h.b16 %v1882
    %v3417 = vunpack.c.l.b16 %v1883
    %v3418 = vunpack.c.h.b16 %v1883
    %v3419 = vunpack.c.l.b16 %v1884
    %v3420 = vunpack.c.h.b16 %v1884
    %v3421 = vunpack.c.l.b16 %v1885
    %v3422 = vunpack.c.h.b16 %v1885
    %v3423 = vunpack.c.l.b16 %v1886
    %v3424 = vunpack.c.h.b16 %v1886
    %v3425 = vunpack.c.l.b16 %v1887
    %v3426 = vunpack.c.h.b16 %v1887
    %v3427 = vunpack.c.l.b16 %v1888
    %v3428 = vunpack.c.h.b16 %v1888
    %v3429 = vunpack.c.l.b16 %v1889
    %v3430 = vunpack.c.h.b16 %v1889
    %v3431 = vunpack.c.l.b16 %v1890
    %v3432 = vunpack.c.h.b16 %v1890
    %v3433 = vunpack.c.l.b16 %v1891
    %v3434 = vunpack.c.h.b16 %v1891
    %v3435 = vunpack.c.l.b16 %v1892
    %v3436 = vunpack.c.h.b16 %v1892
    %v3437 = vunpack.c.l.b16 %v1893
    %v3438 = vunpack.c.h.b16 %v1893
    %v3439 = vunpack.c.l.b16 %v1894
    %v3440 = vunpack.c.h.b16 %v1894
    %v3441 = vunpack.c.l.b16 %v1895
    %v3442 = vunpack.c.h.b16 %v1895
    %v3443 = vunpack.c.l.b16 %v1896
    %v3444 = vunpack.c.h.b16 %v1896
    %v3445 = vunpack.c.l.b16 %v1897
    %v3446 = vunpack.c.h.b16 %v1897
    %v3447 = vunpack.c.l.b16 %v1898
    %v3448 = vunpack.c.h.b16 %v1898
    %v3449 = vunpack.c.l.b16 %v1899
    %v3450 = vunpack.c.h.b16 %v1899
    %v3451 = vunpack.c.l.b16 %v1900
    %v3452 = vunpack.c.h.b16 %v1900
    %v3453 = vunpack.c.l.b16 %v1901
    %v3454 = vunpack.c.h.b16 %v1901
    %v3455 = vunpack.c.l.b16 %v1902
    %v3456 = vunpack.c.h.b16 %v1902
    %v3457 = vunpack.c.l.b16 %v1903
    %v3458 = vunpack.c.h.b16 %v1903
    %v3459 = vunpack.c.l.b16 %v1904
    %v3460 = vunpack.c.h.b16 %v1904
    %v3461 = vunpack.c.l.b16 %v1905
    %v3462 = vunpack.c.h.b16 %v1905
    %v3463 = vunpack.c.l.b16 %v1906
    %v3464 = vunpack.c.h.b16 %v1906
    %v3465 = vpack.c.b16 %v2445, %v2441
    %v3466 = vpack.c.b16 %v2446, %v2442
    %v3467 = vpack.c.b16 %v2447, %v2443
    %v3468 = vpack.c.b16 %v2448, %v2444
    %v3469 = vpack.c.b16 %v2453, %v2449
    %v3470 = vpack.c.b16 %v2454, %v2450
    %v3471 = vpack.c.b16 %v2455, %v2451
    %v3472 = vpack.c.b16 %v2456, %v2452
    %v3473 = vpack.c.b16 %v2461, %v2457
    %v3474 = vpack.c.b16 %v2462, %v2458
    %v3475 = vpack.c.b16 %v2463, %v2459
    %v3476 = vpack.c.b16 %v2464, %v2460
    %v3477 = vpack.c.b16 %v2469, %v2465
    %v3478 = vpack.c.b16 %v2470, %v2466
    %v3479 = vpack.c.b16 %v2471, %v2467
    %v3480 = vpack.c.b16 %v2472, %v2468
    %v3481 = vpack.c.b16 %v2477, %v2473
    %v3482 = vpack.c.b16 %v2478, %v2474
    %v3483 = vpack.c.b16 %v2479, %v2475
    %v3484 = vpack.c.b16 %v2480, %v2476
    %v3485 = vpack.c.b16 %v2485, %v2481
    %v3486 = vpack.c.b16 %v2486, %v2482
    %v3487 = vpack.c.b16 %v2487, %v2483
    %v3488 = vpack.c.b16 %v2488, %v2484
    %v3489 = vpack.c.b16 %v2493, %v2489
    %v3490 = vpack.c.b16 %v2494, %v2490
    %v3491 = vpack.c.b16 %v2495, %v2491
    %v3492 = vpack.c.b16 %v2496, %v2492
    %v3493 = vpack.c.b16 %v2501, %v2497
    %v3494 = vpack.c.b16 %v2502, %v2498
    %v3495 = vpack.c.b16 %v2503, %v2499
    %v3496 = vpack.c.b16 %v2504, %v2500
    %v3497 = vpack.c.b16 %v2509, %v2505
    %v3498 = vpack.c.b16 %v2510, %v2506
    %v3499 = vpack.c.b16 %v2511, %v2507
    %v3500 = vpack.c.b16 %v2512, %v2508
    %v3501 = vpack.c.b16 %v2517, %v2513
    %v3502 = vpack.c.b16 %v2518, %v2514
    %v3503 = vpack.c.b16 %v2519, %v2515
    %v3504 = vpack.c.b16 %v2520, %v2516
    %v3505 = vpack.c.b16 %v2525, %v2521
    %v3506 = vpack.c.b16 %v2526, %v2522
    %v3507 = vpack.c.b16 %v2527, %v2523
    %v3508 = vpack.c.b16 %v2528, %v2524
    %v3509 = vpack.c.b16 %v2533, %v2529
    %v3510 = vpack.c.b16 %v2534, %v2530
    %v3511 = vpack.c.b16 %v2535, %v2531
    %v3512 = vpack.c.b16 %v2536, %v2532
    %v3513 = vpack.c.b16 %v2541, %v2537
    %v3514 = vpack.c.b16 %v2542, %v2538
    %v3515 = vpack.c.b16 %v2543, %v2539
    %v3516 = vpack.c.b16 %v2544, %v2540
    %v3517 = vpack.c.b16 %v2549, %v2545
    %v3518 = vpack.c.b16 %v2550, %v2546
    %v3519 = vpack.c.b16 %v2551, %v2547
    %v3520 = vpack.c.b16 %v2552, %v2548
    %v3521 = vpack.c.b16 %v2557, %v2553
    %v3522 = vpack.c.b16 %v2558, %v2554
    %v3523 = vpack.c.b16 %v2559, %v2555
    %v3524 = vpack.c.b16 %v2560, %v2556
    %v3525 = vpack.c.b16 %v2565, %v2561
    %v3526 = vpack.c.b16 %v2566, %v2562
    %v3527 = vpack.c.b16 %v2567, %v2563
    %v3528 = vpack.c.b16 %v2568, %v2564
    %v3529 = vpack.c.b16 %v2573, %v2569
    %v3530 = vpack.c.b16 %v2574, %v2570
    %v3531 = vpack.c.b16 %v2575, %v2571
    %v3532 = vpack.c.b16 %v2576, %v2572
    %v3533 = vpack.c.b16 %v2581, %v2577
    %v3534 = vpack.c.b16 %v2582, %v2578
    %v3535 = vpack.c.b16 %v2583, %v2579
    %v3536 = vpack.c.b16 %v2584, %v2580
    %v3537 = vpack.c.b16 %v2589, %v2585
    %v3538 = vpack.c.b16 %v2590, %v2586
    %v3539 = vpack.c.b16 %v2591, %v2587
    %v3540 = vpack.c.b16 %v2592, %v2588
    %v3541 = vpack.c.b16 %v2597, %v2593
    %v3542 = vpack.c.b16 %v2598, %v2594
    %v3543 = vpack.c.b16 %v2599, %v2595
    %v3544 = vpack.c.b16 %v2600, %v2596
    %v3545 = vpack.c.b16 %v2605, %v2601
    %v3546 = vpack.c.b16 %v2606, %v2602
    %v3547 = vpack.c.b16 %v2607, %v2603
    %v3548 = vpack.c.b16 %v2608, %v2604
    %v3549 = vpack.c.b16 %v2613, %v2609
    %v3550 = vpack.c.b16 %v2614, %v2610
    %v3551 = vpack.c.b16 %v2615, %v2611
    %v3552 = vpack.c.b16 %v2616, %v2612
    %v3553 = vpack.c.b16 %v2621, %v2617
    %v3554 = vpack.c.b16 %v2622, %v2618
    %v3555 = vpack.c.b16 %v2623, %v2619
    %v3556 = vpack.c.b16 %v2624, %v2620
    %v3557 = vpack.c.b16 %v2629, %v2625
    %v3558 = vpack.c.b16 %v2630, %v2626
    %v3559 = vpack.c.b16 %v2631, %v2627
    %v3560 = vpack.c.b16 %v2632, %v2628
    %v3561 = vpack.c.b16 %v2637, %v2633
    %v3562 = vpack.c.b16 %v2638, %v2634
    %v3563 = vpack.c.b16 %v2639, %v2635
    %v3564 = vpack.c.b16 %v2640, %v2636
    %v3565 = vpack.c.b16 %v2645, %v2641
    %v3566 = vpack.c.b16 %v2646, %v2642
    %v3567 = vpack.c.b16 %v2647, %v2643
    %v3568 = vpack.c.b16 %v2648, %v2644
    %v3569 = vpack.c.b16 %v2653, %v2649
    %v3570 = vpack.c.b16 %v2654, %v2650
    %v3571 = vpack.c.b16 %v2655, %v2651
    %v3572 = vpack.c.b16 %v2656, %v2652
    %v3573 = vpack.c.b16 %v2661, %v2657
    %v3574 = vpack.c.b16 %v2662, %v2658
    %v3575 = vpack.c.b16 %v2663, %v2659
    %v3576 = vpack.c.b16 %v2664, %v2660
    %v3577 = vpack.c.b16 %v2669, %v2665
    %v3578 = vpack.c.b16 %v2670, %v2666
    %v3579 = vpack.c.b16 %v2671, %v2667
    %v3580 = vpack.c.b16 %v2672, %v2668
    %v3581 = vpack.c.b16 %v2677, %v2673
    %v3582 = vpack.c.b16 %v2678, %v2674
    %v3583 = vpack.c.b16 %v2679, %v2675
    %v3584 = vpack.c.b16 %v2680, %v2676
    %v3585 = vpack.c.b16 %v2685, %v2681
    %v3586 = vpack.c.b16 %v2686, %v2682
    %v3587 = vpack.c.b16 %v2687, %v2683
    %v3588 = vpack.c.b16 %v2688, %v2684
    %v3589 = vpack.c.b16 %v2693, %v2689
    %v3590 = vpack.c.b16 %v2694, %v2690
    %v3591 = vpack.c.b16 %v2695, %v2691
    %v3592 = vpack.c.b16 %v2696, %v2692
    %v3593 = vpack.c.b16 %v2701, %v2697
    %v3594 = vpack.c.b16 %v2702, %v2698
    %v3595 = vpack.c.b16 %v2703, %v2699
    %v3596 = vpack.c.b16 %v2704, %v2700
    %v3597 = vpack.c.b16 %v2709, %v2705
    %v3598 = vpack.c.b16 %v2710, %v2706
    %v3599 = vpack.c.b16 %v2711, %v2707
    %v3600 = vpack.c.b16 %v2712, %v2708
    %v3601 = vpack.c.b16 %v2717, %v2713
    %v3602 = vpack.c.b16 %v2718, %v2714
    %v3603 = vpack.c.b16 %v2719, %v2715
    %v3604 = vpack.c.b16 %v2720, %v2716
    %v3605 = vpack.c.b16 %v2725, %v2721
    %v3606 = vpack.c.b16 %v2726, %v2722
    %v3607 = vpack.c.b16 %v2727, %v2723
    %v3608 = vpack.c.b16 %v2728, %v2724
    %v3609 = vpack.c.b16 %v2733, %v2729
    %v3610 = vpack.c.b16 %v2734, %v2730
    %v3611 = vpack.c.b16 %v2735, %v2731
    %v3612 = vpack.c.b16 %v2736, %v2732
    %v3613 = vpack.c.b16 %v2741, %v2737
    %v3614 = vpack.c.b16 %v2742, %v2738
    %v3615 = vpack.c.b16 %v2743, %v2739
    %v3616 = vpack.c.b16 %v2744, %v2740
    %v3617 = vpack.c.b16 %v2749, %v2745
    %v3618 = vpack.c.b16 %v2750, %v2746
    %v3619 = vpack.c.b16 %v2751, %v2747
    %v3620 = vpack.c.b16 %v2752, %v2748
    %v3621 = vpack.c.b16 %v2757, %v2753
    %v3622 = vpack.c.b16 %v2758, %v2754
    %v3623 = vpack.c.b16 %v2759, %v2755
    %v3624 = vpack.c.b16 %v2760, %v2756
    %v3625 = vpack.c.b16 %v2765, %v2761
    %v3626 = vpack.c.b16 %v2766, %v2762
    %v3627 = vpack.c.b16 %v2767, %v2763
    %v3628 = vpack.c.b16 %v2768, %v2764
    %v3629 = vpack.c.b16 %v2773, %v2769
    %v3630 = vpack.c.b16 %v2774, %v2770
    %v3631 = vpack.c.b16 %v2775, %v2771
    %v3632 = vpack.c.b16 %v2776, %v2772
    %v3633 = vpack.c.b16 %v2781, %v2777
    %v3634 = vpack.c.b16 %v2782, %v2778
    %v3635 = vpack.c.b16 %v2783, %v2779
    %v3636 = vpack.c.b16 %v2784, %v2780
    %v3637 = vpack.c.b16 %v2789, %v2785
    %v3638 = vpack.c.b16 %v2790, %v2786
    %v3639 = vpack.c.b16 %v2791, %v2787
    %v3640 = vpack.c.b16 %v2792, %v2788
    %v3641 = vpack.c.b16 %v2797, %v2793
    %v3642 = vpack.c.b16 %v2798, %v2794
    %v3643 = vpack.c.b16 %v2799, %v2795
    %v3644 = vpack.c.b16 %v2800, %v2796
    %v3645 = vpack.c.b16 %v2805, %v2801
    %v3646 = vpack.c.b16 %v2806, %v2802
    %v3647 = vpack.c.b16 %v2807, %v2803
    %v3648 = vpack.c.b16 %v2808, %v2804
    %v3649 = vpack.c.b16 %v2813, %v2809
    %v3650 = vpack.c.b16 %v2814, %v2810
    %v3651 = vpack.c.b16 %v2815, %v2811
    %v3652 = vpack.c.b16 %v2816, %v2812
    %v3653 = vpack.c.b16 %v2821, %v2817
    %v3654 = vpack.c.b16 %v2822, %v2818
    %v3655 = vpack.c.b16 %v2823, %v2819
    %v3656 = vpack.c.b16 %v2824, %v2820
    %v3657 = vpack.c.b16 %v2829, %v2825
    %v3658 = vpack.c.b16 %v2830, %v2826
    %v3659 = vpack.c.b16 %v2831, %v2827
    %v3660 = vpack.c.b16 %v2832, %v2828
    %v3661 = vpack.c.b16 %v2837, %v2833
    %v3662 = vpack.c.b16 %v2838, %v2834
    %v3663 = vpack.c.b16 %v2839, %v2835
    %v3664 = vpack.c.b16 %v2840, %v2836
    %v3665 = vpack.c.b16 %v2845, %v2841
    %v3666 = vpack.c.b16 %v2846, %v2842
    %v3667 = vpack.c.b16 %v2847, %v2843
    %v3668 = vpack.c.b16 %v2848, %v2844
    %v3669 = vpack.c.b16 %v2853, %v2849
    %v3670 = vpack.c.b16 %v2854, %v2850
    %v3671 = vpack.c.b16 %v2855, %v2851
    %v3672 = vpack.c.b16 %v2856, %v2852
    %v3673 = vpack.c.b16 %v2861, %v2857
    %v3674 = vpack.c.b16 %v2862, %v2858
    %v3675 = vpack.c.b16 %v2863, %v2859
    %v3676 = vpack.c.b16 %v2864, %v2860
    %v3677 = vpack.c.b16 %v2869, %v2865
    %v3678 = vpack.c.b16 %v2870, %v2866
    %v3679 = vpack.c.b16 %v2871, %v2867
    %v3680 = vpack.c.b16 %v2872, %v2868
    %v3681 = vpack.c.b16 %v2877, %v2873
    %v3682 = vpack.c.b16 %v2878, %v2874
    %v3683 = vpack.c.b16 %v2879, %v2875
    %v3684 = vpack.c.b16 %v2880, %v2876
    %v3685 = vpack.c.b16 %v2885, %v2881
    %v3686 = vpack.c.b16 %v2886, %v2882
    %v3687 = vpack.c.b16 %v2887, %v2883
    %v3688 = vpack.c.b16 %v2888, %v2884
    %v3689 = vpack.c.b16 %v2893, %v2889
    %v3690 = vpack.c.b16 %v2894, %v2890
    %v3691 = vpack.c.b16 %v2895, %v2891
    %v3692 = vpack.c.b16 %v2896, %v2892
    %v3693 = vpack.c.b16 %v2901, %v2897
    %v3694 = vpack.c.b16 %v2902, %v2898
    %v3695 = vpack.c.b16 %v2903, %v2899
    %v3696 = vpack.c.b16 %v2904, %v2900
    %v3697 = vpack.c.b16 %v2909, %v2905
    %v3698 = vpack.c.b16 %v2910, %v2906
    %v3699 = vpack.c.b16 %v2911, %v2907
    %v3700 = vpack.c.b16 %v2912, %v2908
    %v3701 = vpack.c.b16 %v2917, %v2913
    %v3702 = vpack.c.b16 %v2918, %v2914
    %v3703 = vpack.c.b16 %v2919, %v2915
    %v3704 = vpack.c.b16 %v2920, %v2916
    %v3705 = vpack.c.b16 %v2925, %v2921
    %v3706 = vpack.c.b16 %v2926, %v2922
    %v3707 = vpack.c.b16 %v2927, %v2923
    %v3708 = vpack.c.b16 %v2928, %v2924
    %v3709 = vpack.c.b16 %v2933, %v2929
    %v3710 = vpack.c.b16 %v2934, %v2930
    %v3711 = vpack.c.b16 %v2935, %v2931
    %v3712 = vpack.c.b16 %v2936, %v2932
    %v3713 = vpack.c.b16 %v2941, %v2937
    %v3714 = vpack.c.b16 %v2942, %v2938
    %v3715 = vpack.c.b16 %v2943, %v2939
    %v3716 = vpack.c.b16 %v2944, %v2940
    %v3717 = vpack.c.b16 %v2949, %v2945
    %v3718 = vpack.c.b16 %v2950, %v2946
    %v3719 = vpack.c.b16 %v2951, %v2947
    %v3720 = vpack.c.b16 %v2952, %v2948
    %v3721 = vpack.c.b16 %v2957, %v2953
    %v3722 = vpack.c.b16 %v2958, %v2954
    %v3723 = vpack.c.b16 %v2959, %v2955
    %v3724 = vpack.c.b16 %v2960, %v2956
    %v3725 = vpack.c.b16 %v2965, %v2961
    %v3726 = vpack.c.b16 %v2966, %v2962
    %v3727 = vpack.c.b16 %v2967, %v2963
    %v3728 = vpack.c.b16 %v2968, %v2964
    %v3729 = vpack.c.b16 %v2973, %v2969
    %v3730 = vpack.c.b16 %v2974, %v2970
    %v3731 = vpack.c.b16 %v2975, %v2971
    %v3732 = vpack.c.b16 %v2976, %v2972
    %v3733 = vpack.c.b16 %v2981, %v2977
    %v3734 = vpack.c.b16 %v2982, %v2978
    %v3735 = vpack.c.b16 %v2983, %v2979
    %v3736 = vpack.c.b16 %v2984, %v2980
    %v3737 = vpack.c.b16 %v2989, %v2985
    %v3738 = vpack.c.b16 %v2990, %v2986
    %v3739 = vpack.c.b16 %v2991, %v2987
    %v3740 = vpack.c.b16 %v2992, %v2988
    %v3741 = vpack.c.b16 %v2997, %v2993
    %v3742 = vpack.c.b16 %v2998, %v2994
    %v3743 = vpack.c.b16 %v2999, %v2995
    %v3744 = vpack.c.b16 %v3000, %v2996
    %v3745 = vpack.c.b16 %v3005, %v3001
    %v3746 = vpack.c.b16 %v3006, %v3002
    %v3747 = vpack.c.b16 %v3007, %v3003
    %v3748 = vpack.c.b16 %v3008, %v3004
    %v3749 = vpack.c.b16 %v3013, %v3009
    %v3750 = vpack.c.b16 %v3014, %v3010
    %v3751 = vpack.c.b16 %v3015, %v3011
    %v3752 = vpack.c.b16 %v3016, %v3012
    %v3753 = vpack.c.b16 %v3021, %v3017
    %v3754 = vpack.c.b16 %v3022, %v3018
    %v3755 = vpack.c.b16 %v3023, %v3019
    %v3756 = vpack.c.b16 %v3024, %v3020
    %v3757 = vpack.c.b16 %v3029, %v3025
    %v3758 = vpack.c.b16 %v3030, %v3026
    %v3759 = vpack.c.b16 %v3031, %v3027
    %v3760 = vpack.c.b16 %v3032, %v3028
    %v3761 = vpack.c.b16 %v3037, %v3033
    %v3762 = vpack.c.b16 %v3038, %v3034
    %v3763 = vpack.c.b16 %v3039, %v3035
    %v3764 = vpack.c.b16 %v3040, %v3036
    %v3765 = vpack.c.b16 %v3045, %v3041
    %v3766 = vpack.c.b16 %v3046, %v3042
    %v3767 = vpack.c.b16 %v3047, %v3043
    %v3768 = vpack.c.b16 %v3048, %v3044
    %v3769 = vpack.c.b16 %v3053, %v3049
    %v3770 = vpack.c.b16 %v3054, %v3050
    %v3771 = vpack.c.b16 %v3055, %v3051
    %v3772 = vpack.c.b16 %v3056, %v3052
    %v3773 = vpack.c.b16 %v3061, %v3057
    %v3774 = vpack.c.b16 %v3062, %v3058
    %v3775 = vpack.c.b16 %v3063, %v3059
    %v3776 = vpack.c.b16 %v3064, %v3060
    %v3777 = vpack.c.b16 %v3069, %v3065
    %v3778 = vpack.c.b16 %v3070, %v3066
    %v3779 = vpack.c.b16 %v3071, %v3067
    %v3780 = vpack.c.b16 %v3072, %v3068
    %v3781 = vpack.c.b16 %v3077, %v3073
    %v3782 = vpack.c.b16 %v3078, %v3074
    %v3783 = vpack.c.b16 %v3079, %v3075
    %v3784 = vpack.c.b16 %v3080, %v3076
    %v3785 = vpack.c.b16 %v3085, %v3081
    %v3786 = vpack.c.b16 %v3086, %v3082
    %v3787 = vpack.c.b16 %v3087, %v3083
    %v3788 = vpack.c.b16 %v3088, %v3084
    %v3789 = vpack.c.b16 %v3093, %v3089
    %v3790 = vpack.c.b16 %v3094, %v3090
    %v3791 = vpack.c.b16 %v3095, %v3091
    %v3792 = vpack.c.b16 %v3096, %v3092
    %v3793 = vpack.c.b16 %v3101, %v3097
    %v3794 = vpack.c.b16 %v3102, %v3098
    %v3795 = vpack.c.b16 %v3103, %v3099
    %v3796 = vpack.c.b16 %v3104, %v3100
    %v3797 = vpack.c.b16 %v3109, %v3105
    %v3798 = vpack.c.b16 %v3110, %v3106
    %v3799 = vpack.c.b16 %v3111, %v3107
    %v3800 = vpack.c.b16 %v3112, %v3108
    %v3801 = vpack.c.b16 %v3117, %v3113
    %v3802 = vpack.c.b16 %v3118, %v3114
    %v3803 = vpack.c.b16 %v3119, %v3115
    %v3804 = vpack.c.b16 %v3120, %v3116
    %v3805 = vpack.c.b16 %v3125, %v3121
    %v3806 = vpack.c.b16 %v3126, %v3122
    %v3807 = vpack.c.b16 %v3127, %v3123
    %v3808 = vpack.c.b16 %v3128, %v3124
    %v3809 = vpack.c.b16 %v3133, %v3129
    %v3810 = vpack.c.b16 %v3134, %v3130
    %v3811 = vpack.c.b16 %v3135, %v3131
    %v3812 = vpack.c.b16 %v3136, %v3132
    %v3813 = vpack.c.b16 %v3141, %v3137
    %v3814 = vpack.c.b16 %v3142, %v3138
    %v3815 = vpack.c.b16 %v3143, %v3139
    %v3816 = vpack.c.b16 %v3144, %v3140
    %v3817 = vpack.c.b16 %v3149, %v3145
    %v3818 = vpack.c.b16 %v3150, %v3146
    %v3819 = vpack.c.b16 %v3151, %v3147
    %v3820 = vpack.c.b16 %v3152, %v3148
    %v3821 = vpack.c.b16 %v3157, %v3153
    %v3822 = vpack.c.b16 %v3158, %v3154
    %v3823 = vpack.c.b16 %v3159, %v3155
    %v3824 = vpack.c.b16 %v3160, %v3156
    %v3825 = vpack.c.b16 %v3165, %v3161
    %v3826 = vpack.c.b16 %v3166, %v3162
    %v3827 = vpack.c.b16 %v3167, %v3163
    %v3828 = vpack.c.b16 %v3168, %v3164
    %v3829 = vpack.c.b16 %v3173, %v3169
    %v3830 = vpack.c.b16 %v3174, %v3170
    %v3831 = vpack.c.b16 %v3175, %v3171
    %v3832 = vpack.c.b16 %v3176, %v3172
    %v3833 = vpack.c.b16 %v3181, %v3177
    %v3834 = vpack.c.b16 %v3182, %v3178
    %v3835 = vpack.c.b16 %v3183, %v3179
    %v3836 = vpack.c.b16 %v3184, %v3180
    %v3837 = vpack.c.b16 %v3189, %v3185
    %v3838 = vpack.c.b16 %v3190, %v3186
    %v3839 = vpack.c.b16 %v3191, %v3187
    %v3840 = vpack.c.b16 %v3192, %v3188
    %v3841 = vpack.c.b16 %v3197, %v3193
    %v3842 = vpack.c.b16 %v3198, %v3194
    %v3843 = vpack.c.b16 %v3199, %v3195
    %v3844 = vpack.c.b16 %v3200, %v3196
    %v3845 = vpack.c.b16 %v3205, %v3201
    %v3846 = vpack.c.b16 %v3206, %v3202
    %v3847 = vpack.c.b16 %v3207, %v3203
    %v3848 = vpack.c.b16 %v3208, %v3204
    %v3849 = vpack.c.b16 %v3213, %v3209
    %v3850 = vpack.c.b16 %v3214, %v3210
    %v3851 = vpack.c.b16 %v3215, %v3211
    %v3852 = vpack.c.b16 %v3216, %v3212
    %v3853 = vpack.c.b16 %v3221, %v3217
    %v3854 = vpack.c.b16 %v3222, %v3218
    %v3855 = vpack.c.b16 %v3223, %v3219
    %v3856 = vpack.c.b16 %v3224, %v3220
    %v3857 = vpack.c.b16 %v3229, %v3225
    %v3858 = vpack.c.b16 %v3230, %v3226
    %v3859 = vpack.c.b16 %v3231, %v3227
    %v3860 = vpack.c.b16 %v3232, %v3228
    %v3861 = vpack.c.b16 %v3237, %v3233
    %v3862 = vpack.c.b16 %v3238, %v3234
    %v3863 = vpack.c.b16 %v3239, %v3235
    %v3864 = vpack.c.b16 %v3240, %v3236
    %v3865 = vpack.c.b16 %v3245, %v3241
    %v3866 = vpack.c.b16 %v3246, %v3242
    %v3867 = vpack.c.b16 %v3247, %v3243
    %v3868 = vpack.c.b16 %v3248, %v3244
    %v3869 = vpack.c.b16 %v3253, %v3249
    %v3870 = vpack.c.b16 %v3254, %v3250
    %v3871 = vpack.c.b16 %v3255, %v3251
    %v3872 = vpack.c.b16 %v3256, %v3252
    %v3873 = vpack.c.b16 %v3261, %v3257
    %v3874 = vpack.c.b16 %v3262, %v3258
    %v3875 = vpack.c.b16 %v3263, %v3259
    %v3876 = vpack.c.b16 %v3264, %v3260
    %v3877 = vpack.c.b16 %v3269, %v3265
    %v3878 = vpack.c.b16 %v3270, %v3266
    %v3879 = vpack.c.b16 %v3271, %v3267
    %v3880 = vpack.c.b16 %v3272, %v3268
    %v3881 = vpack.c.b16 %v3277, %v3273
    %v3882 = vpack.c.b16 %v3278, %v3274
    %v3883 = vpack.c.b16 %v3279, %v3275
    %v3884 = vpack.c.b16 %v3280, %v3276
    %v3885 = vpack.c.b16 %v3285, %v3281
    %v3886 = vpack.c.b16 %v3286, %v3282
    %v3887 = vpack.c.b16 %v3287, %v3283
    %v3888 = vpack.c.b16 %v3288, %v3284
    %v3889 = vpack.c.b16 %v3293, %v3289
    %v3890 = vpack.c.b16 %v3294, %v3290
    %v3891 = vpack.c.b16 %v3295, %v3291
    %v3892 = vpack.c.b16 %v3296, %v3292
    %v3893 = vpack.c.b16 %v3301, %v3297
    %v3894 = vpack.c.b16 %v3302, %v3298
    %v3895 = vpack.c.b16 %v3303, %v3299
    %v3896 = vpack.c.b16 %v3304, %v3300
    %v3897 = vpack.c.b16 %v3309, %v3305
    %v3898 = vpack.c.b16 %v3310, %v3306
    %v3899 = vpack.c.b16 %v3311, %v3307
    %v3900 = vpack.c.b16 %v3312, %v3308
    %v3901 = vpack.c.b16 %v3317, %v3313
    %v3902 = vpack.c.b16 %v3318, %v3314
    %v3903 = vpack.c.b16 %v3319, %v3315
    %v3904 = vpack.c.b16 %v3320, %v3316
    %v3905 = vpack.c.b16 %v3325, %v3321
    %v3906 = vpack.c.b16 %v3326, %v3322
    %v3907 = vpack.c.b16 %v3327, %v3323
    %v3908 = vpack.c.b16 %v3328, %v3324
    %v3909 = vpack.c.b16 %v3333, %v3329
    %v3910 = vpack.c.b16 %v3334, %v3330
    %v3911 = vpack.c.b16 %v3335, %v3331
    %v3912 = vpack.c.b16 %v3336, %v3332
    %v3913 = vpack.c.b16 %v3341, %v3337
    %v3914 = vpack.c.b16 %v3342, %v3338
    %v3915 = vpack.c.b16 %v3343, %v3339
    %v3916 = vpack.c.b16 %v3344, %v3340
    %v3917 = vpack.c.b16 %v3349, %v3345
    %v3918 = vpack.c.b16 %v3350, %v3346
    %v3919 = vpack.c.b16 %v3351, %v3347
    %v3920 = vpack.c.b16 %v3352, %v3348
    %v3921 = vpack.c.b16 %v3357, %v3353
    %v3922 = vpack.c.b16 %v3358, %v3354
    %v3923 = vpack.c.b16 %v3359, %v3355
    %v3924 = vpack.c.b16 %v3360, %v3356
    %v3925 = vpack.c.b16 %v3365, %v3361
    %v3926 = vpack.c.b16 %v3366, %v3362
    %v3927 = vpack.c.b16 %v3367, %v3363
    %v3928 = vpack.c.b16 %v3368, %v3364
    %v3929 = vpack.c.b16 %v3373, %v3369
    %v3930 = vpack.c.b16 %v3374, %v3370
    %v3931 = vpack.c.b16 %v3375, %v3371
    %v3932 = vpack.c.b16 %v3376, %v3372
    %v3933 = vpack.c.b16 %v3381, %v3377
    %v3934 = vpack.c.b16 %v3382, %v3378
    %v3935 = vpack.c.b16 %v3383, %v3379
    %v3936 = vpack.c.b16 %v3384, %v3380
    %v3937 = vpack.c.b16 %v3389, %v3385
    %v3938 = vpack.c.b16 %v3390, %v3386
    %v3939 = vpack.c.b16 %v3391, %v3387
    %v3940 = vpack.c.b16 %v3392, %v3388
    %v3941 = vpack.c.b16 %v3397, %v3393
    %v3942 = vpack.c.b16 %v3398, %v3394
    %v3943 = vpack.c.b16 %v3399, %v3395
    %v3944 = vpack.c.b16 %v3400, %v3396
    %v3945 = vpack.c.b16 %v3405, %v3401
    %v3946 = vpack.c.b16 %v3406, %v3402
    %v3947 = vpack.c.b16 %v3407, %v3403
    %v3948 = vpack.c.b16 %v3408, %v3404
    %v3949 = vpack.c.b16 %v3413, %v3409
    %v3950 = vpack.c.b16 %v3414, %v3410
    %v3951 = vpack.c.b16 %v3415, %v3411
    %v3952 = vpack.c.b16 %v3416, %v3412
    %v3953 = vpack.c.b16 %v3421, %v3417
    %v3954 = vpack.c.b16 %v3422, %v3418
    %v3955 = vpack.c.b16 %v3423, %v3419
    %v3956 = vpack.c.b16 %v3424, %v3420
    %v3957 = vpack.c.b16 %v3429, %v3425
    %v3958 = vpack.c.b16 %v3430, %v3426
    %v3959 = vpack.c.b16 %v3431, %v3427
    %v3960 = vpack.c.b16 %v3432, %v3428
    %v3961 = vpack.c.b16 %v3437, %v3433
    %v3962 = vpack.c.b16 %v3438, %v3434
    %v3963 = vpack.c.b16 %v3439, %v3435
    %v3964 = vpack.c.b16 %v3440, %v3436
    %v3965 = vpack.c.b16 %v3445, %v3441
    %v3966 = vpack.c.b16 %v3446, %v3442
    %v3967 = vpack.c.b16 %v3447, %v3443
    %v3968 = vpack.c.b16 %v3448, %v3444
    %v3969 = vpack.c.b16 %v3453, %v3449
    %v3970 = vpack.c.b16 %v3454, %v3450
    %v3971 = vpack.c.b16 %v3455, %v3451
    %v3972 = vpack.c.b16 %v3456, %v3452
    %v3973 = vpack.c.b16 %v3461, %v3457
    %v3974 = vpack.c.b16 %v3462, %v3458
    %v3975 = vpack.c.b16 %v3463, %v3459
    %v3976 = vpack.c.b16 %v3464, %v3460
    %4489 = vmatprep.subr.bf16.mxu0 %v3466
    %4490 = vmatpush1.bf16.msra.mxu0 %v3465
    %4491 = vmatprep.subr.bf16.mxu0 %v3470
    %4492 = vmatpush1.bf16.msra.mxu0 %v3469
    %4493 = vmatprep.subr.bf16.mxu0 %v3474
    %4494 = vmatpush1.bf16.msra.mxu0 %v3473
    %4495 = vmatprep.subr.bf16.mxu0 %v3478
    %4496 = vmatpush1.bf16.msra.mxu0 %v3477
    %4497 = vmatprep.subr.bf16.mxu0 %v3482
    %4498 = vmatpush1.bf16.msra.mxu0 %v3481
    %4499 = vmatprep.subr.bf16.mxu0 %v3486
    %4500 = vmatpush1.bf16.msra.mxu0 %v3485
    %4501 = vmatprep.subr.bf16.mxu0 %v3490
    %4502 = vmatpush1.bf16.msra.mxu0 %v3489
    %4503 = vmatprep.subr.bf16.mxu0 %v3494
    %4504 = vmatpush1.bf16.msra.mxu0 %v3493
    %4505 = vmatprep.subr.bf16.mxu0 %v3498
    %4506 = vmatpush1.bf16.msra.mxu0 %v3497
    %4507 = vmatprep.subr.bf16.mxu0 %v3502
    %4508 = vmatpush1.bf16.msra.mxu0 %v3501
    %4509 = vmatprep.subr.bf16.mxu0 %v3506
    %4510 = vmatpush1.bf16.msra.mxu0 %v3505
    %4511 = vmatprep.subr.bf16.mxu0 %v3510
    %4512 = vmatpush1.bf16.msra.mxu0 %v3509
    %4513 = vmatprep.subr.bf16.mxu0 %v3514
    %4514 = vmatpush1.bf16.msra.mxu0 %v3513
    %4515 = vmatprep.subr.bf16.mxu0 %v3518
    %4516 = vmatpush1.bf16.msra.mxu0 %v3517
    %4517 = vmatprep.subr.bf16.mxu0 %v3522
    %4518 = vmatpush1.bf16.msra.mxu0 %v3521
    %4519 = vmatprep.subr.bf16.mxu0 %v3526
    %4520 = vmatpush1.bf16.msra.mxu0 %v3525
    %4521 = vmatprep.mubr.bf16.mxu0 %v1380
    %4522 = vmatmul.mubr.bf16.gmra.mrb[0].mxu0 %v1379
    %v4523 = vpop.f32.mrb[0].mxu0
    %v4524 = vadd.f32 %v1912, %v4523
    %v4525 = vpop.f32.mrb[0].mxu0
    %v4526 = vadd.f32 %v1916, %v4525
    %v4527 = vpop.f32.mrb[0].mxu0
    %v4528 = vadd.f32 %v1912, %v4527
    %v4529 = vpop.f32.mrb[0].mxu0
    %v4530 = vadd.f32 %v1916, %v4529
    %4531 = vdwg.mxu0
    %4532 = vmatprep.subr.bf16.mxu0 %v3530
    %4533 = vmatpush1.bf16.msra.mxu0 %v3529
    %4534 = vmatprep.subr.bf16.mxu0 %v3534
    %4535 = vmatpush1.bf16.msra.mxu0 %v3533
    %4536 = vmatprep.subr.bf16.mxu0 %v3538
    %4537 = vmatpush1.bf16.msra.mxu0 %v3537
    %4538 = vmatprep.subr.bf16.mxu0 %v3542
    %4539 = vmatpush1.bf16.msra.mxu0 %v3541
    %4540 = vmatprep.subr.bf16.mxu0 %v3546
    %4541 = vmatpush1.bf16.msra.mxu0 %v3545
    %4542 = vmatprep.subr.bf16.mxu0 %v3550
    %4543 = vmatpush1.bf16.msra.mxu0 %v3549
    %4544 = vmatprep.subr.bf16.mxu0 %v3554
    %4545 = vmatpush1.bf16.msra.mxu0 %v3553
    %4546 = vmatprep.subr.bf16.mxu0 %v3558
    %4547 = vmatpush1.bf16.msra.mxu0 %v3557
    %4548 = vmatprep.subr.bf16.mxu0 %v3562
    %4549 = vmatpush1.bf16.msra.mxu0 %v3561
    %4550 = vmatprep.subr.bf16.mxu0 %v3566
    %4551 = vmatpush1.bf16.msra.mxu0 %v3565
    %4552 = vmatprep.subr.bf16.mxu0 %v3570
    %4553 = vmatpush1.bf16.msra.mxu0 %v3569
    %4554 = vmatprep.subr.bf16.mxu0 %v3574
    %4555 = vmatpush1.bf16.msra.mxu0 %v3573
    %4556 = vmatprep.subr.bf16.mxu0 %v3578
    %4557 = vmatpush1.bf16.msra.mxu0 %v3577
    %4558 = vmatprep.subr.bf16.mxu0 %v3582
    %4559 = vmatpush1.bf16.msra.mxu0 %v3581
    %4560 = vmatprep.subr.bf16.mxu0 %v3586
    %4561 = vmatpush1.bf16.msra.mxu0 %v3585
    %4562 = vmatprep.subr.bf16.mxu0 %v3590
    %4563 = vmatpush1.bf16.msra.mxu0 %v3589
    %4564 = vmatprep.mubr.bf16.mxu0 %v1382
    %4565 = vmatmul.mubr.bf16.gmra.mrb[0].mxu0 %v1381
    %v4566 = vpop.f32.mrb[0].mxu0
    %v4567 = vadd.f32 %v4524, %v4566
    %v4568 = vpop.f32.mrb[0].mxu0
    %v4569 = vadd.f32 %v4526, %v4568
    %v4570 = vpop.f32.mrb[0].mxu0
    %v4571 = vadd.f32 %v4528, %v4570
    %v4572 = vpop.f32.mrb[0].mxu0
    %v4573 = vadd.f32 %v4530, %v4572
    %4574 = vdwg.mxu0
    %4575 = vmatprep.subr.bf16.mxu0 %v3594
    %4576 = vmatpush1.bf16.msra.mxu0 %v3593
    %4577 = vmatprep.subr.bf16.mxu0 %v3598
    %4578 = vmatpush1.bf16.msra.mxu0 %v3597
    %4579 = vmatprep.subr.bf16.mxu0 %v3602
    %4580 = vmatpush1.bf16.msra.mxu0 %v3601
    %4581 = vmatprep.subr.bf16.mxu0 %v3606
    %4582 = vmatpush1.bf16.msra.mxu0 %v3605
    %4583 = vmatprep.subr.bf16.mxu0 %v3610
    %4584 = vmatpush1.bf16.msra.mxu0 %v3609
    %4585 = vmatprep.subr.bf16.mxu0 %v3614
    %4586 = vmatpush1.bf16.msra.mxu0 %v3613
    %4587 = vmatprep.subr.bf16.mxu0 %v3618
    %4588 = vmatpush1.bf16.msra.mxu0 %v3617
    %4589 = vmatprep.subr.bf16.mxu0 %v3622
    %4590 = vmatpush1.bf16.msra.mxu0 %v3621
    %4591 = vmatprep.subr.bf16.mxu0 %v3626
    %4592 = vmatpush1.bf16.msra.mxu0 %v3625
    %4593 = vmatprep.subr.bf16.mxu0 %v3630
    %4594 = vmatpush1.bf16.msra.mxu0 %v3629
    %4595 = vmatprep.subr.bf16.mxu0 %v3634
    %4596 = vmatpush1.bf16.msra.mxu0 %v3633
    %4597 = vmatprep.subr.bf16.mxu0 %v3638
    %4598 = vmatpush1.bf16.msra.mxu0 %v3637
    %4599 = vmatprep.subr.bf16.mxu0 %v3642
    %4600 = vmatpush1.bf16.msra.mxu0 %v3641
    %4601 = vmatprep.subr.bf16.mxu0 %v3646
    %4602 = vmatpush1.bf16.msra.mxu0 %v3645
    %4603 = vmatprep.subr.bf16.mxu0 %v3650
    %4604 = vmatpush1.bf16.msra.mxu0 %v3649
    %4605 = vmatprep.subr.bf16.mxu0 %v3654
    %4606 = vmatpush1.bf16.msra.mxu0 %v3653
    %4607 = vmatprep.mubr.bf16.mxu0 %v1384
    %4608 = vmatmul.mubr.bf16.gmra.mrb[0].mxu0 %v1383
    %v4609 = vpop.f32.mrb[0].mxu0
    %v4610 = vadd.f32 %v4567, %v4609
    %v4611 = vpop.f32.mrb[0].mxu0
    %v4612 = vadd.f32 %v4569, %v4611
    %v4613 = vpop.f32.mrb[0].mxu0
    %v4614 = vadd.f32 %v4571, %v4613
    %v4615 = vpop.f32.mrb[0].mxu0
    %v4616 = vadd.f32 %v4573, %v4615
    %4617 = vdwg.mxu0
    %4618 = vmatprep.subr.bf16.mxu0 %v3658
    %4619 = vmatpush1.bf16.msra.mxu0 %v3657
    %4620 = vmatprep.subr.bf16.mxu0 %v3662
    %4621 = vmatpush1.bf16.msra.mxu0 %v3661
    %4622 = vmatprep.subr.bf16.mxu0 %v3666
    %4623 = vmatpush1.bf16.msra.mxu0 %v3665
    %4624 = vmatprep.subr.bf16.mxu0 %v3670
    %4625 = vmatpush1.bf16.msra.mxu0 %v3669
    %4626 = vmatprep.subr.bf16.mxu0 %v3674
    %4627 = vmatpush1.bf16.msra.mxu0 %v3673
    %4628 = vmatprep.subr.bf16.mxu0 %v3678
    %4629 = vmatpush1.bf16.msra.mxu0 %v3677
    %4630 = vmatprep.subr.bf16.mxu0 %v3682
    %4631 = vmatpush1.bf16.msra.mxu0 %v3681
    %4632 = vmatprep.subr.bf16.mxu0 %v3686
    %4633 = vmatpush1.bf16.msra.mxu0 %v3685
    %4634 = vmatprep.subr.bf16.mxu0 %v3690
    %4635 = vmatpush1.bf16.msra.mxu0 %v3689
    %4636 = vmatprep.subr.bf16.mxu0 %v3694
    %4637 = vmatpush1.bf16.msra.mxu0 %v3693
    %4638 = vmatprep.subr.bf16.mxu0 %v3698
    %4639 = vmatpush1.bf16.msra.mxu0 %v3697
    %4640 = vmatprep.subr.bf16.mxu0 %v3702
    %4641 = vmatpush1.bf16.msra.mxu0 %v3701
    %4642 = vmatprep.subr.bf16.mxu0 %v3706
    %4643 = vmatpush1.bf16.msra.mxu0 %v3705
    %4644 = vmatprep.subr.bf16.mxu0 %v3710
    %4645 = vmatpush1.bf16.msra.mxu0 %v3709
    %4646 = vmatprep.subr.bf16.mxu0 %v3714
    %4647 = vmatpush1.bf16.msra.mxu0 %v3713
    %4648 = vmatprep.subr.bf16.mxu0 %v3718
    %4649 = vmatpush1.bf16.msra.mxu0 %v3717
    %4650 = vmatprep.mubr.bf16.mxu0 %v1386
    %4651 = vmatmul.mubr.bf16.gmra.mrb[0].mxu0 %v1385
    %v4652 = vpop.f32.mrb[0].mxu0
    %v4653 = vadd.f32 %v4610, %v4652
    %v4654 = vpop.f32.mrb[0].mxu0
    %v4655 = vadd.f32 %v4612, %v4654
    %v4656 = vpop.f32.mrb[0].mxu0
    %v4657 = vadd.f32 %v4614, %v4656
    %v4658 = vpop.f32.mrb[0].mxu0
    %v4659 = vadd.f32 %v4616, %v4658
    %4660 = vdwg.mxu0
    %4661 = vmatprep.subr.bf16.mxu0 %v3722
    %4662 = vmatpush1.bf16.msra.mxu0 %v3721
    %4663 = vmatprep.subr.bf16.mxu0 %v3726
    %4664 = vmatpush1.bf16.msra.mxu0 %v3725
    %4665 = vmatprep.subr.bf16.mxu0 %v3730
    %4666 = vmatpush1.bf16.msra.mxu0 %v3729
    %4667 = vmatprep.subr.bf16.mxu0 %v3734
    %4668 = vmatpush1.bf16.msra.mxu0 %v3733
    %4669 = vmatprep.subr.bf16.mxu0 %v3738
    %4670 = vmatpush1.bf16.msra.mxu0 %v3737
    %4671 = vmatprep.subr.bf16.mxu0 %v3742
    %4672 = vmatpush1.bf16.msra.mxu0 %v3741
    %4673 = vmatprep.subr.bf16.mxu0 %v3746
    %4674 = vmatpush1.bf16.msra.mxu0 %v3745
    %4675 = vmatprep.subr.bf16.mxu0 %v3750
    %4676 = vmatpush1.bf16.msra.mxu0 %v3749
    %4677 = vmatprep.subr.bf16.mxu0 %v3754
    %4678 = vmatpush1.bf16.msra.mxu0 %v3753
    %4679 = vmatprep.subr.bf16.mxu0 %v3758
    %4680 = vmatpush1.bf16.msra.mxu0 %v3757
    %4681 = vmatprep.subr.bf16.mxu0 %v3762
    %4682 = vmatpush1.bf16.msra.mxu0 %v3761
    %4683 = vmatprep.subr.bf16.mxu0 %v3766
    %4684 = vmatpush1.bf16.msra.mxu0 %v3765
    %4685 = vmatprep.subr.bf16.mxu0 %v3770
    %4686 = vmatpush1.bf16.msra.mxu0 %v3769
    %4687 = vmatprep.subr.bf16.mxu0 %v3774
    %4688 = vmatpush1.bf16.msra.mxu0 %v3773
    %4689 = vmatprep.subr.bf16.mxu0 %v3778
    %4690 = vmatpush1.bf16.msra.mxu0 %v3777
    %4691 = vmatprep.subr.bf16.mxu0 %v3782
    %4692 = vmatpush1.bf16.msra.mxu0 %v3781
    %4693 = vmatprep.mubr.bf16.mxu0 %v1388
    %4694 = vmatmul.mubr.bf16.gmra.mrb[0].mxu0 %v1387
    %v4695 = vpop.f32.mrb[0].mxu0
    %v4696 = vadd.f32 %v4653, %v4695
    %v4697 = vpop.f32.mrb[0].mxu0
    %v4698 = vadd.f32 %v4655, %v4697
    %v4699 = vpop.f32.mrb[0].mxu0
    %v4700 = vadd.f32 %v4657, %v4699
    %v4701 = vpop.f32.mrb[0].mxu0
    %v4702 = vadd.f32 %v4659, %v4701
    %4703 = vdwg.mxu0
    %4704 = vmatprep.subr.bf16.mxu0 %v3786
    %4705 = vmatpush1.bf16.msra.mxu0 %v3785
    %4706 = vmatprep.subr.bf16.mxu0 %v3790
    %4707 = vmatpush1.bf16.msra.mxu0 %v3789
    %4708 = vmatprep.subr.bf16.mxu0 %v3794
    %4709 = vmatpush1.bf16.msra.mxu0 %v3793
    %4710 = vmatprep.subr.bf16.mxu0 %v3798
    %4711 = vmatpush1.bf16.msra.mxu0 %v3797
    %4712 = vmatprep.subr.bf16.mxu0 %v3802
    %4713 = vmatpush1.bf16.msra.mxu0 %v3801
    %4714 = vmatprep.subr.bf16.mxu0 %v3806
    %4715 = vmatpush1.bf16.msra.mxu0 %v3805
    %4716 = vmatprep.subr.bf16.mxu0 %v3810
    %4717 = vmatpush1.bf16.msra.mxu0 %v3809
    %4718 = vmatprep.subr.bf16.mxu0 %v3814
    %4719 = vmatpush1.bf16.msra.mxu0 %v3813
    %4720 = vmatprep.subr.bf16.mxu0 %v3818
    %4721 = vmatpush1.bf16.msra.mxu0 %v3817
    %4722 = vmatprep.subr.bf16.mxu0 %v3822
    %4723 = vmatpush1.bf16.msra.mxu0 %v3821
    %4724 = vmatprep.subr.bf16.mxu0 %v3826
    %4725 = vmatpush1.bf16.msra.mxu0 %v3825
    %4726 = vmatprep.subr.bf16.mxu0 %v3830
    %4727 = vmatpush1.bf16.msra.mxu0 %v3829
    %4728 = vmatprep.subr.bf16.mxu0 %v3834
    %4729 = vmatpush1.bf16.msra.mxu0 %v3833
    %4730 = vmatprep.subr.bf16.mxu0 %v3838
    %4731 = vmatpush1.bf16.msra.mxu0 %v3837
    %4732 = vmatprep.subr.bf16.mxu0 %v3842
    %4733 = vmatpush1.bf16.msra.mxu0 %v3841
    %4734 = vmatprep.subr.bf16.mxu0 %v3846
    %4735 = vmatpush1.bf16.msra.mxu0 %v3845
    %4736 = vmatprep.mubr.bf16.mxu0 %v1390
    %4737 = vmatmul.mubr.bf16.gmra.mrb[0].mxu0 %v1389
    %v4738 = vpop.f32.mrb[0].mxu0
    %v4739 = vadd.f32 %v4696, %v4738
    %v4740 = vpop.f32.mrb[0].mxu0
    %v4741 = vadd.f32 %v4698, %v4740
    %v4742 = vpop.f32.mrb[0].mxu0
    %v4743 = vadd.f32 %v4700, %v4742
    %v4744 = vpop.f32.mrb[0].mxu0
    %v4745 = vadd.f32 %v4702, %v4744
    %4746 = vdwg.mxu0
    %4747 = vmatprep.subr.bf16.mxu0 %v3850
    %4748 = vmatpush1.bf16.msra.mxu0 %v3849
    %4749 = vmatprep.subr.bf16.mxu0 %v3854
    %4750 = vmatpush1.bf16.msra.mxu0 %v3853
    %4751 = vmatprep.subr.bf16.mxu0 %v3858
    %4752 = vmatpush1.bf16.msra.mxu0 %v3857
    %4753 = vmatprep.subr.bf16.mxu0 %v3862
    %4754 = vmatpush1.bf16.msra.mxu0 %v3861
    %4755 = vmatprep.subr.bf16.mxu0 %v3866
    %4756 = vmatpush1.bf16.msra.mxu0 %v3865
    %4757 = vmatprep.subr.bf16.mxu0 %v3870
    %4758 = vmatpush1.bf16.msra.mxu0 %v3869
    %4759 = vmatprep.subr.bf16.mxu0 %v3874
    %4760 = vmatpush1.bf16.msra.mxu0 %v3873
    %4761 = vmatprep.subr.bf16.mxu0 %v3878
    %4762 = vmatpush1.bf16.msra.mxu0 %v3877
    %4763 = vmatprep.subr.bf16.mxu0 %v3882
    %4764 = vmatpush1.bf16.msra.mxu0 %v3881
    %4765 = vmatprep.subr.bf16.mxu0 %v3886
    %4766 = vmatpush1.bf16.msra.mxu0 %v3885
    %4767 = vmatprep.subr.bf16.mxu0 %v3890
    %4768 = vmatpush1.bf16.msra.mxu0 %v3889
    %4769 = vmatprep.subr.bf16.mxu0 %v3894
    %4770 = vmatpush1.bf16.msra.mxu0 %v3893
    %4771 = vmatprep.subr.bf16.mxu0 %v3898
    %4772 = vmatpush1.bf16.msra.mxu0 %v3897
    %4773 = vmatprep.subr.bf16.mxu0 %v3902
    %4774 = vmatpush1.bf16.msra.mxu0 %v3901
    %4775 = vmatprep.subr.bf16.mxu0 %v3906
    %4776 = vmatpush1.bf16.msra.mxu0 %v3905
    %4777 = vmatprep.subr.bf16.mxu0 %v3910
    %4778 = vmatpush1.bf16.msra.mxu0 %v3909
    %4779 = vmatprep.mubr.bf16.mxu0 %v1392
    %4780 = vmatmul.mubr.bf16.gmra.mrb[0].mxu0 %v1391
    %v4781 = vpop.f32.mrb[0].mxu0
    %v4782 = vadd.f32 %v4739, %v4781
    %v4783 = vpop.f32.mrb[0].mxu0
    %v4784 = vadd.f32 %v4741, %v4783
    %v4785 = vpop.f32.mrb[0].mxu0
    %v4786 = vadd.f32 %v4743, %v4785
    %v4787 = vpop.f32.mrb[0].mxu0
    %v4788 = vadd.f32 %v4745, %v4787
    %4789 = vdwg.mxu0
    %4790 = vmatprep.subr.bf16.mxu0 %v3914
    %4791 = vmatpush1.bf16.msra.mxu0 %v3913
    %4792 = vmatprep.subr.bf16.mxu0 %v3918
    %4793 = vmatpush1.bf16.msra.mxu0 %v3917
    %4794 = vmatprep.subr.bf16.mxu0 %v3922
    %4795 = vmatpush1.bf16.msra.mxu0 %v3921
    %4796 = vmatprep.subr.bf16.mxu0 %v3926
    %4797 = vmatpush1.bf16.msra.mxu0 %v3925
    %4798 = vmatprep.subr.bf16.mxu0 %v3930
    %4799 = vmatpush1.bf16.msra.mxu0 %v3929
    %4800 = vmatprep.subr.bf16.mxu0 %v3934
    %4801 = vmatpush1.bf16.msra.mxu0 %v3933
    %4802 = vmatprep.subr.bf16.mxu0 %v3938
    %4803 = vmatpush1.bf16.msra.mxu0 %v3937
    %4804 = vmatprep.subr.bf16.mxu0 %v3942
    %4805 = vmatpush1.bf16.msra.mxu0 %v3941
    %4806 = vmatprep.subr.bf16.mxu0 %v3946
    %4807 = vmatpush1.bf16.msra.mxu0 %v3945
    %4808 = vmatprep.subr.bf16.mxu0 %v3950
    %4809 = vmatpush1.bf16.msra.mxu0 %v3949
    %4810 = vmatprep.subr.bf16.mxu0 %v3954
    %4811 = vmatpush1.bf16.msra.mxu0 %v3953
    %4812 = vmatprep.subr.bf16.mxu0 %v3958
    %4813 = vmatpush1.bf16.msra.mxu0 %v3957
    %4814 = vmatprep.subr.bf16.mxu0 %v3962
    %4815 = vmatpush1.bf16.msra.mxu0 %v3961
    %4816 = vmatprep.subr.bf16.mxu0 %v3966
    %4817 = vmatpush1.bf16.msra.mxu0 %v3965
    %4818 = vmatprep.subr.bf16.mxu0 %v3970
    %4819 = vmatpush1.bf16.msra.mxu0 %v3969
    %4820 = vmatprep.subr.bf16.mxu0 %v3974
    %4821 = vmatpush1.bf16.msra.mxu0 %v3973
    %4822 = vmatprep.mubr.bf16.mxu0 %v1394
    %4823 = vmatmul.mubr.bf16.gmra.mrb[0].mxu0 %v1393
    %v4824 = vpop.f32.mrb[0].mxu0
    %v4825 = vadd.f32 %v4782, %v4824
    %v4826 = vpop.f32.mrb[0].mxu0
    %v4827 = vadd.f32 %v4784, %v4826
    %v4828 = vpop.f32.mrb[0].mxu0
    %v4829 = vadd.f32 %v4786, %v4828
    %v4830 = vpop.f32.mrb[0].mxu0
    %v4831 = vadd.f32 %v4788, %v4830
    %4832 = vdwg.mxu0
    %4833 = vmatprep.subr.bf16.mxu0 %v3468
    %4834 = vmatpush1.bf16.msra.mxu0 %v3467
    %4835 = vmatprep.subr.bf16.mxu0 %v3472
    %4836 = vmatpush1.bf16.msra.mxu0 %v3471
    %4837 = vmatprep.subr.bf16.mxu0 %v3476
    %4838 = vmatpush1.bf16.msra.mxu0 %v3475
    %4839 = vmatprep.subr.bf16.mxu0 %v3480
    %4840 = vmatpush1.bf16.msra.mxu0 %v3479
    %4841 = vmatprep.subr.bf16.mxu0 %v3484
    %4842 = vmatpush1.bf16.msra.mxu0 %v3483
    %4843 = vmatprep.subr.bf16.mxu0 %v3488
    %4844 = vmatpush1.bf16.msra.mxu0 %v3487
    %4845 = vmatprep.subr.bf16.mxu0 %v3492
    %4846 = vmatpush1.bf16.msra.mxu0 %v3491
    %4847 = vmatprep.subr.bf16.mxu0 %v3496
    %4848 = vmatpush1.bf16.msra.mxu0 %v3495
    %4849 = vmatprep.subr.bf16.mxu0 %v3500
    %4850 = vmatpush1.bf16.msra.mxu0 %v3499
    %4851 = vmatprep.subr.bf16.mxu0 %v3504
    %4852 = vmatpush1.bf16.msra.mxu0 %v3503
    %4853 = vmatprep.subr.bf16.mxu0 %v3508
    %4854 = vmatpush1.bf16.msra.mxu0 %v3507
    %4855 = vmatprep.subr.bf16.mxu0 %v3512
    %4856 = vmatpush1.bf16.msra.mxu0 %v3511
    %4857 = vmatprep.subr.bf16.mxu0 %v3516
    %4858 = vmatpush1.bf16.msra.mxu0 %v3515
    %4859 = vmatprep.subr.bf16.mxu0 %v3520
    %4860 = vmatpush1.bf16.msra.mxu0 %v3519
    %4861 = vmatprep.subr.bf16.mxu0 %v3524
    %4862 = vmatpush1.bf16.msra.mxu0 %v3523
    %4863 = vmatprep.subr.bf16.mxu0 %v3528
    %4864 = vmatpush1.bf16.msra.mxu0 %v3527
    %4865 = vmatprep.mubr.bf16.mxu0 %v1380
    %4866 = vmatmul.mubr.bf16.gmra.mrb[0].mxu0 %v1379
    %v4867 = vpop.f32.mrb[0].mxu0
    %v4868 = vadd.f32 %v1920, %v4867
    %v4869 = vpop.f32.mrb[0].mxu0
    %v4870 = vadd.f32 %v1924, %v4869
    %v4871 = vpop.f32.mrb[0].mxu0
    %v4872 = vadd.f32 %v1920, %v4871
    %v4873 = vpop.f32.mrb[0].mxu0
    %v4874 = vadd.f32 %v1924, %v4873
    %4875 = vdwg.mxu0
    %4876 = vmatprep.subr.bf16.mxu0 %v3532
    %4877 = vmatpush1.bf16.msra.mxu0 %v3531
    %4878 = vmatprep.subr.bf16.mxu0 %v3536
    %4879 = vmatpush1.bf16.msra.mxu0 %v3535
    %4880 = vmatprep.subr.bf16.mxu0 %v3540
    %4881 = vmatpush1.bf16.msra.mxu0 %v3539
    %4882 = vmatprep.subr.bf16.mxu0 %v3544
    %4883 = vmatpush1.bf16.msra.mxu0 %v3543
    %4884 = vmatprep.subr.bf16.mxu0 %v3548
    %4885 = vmatpush1.bf16.msra.mxu0 %v3547
    %4886 = vmatprep.subr.bf16.mxu0 %v3552
    %4887 = vmatpush1.bf16.msra.mxu0 %v3551
    %4888 = vmatprep.subr.bf16.mxu0 %v3556
    %4889 = vmatpush1.bf16.msra.mxu0 %v3555
    %4890 = vmatprep.subr.bf16.mxu0 %v3560
    %4891 = vmatpush1.bf16.msra.mxu0 %v3559
    %4892 = vmatprep.subr.bf16.mxu0 %v3564
    %4893 = vmatpush1.bf16.msra.mxu0 %v3563
    %4894 = vmatprep.subr.bf16.mxu0 %v3568
    %4895 = vmatpush1.bf16.msra.mxu0 %v3567
    %4896 = vmatprep.subr.bf16.mxu0 %v3572
    %4897 = vmatpush1.bf16.msra.mxu0 %v3571
    %4898 = vmatprep.subr.bf16.mxu0 %v3576
    %4899 = vmatpush1.bf16.msra.mxu0 %v3575
    %4900 = vmatprep.subr.bf16.mxu0 %v3580
    %4901 = vmatpush1.bf16.msra.mxu0 %v3579
    %4902 = vmatprep.subr.bf16.mxu0 %v3584
    %4903 = vmatpush1.bf16.msra.mxu0 %v3583
    %4904 = vmatprep.subr.bf16.mxu0 %v3588
    %4905 = vmatpush1.bf16.msra.mxu0 %v3587
    %4906 = vmatprep.subr.bf16.mxu0 %v3592
    %4907 = vmatpush1.bf16.msra.mxu0 %v3591
    %4908 = vmatprep.mubr.bf16.mxu0 %v1382
    %4909 = vmatmul.mubr.bf16.gmra.mrb[0].mxu0 %v1381
    %v4910 = vpop.f32.mrb[0].mxu0
    %v4911 = vadd.f32 %v4868, %v4910
    %v4912 = vpop.f32.mrb[0].mxu0
    %v4913 = vadd.f32 %v4870, %v4912
    %v4914 = vpop.f32.mrb[0].mxu0
    %v4915 = vadd.f32 %v4872, %v4914
    %v4916 = vpop.f32.mrb[0].mxu0
    %v4917 = vadd.f32 %v4874, %v4916
    %4918 = vdwg.mxu0
    %4919 = vmatprep.subr.bf16.mxu0 %v3596
    %4920 = vmatpush1.bf16.msra.mxu0 %v3595
    %4921 = vmatprep.subr.bf16.mxu0 %v3600
    %4922 = vmatpush1.bf16.msra.mxu0 %v3599
    %4923 = vmatprep.subr.bf16.mxu0 %v3604
    %4924 = vmatpush1.bf16.msra.mxu0 %v3603
    %4925 = vmatprep.subr.bf16.mxu0 %v3608
    %4926 = vmatpush1.bf16.msra.mxu0 %v3607
    %4927 = vmatprep.subr.bf16.mxu0 %v3612
    %4928 = vmatpush1.bf16.msra.mxu0 %v3611
    %4929 = vmatprep.subr.bf16.mxu0 %v3616
    %4930 = vmatpush1.bf16.msra.mxu0 %v3615
    %4931 = vmatprep.subr.bf16.mxu0 %v3620
    %4932 = vmatpush1.bf16.msra.mxu0 %v3619
    %4933 = vmatprep.subr.bf16.mxu0 %v3624
    %4934 = vmatpush1.bf16.msra.mxu0 %v3623
    %4935 = vmatprep.subr.bf16.mxu0 %v3628
    %4936 = vmatpush1.bf16.msra.mxu0 %v3627
    %4937 = vmatprep.subr.bf16.mxu0 %v3632
    %4938 = vmatpush1.bf16.msra.mxu0 %v3631
    %4939 = vmatprep.subr.bf16.mxu0 %v3636
    %4940 = vmatpush1.bf16.msra.mxu0 %v3635
    %4941 = vmatprep.subr.bf16.mxu0 %v3640
    %4942 = vmatpush1.bf16.msra.mxu0 %v3639
    %4943 = vmatprep.subr.bf16.mxu0 %v3644
    %4944 = vmatpush1.bf16.msra.mxu0 %v3643
    %4945 = vmatprep.subr.bf16.mxu0 %v3648
    %4946 = vmatpush1.bf16.msra.mxu0 %v3647
    %4947 = vmatprep.subr.bf16.mxu0 %v3652
    %4948 = vmatpush1.bf16.msra.mxu0 %v3651
    %4949 = vmatprep.subr.bf16.mxu0 %v3656
    %4950 = vmatpush1.bf16.msra.mxu0 %v3655
    %4951 = vmatprep.mubr.bf16.mxu0 %v1384
    %4952 = vmatmul.mubr.bf16.gmra.mrb[0].mxu0 %v1383
    %v4953 = vpop.f32.mrb[0].mxu0
    %v4954 = vadd.f32 %v4911, %v4953
    %v4955 = vpop.f32.mrb[0].mxu0
    %v4956 = vadd.f32 %v4913, %v4955
    %v4957 = vpop.f32.mrb[0].mxu0
    %v4958 = vadd.f32 %v4915, %v4957
    %v4959 = vpop.f32.mrb[0].mxu0
    %v4960 = vadd.f32 %v4917, %v4959
    %4961 = vdwg.mxu0
    %4962 = vmatprep.subr.bf16.mxu0 %v3660
    %4963 = vmatpush1.bf16.msra.mxu0 %v3659
    %4964 = vmatprep.subr.bf16.mxu0 %v3664
    %4965 = vmatpush1.bf16.msra.mxu0 %v3663
    %4966 = vmatprep.subr.bf16.mxu0 %v3668
    %4967 = vmatpush1.bf16.msra.mxu0 %v3667
    %4968 = vmatprep.subr.bf16.mxu0 %v3672
    %4969 = vmatpush1.bf16.msra.mxu0 %v3671
    %4970 = vmatprep.subr.bf16.mxu0 %v3676
    %4971 = vmatpush1.bf16.msra.mxu0 %v3675
    %4972 = vmatprep.subr.bf16.mxu0 %v3680
    %4973 = vmatpush1.bf16.msra.mxu0 %v3679
    %4974 = vmatprep.subr.bf16.mxu0 %v3684
    %4975 = vmatpush1.bf16.msra.mxu0 %v3683
    %4976 = vmatprep.subr.bf16.mxu0 %v3688
    %4977 = vmatpush1.bf16.msra.mxu0 %v3687
    %4978 = vmatprep.subr.bf16.mxu0 %v3692
    %4979 = vmatpush1.bf16.msra.mxu0 %v3691
    %4980 = vmatprep.subr.bf16.mxu0 %v3696
    %4981 = vmatpush1.bf16.msra.mxu0 %v3695
    %4982 = vmatprep.subr.bf16.mxu0 %v3700
    %4983 = vmatpush1.bf16.msra.mxu0 %v3699
    %4984 = vmatprep.subr.bf16.mxu0 %v3704
    %4985 = vmatpush1.bf16.msra.mxu0 %v3703
    %4986 = vmatprep.subr.bf16.mxu0 %v3708
    %4987 = vmatpush1.bf16.msra.mxu0 %v3707
    %4988 = vmatprep.subr.bf16.mxu0 %v3712
    %4989 = vmatpush1.bf16.msra.mxu0 %v3711
    %4990 = vmatprep.subr.bf16.mxu0 %v3716
    %4991 = vmatpush1.bf16.msra.mxu0 %v3715
    %4992 = vmatprep.subr.bf16.mxu0 %v3720
    %4993 = vmatpush1.bf16.msra.mxu0 %v3719
    %4994 = vmatprep.mubr.bf16.mxu0 %v1386
    %4995 = vmatmul.mubr.bf16.gmra.mrb[0].mxu0 %v1385
    %v4996 = vpop.f32.mrb[0].mxu0
    %v4997 = vadd.f32 %v4954, %v4996
    %v4998 = vpop.f32.mrb[0].mxu0
    %v4999 = vadd.f32 %v4956, %v4998
    %v5000 = vpop.f32.mrb[0].mxu0
    %v5001 = vadd.f32 %v4958, %v5000
    %v5002 = vpop.f32.mrb[0].mxu0
    %v5003 = vadd.f32 %v4960, %v5002
    %5004 = vdwg.mxu0
    %5005 = vmatprep.subr.bf16.mxu0 %v3724
    %5006 = vmatpush1.bf16.msra.mxu0 %v3723
    %5007 = vmatprep.subr.bf16.mxu0 %v3728
    %5008 = vmatpush1.bf16.msra.mxu0 %v3727
    %5009 = vmatprep.subr.bf16.mxu0 %v3732
    %5010 = vmatpush1.bf16.msra.mxu0 %v3731
    %5011 = vmatprep.subr.bf16.mxu0 %v3736
    %5012 = vmatpush1.bf16.msra.mxu0 %v3735
    %5013 = vmatprep.subr.bf16.mxu0 %v3740
    %5014 = vmatpush1.bf16.msra.mxu0 %v3739
    %5015 = vmatprep.subr.bf16.mxu0 %v3744
    %5016 = vmatpush1.bf16.msra.mxu0 %v3743
    %5017 = vmatprep.subr.bf16.mxu0 %v3748
    %5018 = vmatpush1.bf16.msra.mxu0 %v3747
    %5019 = vmatprep.subr.bf16.mxu0 %v3752
    %5020 = vmatpush1.bf16.msra.mxu0 %v3751
    %5021 = vmatprep.subr.bf16.mxu0 %v3756
    %5022 = vmatpush1.bf16.msra.mxu0 %v3755
    %5023 = vmatprep.subr.bf16.mxu0 %v3760
    %5024 = vmatpush1.bf16.msra.mxu0 %v3759
    %5025 = vmatprep.subr.bf16.mxu0 %v3764
    %5026 = vmatpush1.bf16.msra.mxu0 %v3763
    %5027 = vmatprep.subr.bf16.mxu0 %v3768
    %5028 = vmatpush1.bf16.msra.mxu0 %v3767
    %5029 = vmatprep.subr.bf16.mxu0 %v3772
    %5030 = vmatpush1.bf16.msra.mxu0 %v3771
    %5031 = vmatprep.subr.bf16.mxu0 %v3776
    %5032 = vmatpush1.bf16.msra.mxu0 %v3775
    %5033 = vmatprep.subr.bf16.mxu0 %v3780
    %5034 = vmatpush1.bf16.msra.mxu0 %v3779
    %5035 = vmatprep.subr.bf16.mxu0 %v3784
    %5036 = vmatpush1.bf16.msra.mxu0 %v3783
    %5037 = vmatprep.mubr.bf16.mxu0 %v1388
    %5038 = vmatmul.mubr.bf16.gmra.mrb[0].mxu0 %v1387
    %v5039 = vpop.f32.mrb[0].mxu0
    %v5040 = vadd.f32 %v4997, %v5039
    %v5041 = vpop.f32.mrb[0].mxu0
    %v5042 = vadd.f32 %v4999, %v5041
    %v5043 = vpop.f32.mrb[0].mxu0
    %v5044 = vadd.f32 %v5001, %v5043
    %v5045 = vpop.f32.mrb[0].mxu0
    %v5046 = vadd.f32 %v5003, %v5045
    %5047 = vdwg.mxu0
    %5048 = vmatprep.subr.bf16.mxu0 %v3788
    %5049 = vmatpush1.bf16.msra.mxu0 %v3787
    %5050 = vmatprep.subr.bf16.mxu0 %v3792
    %5051 = vmatpush1.bf16.msra.mxu0 %v3791
    %5052 = vmatprep.subr.bf16.mxu0 %v3796
    %5053 = vmatpush1.bf16.msra.mxu0 %v3795
    %5054 = vmatprep.subr.bf16.mxu0 %v3800
    %5055 = vmatpush1.bf16.msra.mxu0 %v3799
    %5056 = vmatprep.subr.bf16.mxu0 %v3804
    %5057 = vmatpush1.bf16.msra.mxu0 %v3803
    %5058 = vmatprep.subr.bf16.mxu0 %v3808
    %5059 = vmatpush1.bf16.msra.mxu0 %v3807
    %5060 = vmatprep.subr.bf16.mxu0 %v3812
    %5061 = vmatpush1.bf16.msra.mxu0 %v3811
    %5062 = vmatprep.subr.bf16.mxu0 %v3816
    %5063 = vmatpush1.bf16.msra.mxu0 %v3815
    %5064 = vmatprep.subr.bf16.mxu0 %v3820
    %5065 = vmatpush1.bf16.msra.mxu0 %v3819
    %5066 = vmatprep.subr.bf16.mxu0 %v3824
    %5067 = vmatpush1.bf16.msra.mxu0 %v3823
    %5068 = vmatprep.subr.bf16.mxu0 %v3828
    %5069 = vmatpush1.bf16.msra.mxu0 %v3827
    %5070 = vmatprep.subr.bf16.mxu0 %v3832
    %5071 = vmatpush1.bf16.msra.mxu0 %v3831
    %5072 = vmatprep.subr.bf16.mxu0 %v3836
    %5073 = vmatpush1.bf16.msra.mxu0 %v3835
    %5074 = vmatprep.subr.bf16.mxu0 %v3840
    %5075 = vmatpush1.bf16.msra.mxu0 %v3839
    %5076 = vmatprep.subr.bf16.mxu0 %v3844
    %5077 = vmatpush1.bf16.msra.mxu0 %v3843
    %5078 = vmatprep.subr.bf16.mxu0 %v3848
    %5079 = vmatpush1.bf16.msra.mxu0 %v3847
    %5080 = vmatprep.mubr.bf16.mxu0 %v1390
    %5081 = vmatmul.mubr.bf16.gmra.mrb[0].mxu0 %v1389
    %v5082 = vpop.f32.mrb[0].mxu0
    %v5083 = vadd.f32 %v5040, %v5082
    %v5084 = vpop.f32.mrb[0].mxu0
    %v5085 = vadd.f32 %v5042, %v5084
    %v5086 = vpop.f32.mrb[0].mxu0
    %v5087 = vadd.f32 %v5044, %v5086
    %v5088 = vpop.f32.mrb[0].mxu0
    %v5089 = vadd.f32 %v5046, %v5088
    %5090 = vdwg.mxu0
    %5091 = vmatprep.subr.bf16.mxu0 %v3852
    %5092 = vmatpush1.bf16.msra.mxu0 %v3851
    %5093 = vmatprep.subr.bf16.mxu0 %v3856
    %5094 = vmatpush1.bf16.msra.mxu0 %v3855
    %5095 = vmatprep.subr.bf16.mxu0 %v3860
    %5096 = vmatpush1.bf16.msra.mxu0 %v3859
    %5097 = vmatprep.subr.bf16.mxu0 %v3864
    %5098 = vmatpush1.bf16.msra.mxu0 %v3863
    %5099 = vmatprep.subr.bf16.mxu0 %v3868
    %5100 = vmatpush1.bf16.msra.mxu0 %v3867
    %5101 = vmatprep.subr.bf16.mxu0 %v3872
    %5102 = vmatpush1.bf16.msra.mxu0 %v3871
    %5103 = vmatprep.subr.bf16.mxu0 %v3876
    %5104 = vmatpush1.bf16.msra.mxu0 %v3875
    %5105 = vmatprep.subr.bf16.mxu0 %v3880
    %5106 = vmatpush1.bf16.msra.mxu0 %v3879
    %5107 = vmatprep.subr.bf16.mxu0 %v3884
    %5108 = vmatpush1.bf16.msra.mxu0 %v3883
    %5109 = vmatprep.subr.bf16.mxu0 %v3888
    %5110 = vmatpush1.bf16.msra.mxu0 %v3887
    %5111 = vmatprep.subr.bf16.mxu0 %v3892
    %5112 = vmatpush1.bf16.msra.mxu0 %v3891
    %5113 = vmatprep.subr.bf16.mxu0 %v3896
    %5114 = vmatpush1.bf16.msra.mxu0 %v3895
    %5115 = vmatprep.subr.bf16.mxu0 %v3900
    %5116 = vmatpush1.bf16.msra.mxu0 %v3899
    %5117 = vmatprep.subr.bf16.mxu0 %v3904
    %5118 = vmatpush1.bf16.msra.mxu0 %v3903
    %5119 = vmatprep.subr.bf16.mxu0 %v3908
    %5120 = vmatpush1.bf16.msra.mxu0 %v3907
    %5121 = vmatprep.subr.bf16.mxu0 %v3912
    %5122 = vmatpush1.bf16.msra.mxu0 %v3911
    %5123 = vmatprep.mubr.bf16.mxu0 %v1392
    %5124 = vmatmul.mubr.bf16.gmra.mrb[0].mxu0 %v1391
    %v5125 = vpop.f32.mrb[0].mxu0
    %v5126 = vadd.f32 %v5083, %v5125
    %v5127 = vpop.f32.mrb[0].mxu0
    %v5128 = vadd.f32 %v5085, %v5127
    %v5129 = vpop.f32.mrb[0].mxu0
    %v5130 = vadd.f32 %v5087, %v5129
    %v5131 = vpop.f32.mrb[0].mxu0
    %v5132 = vadd.f32 %v5089, %v5131
    %5133 = vdwg.mxu0
    %5134 = vmatprep.subr.bf16.mxu0 %v3916
    %5135 = vmatpush1.bf16.msra.mxu0 %v3915
    %5136 = vmatprep.subr.bf16.mxu0 %v3920
    %5137 = vmatpush1.bf16.msra.mxu0 %v3919
    %5138 = vmatprep.subr.bf16.mxu0 %v3924
    %5139 = vmatpush1.bf16.msra.mxu0 %v3923
    %5140 = vmatprep.subr.bf16.mxu0 %v3928
    %5141 = vmatpush1.bf16.msra.mxu0 %v3927
    %5142 = vmatprep.subr.bf16.mxu0 %v3932
    %5143 = vmatpush1.bf16.msra.mxu0 %v3931
    %5144 = vmatprep.subr.bf16.mxu0 %v3936
    %5145 = vmatpush1.bf16.msra.mxu0 %v3935
    %5146 = vmatprep.subr.bf16.mxu0 %v3940
    %5147 = vmatpush1.bf16.msra.mxu0 %v3939
    %5148 = vmatprep.subr.bf16.mxu0 %v3944
    %5149 = vmatpush1.bf16.msra.mxu0 %v3943
    %5150 = vmatprep.subr.bf16.mxu0 %v3948
    %5151 = vmatpush1.bf16.msra.mxu0 %v3947
    %5152 = vmatprep.subr.bf16.mxu0 %v3952
    %5153 = vmatpush1.bf16.msra.mxu0 %v3951
    %5154 = vmatprep.subr.bf16.mxu0 %v3956
    %5155 = vmatpush1.bf16.msra.mxu0 %v3955
    %5156 = vmatprep.subr.bf16.mxu0 %v3960
    %5157 = vmatpush1.bf16.msra.mxu0 %v3959
    %5158 = vmatprep.subr.bf16.mxu0 %v3964
    %5159 = vmatpush1.bf16.msra.mxu0 %v3963
    %5160 = vmatprep.subr.bf16.mxu0 %v3968
    %5161 = vmatpush1.bf16.msra.mxu0 %v3967
    %5162 = vmatprep.subr.bf16.mxu0 %v3972
    %5163 = vmatpush1.bf16.msra.mxu0 %v3971
    %5164 = vmatprep.subr.bf16.mxu0 %v3976
    %5165 = vmatpush1.bf16.msra.mxu0 %v3975
    %5166 = vmatprep.mubr.bf16.mxu0 %v1394
    %5167 = vmatmul.mubr.bf16.gmra.mrb[0].mxu0 %v1393
    %v5168 = vpop.f32.mrb[0].mxu0
    %v5169 = vadd.f32 %v5126, %v5168
    %v5170 = vpop.f32.mrb[0].mxu0
    %v5171 = vadd.f32 %v5128, %v5170
    %v5172 = vpop.f32.mrb[0].mxu0
    %v5173 = vadd.f32 %v5130, %v5172
    %v5174 = vpop.f32.mrb[0].mxu0
    %v5175 = vadd.f32 %v5132, %v5174
    %5176 = vdwg.mxu0
    %v5177 = vpack.c.bf16 %v4829, %v4825
    %v5178 = vpack.c.bf16 %v4831, %v4827
    %v5179 = vpack.c.bf16 %v5173, %v5169
    %v5180 = vpack.c.bf16 %v5175, %v5171
    %v5181 = vld [vmem:[#allocation11] sm:$0xff]
    %v5182 = vld [vmem:[#allocation11 + $0x8] sm:$0xff]
    %v5183 = vld [vmem:[#allocation11 + $0x10] sm:$0xff]
    %v5184 = vld [vmem:[#allocation11 + $0x18] sm:$0xff]
    %v5185 = vld [vmem:[#allocation11 + $0x20] sm:$0xff]
    %v5186 = vld [vmem:[#allocation11 + $0x28] sm:$0xff]
    %v5187 = vld [vmem:[#allocation11 + $0x30] sm:$0xff]
    %v5188 = vld [vmem:[#allocation11 + $0x38] sm:$0xff]
    %v5189 = vld [vmem:[#allocation11 + $0x40] sm:$0xff]
    %v5190 = vld [vmem:[#allocation11 + $0x48] sm:$0xff]
    %v5191 = vld [vmem:[#allocation11 + $0x50] sm:$0xff]
    %v5192 = vld [vmem:[#allocation11 + $0x58] sm:$0xff]
    %v5193 = vld [vmem:[#allocation11 + $0x60] sm:$0xff]
    %v5194 = vld [vmem:[#allocation11 + $0x68] sm:$0xff]
    %v5195 = vld [vmem:[#allocation11 + $0x70] sm:$0xff]
    %v5196 = vld [vmem:[#allocation11 + $0x78] sm:$0xff]
    %v5197 = vld [vmem:[#allocation11 + $0x80] sm:$0xff]
    %v5198 = vld [vmem:[#allocation11 + $0x88] sm:$0xff]
    %v5199 = vld [vmem:[#allocation11 + $0x90] sm:$0xff]
    %v5200 = vld [vmem:[#allocation11 + $0x98] sm:$0xff]
    %v5201 = vld [vmem:[#allocation11 + $0xa0] sm:$0xff]
    %v5202 = vld [vmem:[#allocation11 + $0xa8] sm:$0xff]
    %v5203 = vld [vmem:[#allocation11 + $0xb0] sm:$0xff]
    %v5204 = vld [vmem:[#allocation11 + $0xb8] sm:$0xff]
    %v5205 = vld [vmem:[#allocation11 + $0xc0] sm:$0xff]
    %v5206 = vld [vmem:[#allocation11 + $0xc8] sm:$0xff]
    %v5207 = vld [vmem:[#allocation11 + $0xd0] sm:$0xff]
    %v5208 = vld [vmem:[#allocation11 + $0xd8] sm:$0xff]
    %v5209 = vld [vmem:[#allocation11 + $0xe0] sm:$0xff]
    %v5210 = vld [vmem:[#allocation11 + $0xe8] sm:$0xff]
    %v5211 = vld [vmem:[#allocation11 + $0xf0] sm:$0xff]
    %v5212 = vld [vmem:[#allocation11 + $0xf8] sm:$0xff]
    %v5213 = vld [vmem:[#allocation11 + $0x100] sm:$0xff]
    %v5214 = vld [vmem:[#allocation11 + $0x108] sm:$0xff]
    %v5215 = vld [vmem:[#allocation11 + $0x110] sm:$0xff]
    %v5216 = vld [vmem:[#allocation11 + $0x118] sm:$0xff]
    %v5217 = vld [vmem:[#allocation11 + $0x120] sm:$0xff]
    %v5218 = vld [vmem:[#allocation11 + $0x128] sm:$0xff]
    %v5219 = vld [vmem:[#allocation11 + $0x130] sm:$0xff]
    %v5220 = vld [vmem:[#allocation11 + $0x138] sm:$0xff]
    %v5221 = vld [vmem:[#allocation11 + $0x140] sm:$0xff]
    %v5222 = vld [vmem:[#allocation11 + $0x148] sm:$0xff]
    %v5223 = vld [vmem:[#allocation11 + $0x150] sm:$0xff]
    %v5224 = vld [vmem:[#allocation11 + $0x158] sm:$0xff]
    %v5225 = vld [vmem:[#allocation11 + $0x160] sm:$0xff]
    %v5226 = vld [vmem:[#allocation11 + $0x168] sm:$0xff]
    %v5227 = vld [vmem:[#allocation11 + $0x170] sm:$0xff]
    %v5228 = vld [vmem:[#allocation11 + $0x178] sm:$0xff]
    %v5229 = vld [vmem:[#allocation11 + $0x180] sm:$0xff]
    %v5230 = vld [vmem:[#allocation11 + $0x188] sm:$0xff]
    %v5231 = vld [vmem:[#allocation11 + $0x190] sm:$0xff]
    %v5232 = vld [vmem:[#allocation11 + $0x198] sm:$0xff]
    %v5233 = vld [vmem:[#allocation11 + $0x1a0] sm:$0xff]
    %v5234 = vld [vmem:[#allocation11 + $0x1a8] sm:$0xff]
    %v5235 = vld [vmem:[#allocation11 + $0x1b0] sm:$0xff]
    %v5236 = vld [vmem:[#allocation11 + $0x1b8] sm:$0xff]
    %v5237 = vld [vmem:[#allocation11 + $0x1c0] sm:$0xff]
    %v5238 = vld [vmem:[#allocation11 + $0x1c8] sm:$0xff]
    %v5239 = vld [vmem:[#allocation11 + $0x1d0] sm:$0xff]
    %v5240 = vld [vmem:[#allocation11 + $0x1d8] sm:$0xff]
    %v5241 = vld [vmem:[#allocation11 + $0x1e0] sm:$0xff]
    %v5242 = vld [vmem:[#allocation11 + $0x1e8] sm:$0xff]
    %v5243 = vld [vmem:[#allocation11 + $0x1f0] sm:$0xff]
    %v5244 = vld [vmem:[#allocation11 + $0x1f8] sm:$0xff]
    %v5245 = vld [vmem:[#allocation11 + $0x200] sm:$0xff]
    %v5246 = vld [vmem:[#allocation11 + $0x208] sm:$0xff]
    %v5247 = vld [vmem:[#allocation11 + $0x210] sm:$0xff]
    %v5248 = vld [vmem:[#allocation11 + $0x218] sm:$0xff]
    %v5249 = vld [vmem:[#allocation11 + $0x220] sm:$0xff]
    %v5250 = vld [vmem:[#allocation11 + $0x228] sm:$0xff]
    %v5251 = vld [vmem:[#allocation11 + $0x230] sm:$0xff]
    %v5252 = vld [vmem:[#allocation11 + $0x238] sm:$0xff]
    %v5253 = vld [vmem:[#allocation11 + $0x240] sm:$0xff]
    %v5254 = vld [vmem:[#allocation11 + $0x248] sm:$0xff]
    %v5255 = vld [vmem:[#allocation11 + $0x250] sm:$0xff]
    %v5256 = vld [vmem:[#allocation11 + $0x258] sm:$0xff]
    %v5257 = vld [vmem:[#allocation11 + $0x260] sm:$0xff]
    %v5258 = vld [vmem:[#allocation11 + $0x268] sm:$0xff]
    %v5259 = vld [vmem:[#allocation11 + $0x270] sm:$0xff]
    %v5260 = vld [vmem:[#allocation11 + $0x278] sm:$0xff]
    %v5261 = vld [vmem:[#allocation11 + $0x280] sm:$0xff]
    %v5262 = vld [vmem:[#allocation11 + $0x288] sm:$0xff]
    %v5263 = vld [vmem:[#allocation11 + $0x290] sm:$0xff]
    %v5264 = vld [vmem:[#allocation11 + $0x298] sm:$0xff]
    %v5265 = vld [vmem:[#allocation11 + $0x2a0] sm:$0xff]
    %v5266 = vld [vmem:[#allocation11 + $0x2a8] sm:$0xff]
    %v5267 = vld [vmem:[#allocation11 + $0x2b0] sm:$0xff]
    %v5268 = vld [vmem:[#allocation11 + $0x2b8] sm:$0xff]
    %v5269 = vld [vmem:[#allocation11 + $0x2c0] sm:$0xff]
    %v5270 = vld [vmem:[#allocation11 + $0x2c8] sm:$0xff]
    %v5271 = vld [vmem:[#allocation11 + $0x2d0] sm:$0xff]
    %v5272 = vld [vmem:[#allocation11 + $0x2d8] sm:$0xff]
    %v5273 = vld [vmem:[#allocation11 + $0x2e0] sm:$0xff]
    %v5274 = vld [vmem:[#allocation11 + $0x2e8] sm:$0xff]
    %v5275 = vld [vmem:[#allocation11 + $0x2f0] sm:$0xff]
    %v5276 = vld [vmem:[#allocation11 + $0x2f8] sm:$0xff]
    %v5277 = vld [vmem:[#allocation11 + $0x300] sm:$0xff]
    %v5278 = vld [vmem:[#allocation11 + $0x308] sm:$0xff]
    %v5279 = vld [vmem:[#allocation11 + $0x310] sm:$0xff]
    %v5280 = vld [vmem:[#allocation11 + $0x318] sm:$0xff]
    %v5281 = vld [vmem:[#allocation11 + $0x320] sm:$0xff]
    %v5282 = vld [vmem:[#allocation11 + $0x328] sm:$0xff]
    %v5283 = vld [vmem:[#allocation11 + $0x330] sm:$0xff]
    %v5284 = vld [vmem:[#allocation11 + $0x338] sm:$0xff]
    %v5285 = vld [vmem:[#allocation11 + $0x340] sm:$0xff]
    %v5286 = vld [vmem:[#allocation11 + $0x348] sm:$0xff]
    %v5287 = vld [vmem:[#allocation11 + $0x350] sm:$0xff]
    %v5288 = vld [vmem:[#allocation11 + $0x358] sm:$0xff]
    %v5289 = vld [vmem:[#allocation11 + $0x360] sm:$0xff]
    %v5290 = vld [vmem:[#allocation11 + $0x368] sm:$0xff]
    %v5291 = vld [vmem:[#allocation11 + $0x370] sm:$0xff]
    %v5292 = vld [vmem:[#allocation11 + $0x378] sm:$0xff]
    %v5293 = vld [vmem:[#allocation11 + $0x380] sm:$0xff]
    %v5294 = vld [vmem:[#allocation11 + $0x388] sm:$0xff]
    %v5295 = vld [vmem:[#allocation11 + $0x390] sm:$0xff]
    %v5296 = vld [vmem:[#allocation11 + $0x398] sm:$0xff]
    %v5297 = vld [vmem:[#allocation11 + $0x3a0] sm:$0xff]
    %v5298 = vld [vmem:[#allocation11 + $0x3a8] sm:$0xff]
    %v5299 = vld [vmem:[#allocation11 + $0x3b0] sm:$0xff]
    %v5300 = vld [vmem:[#allocation11 + $0x3b8] sm:$0xff]
    %v5301 = vld [vmem:[#allocation11 + $0x3c0] sm:$0xff]
    %v5302 = vld [vmem:[#allocation11 + $0x3c8] sm:$0xff]
    %v5303 = vld [vmem:[#allocation11 + $0x3d0] sm:$0xff]
    %v5304 = vld [vmem:[#allocation11 + $0x3d8] sm:$0xff]
    %v5305 = vld [vmem:[#allocation11 + $0x3e0] sm:$0xff]
    %v5306 = vld [vmem:[#allocation11 + $0x3e8] sm:$0xff]
    %v5307 = vld [vmem:[#allocation11 + $0x3f0] sm:$0xff]
    %v5308 = vld [vmem:[#allocation11 + $0x3f8] sm:$0xff]
    %v5309 = vld [vmem:[#allocation13] sm:$0xf]
    %v5311 = vlaneseq
    %v5312 = vshrl.u32 %v5311, 7
    %v5313 = vsub.s32 0, %v5312
    %v5314 = vrot.slane %v5309, %v5313
    %v5315 = vlaneseq
    %v5316 = vshrl.u32 %v5315, 7
    %v5317 = vsub.s32 1, %v5316
    %v5318 = vrot.slane %v5309, %v5317
    %v5319 = vlaneseq
    %v5320 = vshrl.u32 %v5319, 7
    %v5321 = vsub.s32 2, %v5320
    %v5322 = vrot.slane %v5309, %v5321
    %v5323 = vlaneseq
    %v5324 = vshrl.u32 %v5323, 7
    %v5325 = vsub.s32 3, %v5324
    %v5326 = vrot.slane %v5309, %v5325
    %v5459 = vunpack.c.l.b16 %v5181
    %v5460 = vunpack.c.h.b16 %v5181
    %v5461 = vunpack.c.l.b16 %v5182
    %v5462 = vunpack.c.h.b16 %v5182
    %v5463 = vunpack.c.l.b16 %v5183
    %v5464 = vunpack.c.h.b16 %v5183
    %v5465 = vunpack.c.l.b16 %v5184
    %v5466 = vunpack.c.h.b16 %v5184
    %v5467 = vunpack.c.l.b16 %v5185
    %v5468 = vunpack.c.h.b16 %v5185
    %v5469 = vunpack.c.l.b16 %v5186
    %v5470 = vunpack.c.h.b16 %v5186
    %v5471 = vunpack.c.l.b16 %v5187
    %v5472 = vunpack.c.h.b16 %v5187
    %v5473 = vunpack.c.l.b16 %v5188
    %v5474 = vunpack.c.h.b16 %v5188
    %v5475 = vunpack.c.l.b16 %v5189
    %v5476 = vunpack.c.h.b16 %v5189
    %v5477 = vunpack.c.l.b16 %v5190
    %v5478 = vunpack.c.h.b16 %v5190
    %v5479 = vunpack.c.l.b16 %v5191
    %v5480 = vunpack.c.h.b16 %v5191
    %v5481 = vunpack.c.l.b16 %v5192
    %v5482 = vunpack.c.h.b16 %v5192
    %v5483 = vunpack.c.l.b16 %v5193
    %v5484 = vunpack.c.h.b16 %v5193
    %v5485 = vunpack.c.l.b16 %v5194
    %v5486 = vunpack.c.h.b16 %v5194
    %v5487 = vunpack.c.l.b16 %v5195
    %v5488 = vunpack.c.h.b16 %v5195
    %v5489 = vunpack.c.l.b16 %v5196
    %v5490 = vunpack.c.h.b16 %v5196
    %v5491 = vunpack.c.l.b16 %v5197
    %v5492 = vunpack.c.h.b16 %v5197
    %v5493 = vunpack.c.l.b16 %v5198
    %v5494 = vunpack.c.h.b16 %v5198
    %v5495 = vunpack.c.l.b16 %v5199
    %v5496 = vunpack.c.h.b16 %v5199
    %v5497 = vunpack.c.l.b16 %v5200
    %v5498 = vunpack.c.h.b16 %v5200
    %v5499 = vunpack.c.l.b16 %v5201
    %v5500 = vunpack.c.h.b16 %v5201
    %v5501 = vunpack.c.l.b16 %v5202
    %v5502 = vunpack.c.h.b16 %v5202
    %v5503 = vunpack.c.l.b16 %v5203
    %v5504 = vunpack.c.h.b16 %v5203
    %v5505 = vunpack.c.l.b16 %v5204
    %v5506 = vunpack.c.h.b16 %v5204
    %v5507 = vunpack.c.l.b16 %v5205
    %v5508 = vunpack.c.h.b16 %v5205
    %v5509 = vunpack.c.l.b16 %v5206
    %v5510 = vunpack.c.h.b16 %v5206
    %v5511 = vunpack.c.l.b16 %v5207
    %v5512 = vunpack.c.h.b16 %v5207
    %v5513 = vunpack.c.l.b16 %v5208
    %v5514 = vunpack.c.h.b16 %v5208
    %v5515 = vunpack.c.l.b16 %v5209
    %v5516 = vunpack.c.h.b16 %v5209
    %v5517 = vunpack.c.l.b16 %v5210
    %v5518 = vunpack.c.h.b16 %v5210
    %v5519 = vunpack.c.l.b16 %v5211
    %v5520 = vunpack.c.h.b16 %v5211
    %v5521 = vunpack.c.l.b16 %v5212
    %v5522 = vunpack.c.h.b16 %v5212
    %v5523 = vunpack.c.l.b16 %v5213
    %v5524 = vunpack.c.h.b16 %v5213
    %v5525 = vunpack.c.l.b16 %v5214
    %v5526 = vunpack.c.h.b16 %v5214
    %v5527 = vunpack.c.l.b16 %v5215
    %v5528 = vunpack.c.h.b16 %v5215
    %v5529 = vunpack.c.l.b16 %v5216
    %v5530 = vunpack.c.h.b16 %v5216
    %v5531 = vunpack.c.l.b16 %v5217
    %v5532 = vunpack.c.h.b16 %v5217
    %v5533 = vunpack.c.l.b16 %v5218
    %v5534 = vunpack.c.h.b16 %v5218
    %v5535 = vunpack.c.l.b16 %v5219
    %v5536 = vunpack.c.h.b16 %v5219
    %v5537 = vunpack.c.l.b16 %v5220
    %v5538 = vunpack.c.h.b16 %v5220
    %v5539 = vunpack.c.l.b16 %v5221
    %v5540 = vunpack.c.h.b16 %v5221
    %v5541 = vunpack.c.l.b16 %v5222
    %v5542 = vunpack.c.h.b16 %v5222
    %v5543 = vunpack.c.l.b16 %v5223
    %v5544 = vunpack.c.h.b16 %v5223
    %v5545 = vunpack.c.l.b16 %v5224
    %v5546 = vunpack.c.h.b16 %v5224
    %v5547 = vunpack.c.l.b16 %v5225
    %v5548 = vunpack.c.h.b16 %v5225
    %v5549 = vunpack.c.l.b16 %v5226
    %v5550 = vunpack.c.h.b16 %v5226
    %v5551 = vunpack.c.l.b16 %v5227
    %v5552 = vunpack.c.h.b16 %v5227
    %v5553 = vunpack.c.l.b16 %v5228
    %v5554 = vunpack.c.h.b16 %v5228
    %v5555 = vunpack.c.l.b16 %v5229
    %v5556 = vunpack.c.h.b16 %v5229
    %v5557 = vunpack.c.l.b16 %v5230
    %v5558 = vunpack.c.h.b16 %v5230
    %v5559 = vunpack.c.l.b16 %v5231
    %v5560 = vunpack.c.h.b16 %v5231
    %v5561 = vunpack.c.l.b16 %v5232
    %v5562 = vunpack.c.h.b16 %v5232
    %v5563 = vunpack.c.l.b16 %v5233
    %v5564 = vunpack.c.h.b16 %v5233
    %v5565 = vunpack.c.l.b16 %v5234
    %v5566 = vunpack.c.h.b16 %v5234
    %v5567 = vunpack.c.l.b16 %v5235
    %v5568 = vunpack.c.h.b16 %v5235
    %v5569 = vunpack.c.l.b16 %v5236
    %v5570 = vunpack.c.h.b16 %v5236
    %v5571 = vunpack.c.l.b16 %v5237
    %v5572 = vunpack.c.h.b16 %v5237
    %v5573 = vunpack.c.l.b16 %v5238
    %v5574 = vunpack.c.h.b16 %v5238
    %v5575 = vunpack.c.l.b16 %v5239
    %v5576 = vunpack.c.h.b16 %v5239
    %v5577 = vunpack.c.l.b16 %v5240
    %v5578 = vunpack.c.h.b16 %v5240
    %v5579 = vunpack.c.l.b16 %v5241
    %v5580 = vunpack.c.h.b16 %v5241
    %v5581 = vunpack.c.l.b16 %v5242
    %v5582 = vunpack.c.h.b16 %v5242
    %v5583 = vunpack.c.l.b16 %v5243
    %v5584 = vunpack.c.h.b16 %v5243
    %v5585 = vunpack.c.l.b16 %v5244
    %v5586 = vunpack.c.h.b16 %v5244
    %v5587 = vunpack.c.l.b16 %v5245
    %v5588 = vunpack.c.h.b16 %v5245
    %v5589 = vunpack.c.l.b16 %v5246
    %v5590 = vunpack.c.h.b16 %v5246
    %v5591 = vunpack.c.l.b16 %v5247
    %v5592 = vunpack.c.h.b16 %v5247
    %v5593 = vunpack.c.l.b16 %v5248
    %v5594 = vunpack.c.h.b16 %v5248
    %v5595 = vunpack.c.l.b16 %v5249
    %v5596 = vunpack.c.h.b16 %v5249
    %v5597 = vunpack.c.l.b16 %v5250
    %v5598 = vunpack.c.h.b16 %v5250
    %v5599 = vunpack.c.l.b16 %v5251
    %v5600 = vunpack.c.h.b16 %v5251
    %v5601 = vunpack.c.l.b16 %v5252
    %v5602 = vunpack.c.h.b16 %v5252
    %v5603 = vunpack.c.l.b16 %v5253
    %v5604 = vunpack.c.h.b16 %v5253
    %v5605 = vunpack.c.l.b16 %v5254
    %v5606 = vunpack.c.h.b16 %v5254
    %v5607 = vunpack.c.l.b16 %v5255
    %v5608 = vunpack.c.h.b16 %v5255
    %v5609 = vunpack.c.l.b16 %v5256
    %v5610 = vunpack.c.h.b16 %v5256
    %v5611 = vunpack.c.l.b16 %v5257
    %v5612 = vunpack.c.h.b16 %v5257
    %v5613 = vunpack.c.l.b16 %v5258
    %v5614 = vunpack.c.h.b16 %v5258
    %v5615 = vunpack.c.l.b16 %v5259
    %v5616 = vunpack.c.h.b16 %v5259
    %v5617 = vunpack.c.l.b16 %v5260
    %v5618 = vunpack.c.h.b16 %v5260
    %v5619 = vunpack.c.l.b16 %v5261
    %v5620 = vunpack.c.h.b16 %v5261
    %v5621 = vunpack.c.l.b16 %v5262
    %v5622 = vunpack.c.h.b16 %v5262
    %v5623 = vunpack.c.l.b16 %v5263
    %v5624 = vunpack.c.h.b16 %v5263
    %v5625 = vunpack.c.l.b16 %v5264
    %v5626 = vunpack.c.h.b16 %v5264
    %v5627 = vunpack.c.l.b16 %v5265
    %v5628 = vunpack.c.h.b16 %v5265
    %v5629 = vunpack.c.l.b16 %v5266
    %v5630 = vunpack.c.h.b16 %v5266
    %v5631 = vunpack.c.l.b16 %v5267
    %v5632 = vunpack.c.h.b16 %v5267
    %v5633 = vunpack.c.l.b16 %v5268
    %v5634 = vunpack.c.h.b16 %v5268
    %v5635 = vunpack.c.l.b16 %v5269
    %v5636 = vunpack.c.h.b16 %v5269
    %v5637 = vunpack.c.l.b16 %v5270
    %v5638 = vunpack.c.h.b16 %v5270
    %v5639 = vunpack.c.l.b16 %v5271
    %v5640 = vunpack.c.h.b16 %v5271
    %v5641 = vunpack.c.l.b16 %v5272
    %v5642 = vunpack.c.h.b16 %v5272
    %v5643 = vunpack.c.l.b16 %v5273
    %v5644 = vunpack.c.h.b16 %v5273
    %v5645 = vunpack.c.l.b16 %v5274
    %v5646 = vunpack.c.h.b16 %v5274
    %v5647 = vunpack.c.l.b16 %v5275
    %v5648 = vunpack.c.h.b16 %v5275
    %v5649 = vunpack.c.l.b16 %v5276
    %v5650 = vunpack.c.h.b16 %v5276
    %v5651 = vunpack.c.l.b16 %v5277
    %v5652 = vunpack.c.h.b16 %v5277
    %v5653 = vunpack.c.l.b16 %v5278
    %v5654 = vunpack.c.h.b16 %v5278
    %v5655 = vunpack.c.l.b16 %v5279
    %v5656 = vunpack.c.h.b16 %v5279
    %v5657 = vunpack.c.l.b16 %v5280
    %v5658 = vunpack.c.h.b16 %v5280
    %v5659 = vunpack.c.l.b16 %v5281
    %v5660 = vunpack.c.h.b16 %v5281
    %v5661 = vunpack.c.l.b16 %v5282
    %v5662 = vunpack.c.h.b16 %v5282
    %v5663 = vunpack.c.l.b16 %v5283
    %v5664 = vunpack.c.h.b16 %v5283
    %v5665 = vunpack.c.l.b16 %v5284
    %v5666 = vunpack.c.h.b16 %v5284
    %v5667 = vunpack.c.l.b16 %v5285
    %v5668 = vunpack.c.h.b16 %v5285
    %v5669 = vunpack.c.l.b16 %v5286
    %v5670 = vunpack.c.h.b16 %v5286
    %v5671 = vunpack.c.l.b16 %v5287
    %v5672 = vunpack.c.h.b16 %v5287
    %v5673 = vunpack.c.l.b16 %v5288
    %v5674 = vunpack.c.h.b16 %v5288
    %v5675 = vunpack.c.l.b16 %v5289
    %v5676 = vunpack.c.h.b16 %v5289
    %v5677 = vunpack.c.l.b16 %v5290
    %v5678 = vunpack.c.h.b16 %v5290
    %v5679 = vunpack.c.l.b16 %v5291
    %v5680 = vunpack.c.h.b16 %v5291
    %v5681 = vunpack.c.l.b16 %v5292
    %v5682 = vunpack.c.h.b16 %v5292
    %v5683 = vunpack.c.l.b16 %v5293
    %v5684 = vunpack.c.h.b16 %v5293
    %v5685 = vunpack.c.l.b16 %v5294
    %v5686 = vunpack.c.h.b16 %v5294
    %v5687 = vunpack.c.l.b16 %v5295
    %v5688 = vunpack.c.h.b16 %v5295
    %v5689 = vunpack.c.l.b16 %v5296
    %v5690 = vunpack.c.h.b16 %v5296
    %v5691 = vunpack.c.l.b16 %v5297
    %v5692 = vunpack.c.h.b16 %v5297
    %v5693 = vunpack.c.l.b16 %v5298
    %v5694 = vunpack.c.h.b16 %v5298
    %v5695 = vunpack.c.l.b16 %v5299
    %v5696 = vunpack.c.h.b16 %v5299
    %v5697 = vunpack.c.l.b16 %v5300
    %v5698 = vunpack.c.h.b16 %v5300
    %v5699 = vunpack.c.l.b16 %v5301
    %v5700 = vunpack.c.h.b16 %v5301
    %v5701 = vunpack.c.l.b16 %v5302
    %v5702 = vunpack.c.h.b16 %v5302
    %v5703 = vunpack.c.l.b16 %v5303
    %v5704 = vunpack.c.h.b16 %v5303
    %v5705 = vunpack.c.l.b16 %v5304
    %v5706 = vunpack.c.h.b16 %v5304
    %v5707 = vunpack.c.l.b16 %v5305
    %v5708 = vunpack.c.h.b16 %v5305
    %v5709 = vunpack.c.l.b16 %v5306
    %v5710 = vunpack.c.h.b16 %v5306
    %v5711 = vunpack.c.l.b16 %v5307
    %v5712 = vunpack.c.h.b16 %v5307
    %v5713 = vunpack.c.l.b16 %v5308
    %v5714 = vunpack.c.h.b16 %v5308
    %v5715 = vpack.c.b16 %v5463, %v5459
    %v5716 = vpack.c.b16 %v5464, %v5460
    %v5717 = vpack.c.b16 %v5465, %v5461
    %v5718 = vpack.c.b16 %v5466, %v5462
    %v5719 = vpack.c.b16 %v5471, %v5467
    %v5720 = vpack.c.b16 %v5472, %v5468
    %v5721 = vpack.c.b16 %v5473, %v5469
    %v5722 = vpack.c.b16 %v5474, %v5470
    %v5723 = vpack.c.b16 %v5479, %v5475
    %v5724 = vpack.c.b16 %v5480, %v5476
    %v5725 = vpack.c.b16 %v5481, %v5477
    %v5726 = vpack.c.b16 %v5482, %v5478
    %v5727 = vpack.c.b16 %v5487, %v5483
    %v5728 = vpack.c.b16 %v5488, %v5484
    %v5729 = vpack.c.b16 %v5489, %v5485
    %v5730 = vpack.c.b16 %v5490, %v5486
    %v5731 = vpack.c.b16 %v5495, %v5491
    %v5732 = vpack.c.b16 %v5496, %v5492
    %v5733 = vpack.c.b16 %v5497, %v5493
    %v5734 = vpack.c.b16 %v5498, %v5494
    %v5735 = vpack.c.b16 %v5503, %v5499
    %v5736 = vpack.c.b16 %v5504, %v5500
    %v5737 = vpack.c.b16 %v5505, %v5501
    %v5738 = vpack.c.b16 %v5506, %v5502
    %v5739 = vpack.c.b16 %v5511, %v5507
    %v5740 = vpack.c.b16 %v5512, %v5508
    %v5741 = vpack.c.b16 %v5513, %v5509
    %v5742 = vpack.c.b16 %v5514, %v5510
    %v5743 = vpack.c.b16 %v5519, %v5515
    %v5744 = vpack.c.b16 %v5520, %v5516
    %v5745 = vpack.c.b16 %v5521, %v5517
    %v5746 = vpack.c.b16 %v5522, %v5518
    %v5747 = vpack.c.b16 %v5527, %v5523
    %v5748 = vpack.c.b16 %v5528, %v5524
    %v5749 = vpack.c.b16 %v5529, %v5525
    %v5750 = vpack.c.b16 %v5530, %v5526
    %v5751 = vpack.c.b16 %v5535, %v5531
    %v5752 = vpack.c.b16 %v5536, %v5532
    %v5753 = vpack.c.b16 %v5537, %v5533
    %v5754 = vpack.c.b16 %v5538, %v5534
    %v5755 = vpack.c.b16 %v5543, %v5539
    %v5756 = vpack.c.b16 %v5544, %v5540
    %v5757 = vpack.c.b16 %v5545, %v5541
    %v5758 = vpack.c.b16 %v5546, %v5542
    %v5759 = vpack.c.b16 %v5551, %v5547
    %v5760 = vpack.c.b16 %v5552, %v5548
    %v5761 = vpack.c.b16 %v5553, %v5549
    %v5762 = vpack.c.b16 %v5554, %v5550
    %v5763 = vpack.c.b16 %v5559, %v5555
    %v5764 = vpack.c.b16 %v5560, %v5556
    %v5765 = vpack.c.b16 %v5561, %v5557
    %v5766 = vpack.c.b16 %v5562, %v5558
    %v5767 = vpack.c.b16 %v5567, %v5563
    %v5768 = vpack.c.b16 %v5568, %v5564
    %v5769 = vpack.c.b16 %v5569, %v5565
    %v5770 = vpack.c.b16 %v5570, %v5566
    %v5771 = vpack.c.b16 %v5575, %v5571
    %v5772 = vpack.c.b16 %v5576, %v5572
    %v5773 = vpack.c.b16 %v5577, %v5573
    %v5774 = vpack.c.b16 %v5578, %v5574
    %v5775 = vpack.c.b16 %v5583, %v5579
    %v5776 = vpack.c.b16 %v5584, %v5580
    %v5777 = vpack.c.b16 %v5585, %v5581
    %v5778 = vpack.c.b16 %v5586, %v5582
    %v5779 = vpack.c.b16 %v5591, %v5587
    %v5780 = vpack.c.b16 %v5592, %v5588
    %v5781 = vpack.c.b16 %v5593, %v5589
    %v5782 = vpack.c.b16 %v5594, %v5590
    %v5783 = vpack.c.b16 %v5599, %v5595
    %v5784 = vpack.c.b16 %v5600, %v5596
    %v5785 = vpack.c.b16 %v5601, %v5597
    %v5786 = vpack.c.b16 %v5602, %v5598
    %v5787 = vpack.c.b16 %v5607, %v5603
    %v5788 = vpack.c.b16 %v5608, %v5604
    %v5789 = vpack.c.b16 %v5609, %v5605
    %v5790 = vpack.c.b16 %v5610, %v5606
    %v5791 = vpack.c.b16 %v5615, %v5611
    %v5792 = vpack.c.b16 %v5616, %v5612
    %v5793 = vpack.c.b16 %v5617, %v5613
    %v5794 = vpack.c.b16 %v5618, %v5614
    %v5795 = vpack.c.b16 %v5623, %v5619
    %v5796 = vpack.c.b16 %v5624, %v5620
    %v5797 = vpack.c.b16 %v5625, %v5621
    %v5798 = vpack.c.b16 %v5626, %v5622
    %v5799 = vpack.c.b16 %v5631, %v5627
    %v5800 = vpack.c.b16 %v5632, %v5628
    %v5801 = vpack.c.b16 %v5633, %v5629
    %v5802 = vpack.c.b16 %v5634, %v5630
    %v5803 = vpack.c.b16 %v5639, %v5635
    %v5804 = vpack.c.b16 %v5640, %v5636
    %v5805 = vpack.c.b16 %v5641, %v5637
    %v5806 = vpack.c.b16 %v5642, %v5638
    %v5807 = vpack.c.b16 %v5647, %v5643
    %v5808 = vpack.c.b16 %v5648, %v5644
    %v5809 = vpack.c.b16 %v5649, %v5645
    %v5810 = vpack.c.b16 %v5650, %v5646
    %v5811 = vpack.c.b16 %v5655, %v5651
    %v5812 = vpack.c.b16 %v5656, %v5652
    %v5813 = vpack.c.b16 %v5657, %v5653
    %v5814 = vpack.c.b16 %v5658, %v5654
    %v5815 = vpack.c.b16 %v5663, %v5659
    %v5816 = vpack.c.b16 %v5664, %v5660
    %v5817 = vpack.c.b16 %v5665, %v5661
    %v5818 = vpack.c.b16 %v5666, %v5662
    %v5819 = vpack.c.b16 %v5671, %v5667
    %v5820 = vpack.c.b16 %v5672, %v5668
    %v5821 = vpack.c.b16 %v5673, %v5669
    %v5822 = vpack.c.b16 %v5674, %v5670
    %v5823 = vpack.c.b16 %v5679, %v5675
    %v5824 = vpack.c.b16 %v5680, %v5676
    %v5825 = vpack.c.b16 %v5681, %v5677
    %v5826 = vpack.c.b16 %v5682, %v5678
    %v5827 = vpack.c.b16 %v5687, %v5683
    %v5828 = vpack.c.b16 %v5688, %v5684
    %v5829 = vpack.c.b16 %v5689, %v5685
    %v5830 = vpack.c.b16 %v5690, %v5686
    %v5831 = vpack.c.b16 %v5695, %v5691
    %v5832 = vpack.c.b16 %v5696, %v5692
    %v5833 = vpack.c.b16 %v5697, %v5693
    %v5834 = vpack.c.b16 %v5698, %v5694
    %v5835 = vpack.c.b16 %v5703, %v5699
    %v5836 = vpack.c.b16 %v5704, %v5700
    %v5837 = vpack.c.b16 %v5705, %v5701
    %v5838 = vpack.c.b16 %v5706, %v5702
    %v5839 = vpack.c.b16 %v5711, %v5707
    %v5840 = vpack.c.b16 %v5712, %v5708
    %v5841 = vpack.c.b16 %v5713, %v5709
    %v5842 = vpack.c.b16 %v5714, %v5710
    %5971 = vmatprep.subr.bf16.mxu0 %v5716
    %5972 = vmatpush1.bf16.msra.mxu0 %v5715
    %5973 = vmatprep.subr.bf16.mxu0 %v5720
    %5974 = vmatpush1.bf16.msra.mxu0 %v5719
    %5975 = vmatprep.subr.bf16.mxu0 %v5724
    %5976 = vmatpush1.bf16.msra.mxu0 %v5723
    %5977 = vmatprep.subr.bf16.mxu0 %v5728
    %5978 = vmatpush1.bf16.msra.mxu0 %v5727
    %5979 = vmatprep.subr.bf16.mxu0 %v5732
    %5980 = vmatpush1.bf16.msra.mxu0 %v5731
    %5981 = vmatprep.subr.bf16.mxu0 %v5736
    %5982 = vmatpush1.bf16.msra.mxu0 %v5735
    %5983 = vmatprep.subr.bf16.mxu0 %v5740
    %5984 = vmatpush1.bf16.msra.mxu0 %v5739
    %5985 = vmatprep.subr.bf16.mxu0 %v5744
    %5986 = vmatpush1.bf16.msra.mxu0 %v5743
    %5987 = vmatprep.subr.bf16.mxu0 %v5748
    %5988 = vmatpush1.bf16.msra.mxu0 %v5747
    %5989 = vmatprep.subr.bf16.mxu0 %v5752
    %5990 = vmatpush1.bf16.msra.mxu0 %v5751
    %5991 = vmatprep.subr.bf16.mxu0 %v5756
    %5992 = vmatpush1.bf16.msra.mxu0 %v5755
    %5993 = vmatprep.subr.bf16.mxu0 %v5760
    %5994 = vmatpush1.bf16.msra.mxu0 %v5759
    %5995 = vmatprep.subr.bf16.mxu0 %v5764
    %5996 = vmatpush1.bf16.msra.mxu0 %v5763
    %5997 = vmatprep.subr.bf16.mxu0 %v5768
    %5998 = vmatpush1.bf16.msra.mxu0 %v5767
    %5999 = vmatprep.subr.bf16.mxu0 %v5772
    %6000 = vmatpush1.bf16.msra.mxu0 %v5771
    %6001 = vmatprep.subr.bf16.mxu0 %v5776
    %6002 = vmatpush1.bf16.msra.mxu0 %v5775
    %6003 = vmatprep.mubr.bf16.mxu0 %v5178
    %6004 = vmatmul.mubr.bf16.gmra.mrb[0].mxu0 %v5177
    %v6005 = vpop.f32.mrb[0].mxu0
    %v6006 = vadd.f32 %v5314, %v6005
    %v6007 = vpop.f32.mrb[0].mxu0
    %v6008 = vadd.f32 %v5318, %v6007
    %v6009 = vpop.f32.mrb[0].mxu0
    %v6010 = vadd.f32 %v5314, %v6009
    %v6011 = vpop.f32.mrb[0].mxu0
    %v6012 = vadd.f32 %v5318, %v6011
    %6013 = vdwg.mxu0
    %6014 = vmatprep.subr.bf16.mxu0 %v5780
    %6015 = vmatpush1.bf16.msra.mxu0 %v5779
    %6016 = vmatprep.subr.bf16.mxu0 %v5784
    %6017 = vmatpush1.bf16.msra.mxu0 %v5783
    %6018 = vmatprep.subr.bf16.mxu0 %v5788
    %6019 = vmatpush1.bf16.msra.mxu0 %v5787
    %6020 = vmatprep.subr.bf16.mxu0 %v5792
    %6021 = vmatpush1.bf16.msra.mxu0 %v5791
    %6022 = vmatprep.subr.bf16.mxu0 %v5796
    %6023 = vmatpush1.bf16.msra.mxu0 %v5795
    %6024 = vmatprep.subr.bf16.mxu0 %v5800
    %6025 = vmatpush1.bf16.msra.mxu0 %v5799
    %6026 = vmatprep.subr.bf16.mxu0 %v5804
    %6027 = vmatpush1.bf16.msra.mxu0 %v5803
    %6028 = vmatprep.subr.bf16.mxu0 %v5808
    %6029 = vmatpush1.bf16.msra.mxu0 %v5807
    %6030 = vmatprep.subr.bf16.mxu0 %v5812
    %6031 = vmatpush1.bf16.msra.mxu0 %v5811
    %6032 = vmatprep.subr.bf16.mxu0 %v5816
    %6033 = vmatpush1.bf16.msra.mxu0 %v5815
    %6034 = vmatprep.subr.bf16.mxu0 %v5820
    %6035 = vmatpush1.bf16.msra.mxu0 %v5819
    %6036 = vmatprep.subr.bf16.mxu0 %v5824
    %6037 = vmatpush1.bf16.msra.mxu0 %v5823
    %6038 = vmatprep.subr.bf16.mxu0 %v5828
    %6039 = vmatpush1.bf16.msra.mxu0 %v5827
    %6040 = vmatprep.subr.bf16.mxu0 %v5832
    %6041 = vmatpush1.bf16.msra.mxu0 %v5831
    %6042 = vmatprep.subr.bf16.mxu0 %v5836
    %6043 = vmatpush1.bf16.msra.mxu0 %v5835
    %6044 = vmatprep.subr.bf16.mxu0 %v5840
    %6045 = vmatpush1.bf16.msra.mxu0 %v5839
    %6046 = vmatprep.mubr.bf16.mxu0 %v5180
    %6047 = vmatmul.mubr.bf16.gmra.mrb[0].mxu0 %v5179
    %v6048 = vpop.f32.mrb[0].mxu0
    %v6049 = vadd.f32 %v6006, %v6048
    %v6050 = vpop.f32.mrb[0].mxu0
    %v6051 = vadd.f32 %v6008, %v6050
    %v6052 = vpop.f32.mrb[0].mxu0
    %v6053 = vadd.f32 %v6010, %v6052
    %v6054 = vpop.f32.mrb[0].mxu0
    %v6055 = vadd.f32 %v6012, %v6054
    %6056 = vdwg.mxu0
    %6057 = vmatprep.subr.bf16.mxu0 %v5718
    %6058 = vmatpush1.bf16.msra.mxu0 %v5717
    %6059 = vmatprep.subr.bf16.mxu0 %v5722
    %6060 = vmatpush1.bf16.msra.mxu0 %v5721
    %6061 = vmatprep.subr.bf16.mxu0 %v5726
    %6062 = vmatpush1.bf16.msra.mxu0 %v5725
    %6063 = vmatprep.subr.bf16.mxu0 %v5730
    %6064 = vmatpush1.bf16.msra.mxu0 %v5729
    %6065 = vmatprep.subr.bf16.mxu0 %v5734
    %6066 = vmatpush1.bf16.msra.mxu0 %v5733
    %6067 = vmatprep.subr.bf16.mxu0 %v5738
    %6068 = vmatpush1.bf16.msra.mxu0 %v5737
    %6069 = vmatprep.subr.bf16.mxu0 %v5742
    %6070 = vmatpush1.bf16.msra.mxu0 %v5741
    %6071 = vmatprep.subr.bf16.mxu0 %v5746
    %6072 = vmatpush1.bf16.msra.mxu0 %v5745
    %6073 = vmatprep.subr.bf16.mxu0 %v5750
    %6074 = vmatpush1.bf16.msra.mxu0 %v5749
    %6075 = vmatprep.subr.bf16.mxu0 %v5754
    %6076 = vmatpush1.bf16.msra.mxu0 %v5753
    %6077 = vmatprep.subr.bf16.mxu0 %v5758
    %6078 = vmatpush1.bf16.msra.mxu0 %v5757
    %6079 = vmatprep.subr.bf16.mxu0 %v5762
    %6080 = vmatpush1.bf16.msra.mxu0 %v5761
    %6081 = vmatprep.subr.bf16.mxu0 %v5766
    %6082 = vmatpush1.bf16.msra.mxu0 %v5765
    %6083 = vmatprep.subr.bf16.mxu0 %v5770
    %6084 = vmatpush1.bf16.msra.mxu0 %v5769
    %6085 = vmatprep.subr.bf16.mxu0 %v5774
    %6086 = vmatpush1.bf16.msra.mxu0 %v5773
    %6087 = vmatprep.subr.bf16.mxu0 %v5778
    %6088 = vmatpush1.bf16.msra.mxu0 %v5777
    %6089 = vmatprep.mubr.bf16.mxu0 %v5178
    %6090 = vmatmul.mubr.bf16.gmra.mrb[0].mxu0 %v5177
    %v6091 = vpop.f32.mrb[0].mxu0
    %v6092 = vadd.f32 %v5322, %v6091
    %v6093 = vpop.f32.mrb[0].mxu0
    %v6094 = vadd.f32 %v5326, %v6093
    %v6095 = vpop.f32.mrb[0].mxu0
    %v6096 = vadd.f32 %v5322, %v6095
    %v6097 = vpop.f32.mrb[0].mxu0
    %v6098 = vadd.f32 %v5326, %v6097
    %6099 = vdwg.mxu0
    %6100 = vmatprep.subr.bf16.mxu0 %v5782
    %6101 = vmatpush1.bf16.msra.mxu0 %v5781
    %6102 = vmatprep.subr.bf16.mxu0 %v5786
    %6103 = vmatpush1.bf16.msra.mxu0 %v5785
    %6104 = vmatprep.subr.bf16.mxu0 %v5790
    %6105 = vmatpush1.bf16.msra.mxu0 %v5789
    %6106 = vmatprep.subr.bf16.mxu0 %v5794
    %6107 = vmatpush1.bf16.msra.mxu0 %v5793
    %6108 = vmatprep.subr.bf16.mxu0 %v5798
    %6109 = vmatpush1.bf16.msra.mxu0 %v5797
    %6110 = vmatprep.subr.bf16.mxu0 %v5802
    %6111 = vmatpush1.bf16.msra.mxu0 %v5801
    %6112 = vmatprep.subr.bf16.mxu0 %v5806
    %6113 = vmatpush1.bf16.msra.mxu0 %v5805
    %6114 = vmatprep.subr.bf16.mxu0 %v5810
    %6115 = vmatpush1.bf16.msra.mxu0 %v5809
    %6116 = vmatprep.subr.bf16.mxu0 %v5814
    %6117 = vmatpush1.bf16.msra.mxu0 %v5813
    %6118 = vmatprep.subr.bf16.mxu0 %v5818
    %6119 = vmatpush1.bf16.msra.mxu0 %v5817
    %6120 = vmatprep.subr.bf16.mxu0 %v5822
    %6121 = vmatpush1.bf16.msra.mxu0 %v5821
    %6122 = vmatprep.subr.bf16.mxu0 %v5826
    %6123 = vmatpush1.bf16.msra.mxu0 %v5825
    %6124 = vmatprep.subr.bf16.mxu0 %v5830
    %6125 = vmatpush1.bf16.msra.mxu0 %v5829
    %6126 = vmatprep.subr.bf16.mxu0 %v5834
    %6127 = vmatpush1.bf16.msra.mxu0 %v5833
    %6128 = vmatprep.subr.bf16.mxu0 %v5838
    %6129 = vmatpush1.bf16.msra.mxu0 %v5837
    %6130 = vmatprep.subr.bf16.mxu0 %v5842
    %6131 = vmatpush1.bf16.msra.mxu0 %v5841
    %6132 = vmatprep.mubr.bf16.mxu0 %v5180
    %6133 = vmatmul.mubr.bf16.gmra.mrb[0].mxu0 %v5179
    %v6134 = vpop.f32.mrb[0].mxu0
    %v6135 = vadd.f32 %v6092, %v6134
    %v6136 = vpop.f32.mrb[0].mxu0
    %v6137 = vadd.f32 %v6094, %v6136
    %v6138 = vpop.f32.mrb[0].mxu0
    %v6139 = vadd.f32 %v6096, %v6138
    %v6140 = vpop.f32.mrb[0].mxu0
    %v6141 = vadd.f32 %v6098, %v6140
    %6142 = vdwg.mxu0
    %v6143 = vmax.f32 %v6049, 0.0
    %v6144 = vmax.f32 %v6051, 0.0
    %v6145 = vmax.f32 %v6135, 0.0
    %v6146 = vmax.f32 %v6137, 0.0
    %v6147 = vmax.f32 %v6053, 0.0
    %v6148 = vmax.f32 %v6055, 0.0
    %v6149 = vmax.f32 %v6139, 0.0
    %v6150 = vmax.f32 %v6141, 0.0
    %v6151 = vpack.c.bf16 %v6147, %v6143
    %v6152 = vpack.c.bf16 %v6148, %v6144
    %v6153 = vpack.c.bf16 %v6149, %v6145
    %v6154 = vpack.c.bf16 %v6150, %v6146
    %v6155 = vld [vmem:[#allocation14] sm:$0xf]
    %v6156 = vld [vmem:[#allocation14 + $0x4] sm:$0xf]
    %v6157 = vld [vmem:[#allocation14 + $0x8] sm:$0xf]
    %v6158 = vld [vmem:[#allocation14 + $0xc] sm:$0xf]
    %v6159 = vld [vmem:[#allocation14 + $0x10] sm:$0xf]
    %v6160 = vld [vmem:[#allocation14 + $0x14] sm:$0xf]
    %v6161 = vld [vmem:[#allocation14 + $0x18] sm:$0xf]
    %v6162 = vld [vmem:[#allocation14 + $0x1c] sm:$0xf]
    %v6163 = vld [vmem:[#allocation14 + $0x20] sm:$0xf]
    %v6164 = vld [vmem:[#allocation14 + $0x24] sm:$0xf]
    %v6165 = vld [vmem:[#allocation14 + $0x28] sm:$0xf]
    %v6166 = vld [vmem:[#allocation14 + $0x2c] sm:$0xf]
    %v6167 = vld [vmem:[#allocation14 + $0x30] sm:$0xf]
    %v6168 = vld [vmem:[#allocation14 + $0x34] sm:$0xf]
    %v6169 = vld [vmem:[#allocation14 + $0x38] sm:$0xf]
    %v6170 = vld [vmem:[#allocation14 + $0x3c] sm:$0xf]
    %v6171 = vld [vmem:[#allocation14 + $0x40] sm:$0xf]
    %v6172 = vld [vmem:[#allocation14 + $0x44] sm:$0xf]
    %v6173 = vld [vmem:[#allocation14 + $0x48] sm:$0xf]
    %v6174 = vld [vmem:[#allocation14 + $0x4c] sm:$0xf]
    %v6175 = vld [vmem:[#allocation14 + $0x50] sm:$0xf]
    %v6176 = vld [vmem:[#allocation14 + $0x54] sm:$0xf]
    %v6177 = vld [vmem:[#allocation14 + $0x58] sm:$0xf]
    %v6178 = vld [vmem:[#allocation14 + $0x5c] sm:$0xf]
    %v6179 = vld [vmem:[#allocation14 + $0x60] sm:$0xf]
    %v6180 = vld [vmem:[#allocation14 + $0x64] sm:$0xf]
    %v6181 = vld [vmem:[#allocation14 + $0x68] sm:$0xf]
    %v6182 = vld [vmem:[#allocation14 + $0x6c] sm:$0xf]
    %v6183 = vld [vmem:[#allocation14 + $0x70] sm:$0xf]
    %v6184 = vld [vmem:[#allocation14 + $0x74] sm:$0xf]
    %v6185 = vld [vmem:[#allocation14 + $0x78] sm:$0xf]
    %v6186 = vld [vmem:[#allocation14 + $0x7c] sm:$0xf]
    %v6187 = vld [vmem:[#allocation14 + $0x80] sm:$0xf]
    %v6188 = vld [vmem:[#allocation14 + $0x84] sm:$0xf]
    %v6189 = vld [vmem:[#allocation14 + $0x88] sm:$0xf]
    %v6190 = vld [vmem:[#allocation14 + $0x8c] sm:$0xf]
    %v6191 = vld [vmem:[#allocation14 + $0x90] sm:$0xf]
    %v6192 = vld [vmem:[#allocation14 + $0x94] sm:$0xf]
    %v6193 = vld [vmem:[#allocation14 + $0x98] sm:$0xf]
    %v6194 = vld [vmem:[#allocation14 + $0x9c] sm:$0xf]
    %v6195 = vld [vmem:[#allocation14 + $0xa0] sm:$0xf]
    %v6196 = vld [vmem:[#allocation14 + $0xa4] sm:$0xf]
    %v6197 = vld [vmem:[#allocation14 + $0xa8] sm:$0xf]
    %v6198 = vld [vmem:[#allocation14 + $0xac] sm:$0xf]
    %v6199 = vld [vmem:[#allocation14 + $0xb0] sm:$0xf]
    %v6200 = vld [vmem:[#allocation14 + $0xb4] sm:$0xf]
    %v6201 = vld [vmem:[#allocation14 + $0xb8] sm:$0xf]
    %v6202 = vld [vmem:[#allocation14 + $0xbc] sm:$0xf]
    %v6203 = vld [vmem:[#allocation14 + $0xc0] sm:$0xf]
    %v6204 = vld [vmem:[#allocation14 + $0xc4] sm:$0xf]
    %v6205 = vld [vmem:[#allocation14 + $0xc8] sm:$0xf]
    %v6206 = vld [vmem:[#allocation14 + $0xcc] sm:$0xf]
    %v6207 = vld [vmem:[#allocation14 + $0xd0] sm:$0xf]
    %v6208 = vld [vmem:[#allocation14 + $0xd4] sm:$0xf]
    %v6209 = vld [vmem:[#allocation14 + $0xd8] sm:$0xf]
    %v6210 = vld [vmem:[#allocation14 + $0xdc] sm:$0xf]
    %v6211 = vld [vmem:[#allocation14 + $0xe0] sm:$0xf]
    %v6212 = vld [vmem:[#allocation14 + $0xe4] sm:$0xf]
    %v6213 = vld [vmem:[#allocation14 + $0xe8] sm:$0xf]
    %v6214 = vld [vmem:[#allocation14 + $0xec] sm:$0xf]
    %v6215 = vld [vmem:[#allocation14 + $0xf0] sm:$0xf]
    %v6216 = vld [vmem:[#allocation14 + $0xf4] sm:$0xf]
    %v6217 = vld [vmem:[#allocation14 + $0xf8] sm:$0xf]
    %v6218 = vld [vmem:[#allocation14 + $0xfc] sm:$0xf]
    %v6219 = vld [vmem:[#allocation16] sm:$0x1]
    %v6221 = vlaneseq
    %v6222 = vshrl.u32 %v6221, 7
    %v6223 = vsub.s32 0, %v6222
    %v6224 = vrot.slane %v6219, %v6223
    %v6290 = vunpack.c.l.b16 %v6155
    %v6291 = vunpack.c.l.b16 %v6156
    %v6292 = vunpack.c.l.b16 %v6157
    %v6293 = vunpack.c.l.b16 %v6158
    %v6294 = vunpack.c.l.b16 %v6159
    %v6295 = vunpack.c.l.b16 %v6160
    %v6296 = vunpack.c.l.b16 %v6161
    %v6297 = vunpack.c.l.b16 %v6162
    %v6298 = vunpack.c.l.b16 %v6163
    %v6299 = vunpack.c.l.b16 %v6164
    %v6300 = vunpack.c.l.b16 %v6165
    %v6301 = vunpack.c.l.b16 %v6166
    %v6302 = vunpack.c.l.b16 %v6167
    %v6303 = vunpack.c.l.b16 %v6168
    %v6304 = vunpack.c.l.b16 %v6169
    %v6305 = vunpack.c.l.b16 %v6170
    %v6306 = vunpack.c.l.b16 %v6171
    %v6307 = vunpack.c.l.b16 %v6172
    %v6308 = vunpack.c.l.b16 %v6173
    %v6309 = vunpack.c.l.b16 %v6174
    %v6310 = vunpack.c.l.b16 %v6175
    %v6311 = vunpack.c.l.b16 %v6176
    %v6312 = vunpack.c.l.b16 %v6177
    %v6313 = vunpack.c.l.b16 %v6178
    %v6314 = vunpack.c.l.b16 %v6179
    %v6315 = vunpack.c.l.b16 %v6180
    %v6316 = vunpack.c.l.b16 %v6181
    %v6317 = vunpack.c.l.b16 %v6182
    %v6318 = vunpack.c.l.b16 %v6183
    %v6319 = vunpack.c.l.b16 %v6184
    %v6320 = vunpack.c.l.b16 %v6185
    %v6321 = vunpack.c.l.b16 %v6186
    %v6322 = vunpack.c.l.b16 %v6187
    %v6323 = vunpack.c.l.b16 %v6188
    %v6324 = vunpack.c.l.b16 %v6189
    %v6325 = vunpack.c.l.b16 %v6190
    %v6326 = vunpack.c.l.b16 %v6191
    %v6327 = vunpack.c.l.b16 %v6192
    %v6328 = vunpack.c.l.b16 %v6193
    %v6329 = vunpack.c.l.b16 %v6194
    %v6330 = vunpack.c.l.b16 %v6195
    %v6331 = vunpack.c.l.b16 %v6196
    %v6332 = vunpack.c.l.b16 %v6197
    %v6333 = vunpack.c.l.b16 %v6198
    %v6334 = vunpack.c.l.b16 %v6199
    %v6335 = vunpack.c.l.b16 %v6200
    %v6336 = vunpack.c.l.b16 %v6201
    %v6337 = vunpack.c.l.b16 %v6202
    %v6338 = vunpack.c.l.b16 %v6203
    %v6339 = vunpack.c.l.b16 %v6204
    %v6340 = vunpack.c.l.b16 %v6205
    %v6341 = vunpack.c.l.b16 %v6206
    %v6342 = vunpack.c.l.b16 %v6207
    %v6343 = vunpack.c.l.b16 %v6208
    %v6344 = vunpack.c.l.b16 %v6209
    %v6345 = vunpack.c.l.b16 %v6210
    %v6346 = vunpack.c.l.b16 %v6211
    %v6347 = vunpack.c.l.b16 %v6212
    %v6348 = vunpack.c.l.b16 %v6213
    %v6349 = vunpack.c.l.b16 %v6214
    %v6350 = vunpack.c.l.b16 %v6215
    %v6351 = vunpack.c.l.b16 %v6216
    %v6352 = vunpack.c.l.b16 %v6217
    %v6353 = vunpack.c.l.b16 %v6218
    %v6354 = vpack.c.b16 %v6291, %v6290
    %v6355 = vpack.c.b16 %v6293, %v6292
    %v6356 = vpack.c.b16 %v6295, %v6294
    %v6357 = vpack.c.b16 %v6297, %v6296
    %v6358 = vpack.c.b16 %v6299, %v6298
    %v6359 = vpack.c.b16 %v6301, %v6300
    %v6360 = vpack.c.b16 %v6303, %v6302
    %v6361 = vpack.c.b16 %v6305, %v6304
    %v6362 = vpack.c.b16 %v6307, %v6306
    %v6363 = vpack.c.b16 %v6309, %v6308
    %v6364 = vpack.c.b16 %v6311, %v6310
    %v6365 = vpack.c.b16 %v6313, %v6312
    %v6366 = vpack.c.b16 %v6315, %v6314
    %v6367 = vpack.c.b16 %v6317, %v6316
    %v6368 = vpack.c.b16 %v6319, %v6318
    %v6369 = vpack.c.b16 %v6321, %v6320
    %v6370 = vpack.c.b16 %v6323, %v6322
    %v6371 = vpack.c.b16 %v6325, %v6324
    %v6372 = vpack.c.b16 %v6327, %v6326
    %v6373 = vpack.c.b16 %v6329, %v6328
    %v6374 = vpack.c.b16 %v6331, %v6330
    %v6375 = vpack.c.b16 %v6333, %v6332
    %v6376 = vpack.c.b16 %v6335, %v6334
    %v6377 = vpack.c.b16 %v6337, %v6336
    %v6378 = vpack.c.b16 %v6339, %v6338
    %v6379 = vpack.c.b16 %v6341, %v6340
    %v6380 = vpack.c.b16 %v6343, %v6342
    %v6381 = vpack.c.b16 %v6345, %v6344
    %v6382 = vpack.c.b16 %v6347, %v6346
    %v6383 = vpack.c.b16 %v6349, %v6348
    %v6384 = vpack.c.b16 %v6351, %v6350
    %v6385 = vpack.c.b16 %v6353, %v6352
    %6418 = vmatprep.subr.bf16.mxu0 0
    %6419 = vmatpush1.bf16.msra.mxu0 %v6354
    %6420 = vmatprep.subr.bf16.mxu0 0
    %6421 = vmatpush1.bf16.msra.mxu0 %v6355
    %6422 = vmatprep.subr.bf16.mxu0 0
    %6423 = vmatpush1.bf16.msra.mxu0 %v6356
    %6424 = vmatprep.subr.bf16.mxu0 0
    %6425 = vmatpush1.bf16.msra.mxu0 %v6357
    %6426 = vmatprep.subr.bf16.mxu0 0
    %6427 = vmatpush1.bf16.msra.mxu0 %v6358
    %6428 = vmatprep.subr.bf16.mxu0 0
    %6429 = vmatpush1.bf16.msra.mxu0 %v6359
    %6430 = vmatprep.subr.bf16.mxu0 0
    %6431 = vmatpush1.bf16.msra.mxu0 %v6360
    %6432 = vmatprep.subr.bf16.mxu0 0
    %6433 = vmatpush1.bf16.msra.mxu0 %v6361
    %6434 = vmatprep.subr.bf16.mxu0 0
    %6435 = vmatpush1.bf16.msra.mxu0 %v6362
    %6436 = vmatprep.subr.bf16.mxu0 0
    %6437 = vmatpush1.bf16.msra.mxu0 %v6363
    %6438 = vmatprep.subr.bf16.mxu0 0
    %6439 = vmatpush1.bf16.msra.mxu0 %v6364
    %6440 = vmatprep.subr.bf16.mxu0 0
    %6441 = vmatpush1.bf16.msra.mxu0 %v6365
    %6442 = vmatprep.subr.bf16.mxu0 0
    %6443 = vmatpush1.bf16.msra.mxu0 %v6366
    %6444 = vmatprep.subr.bf16.mxu0 0
    %6445 = vmatpush1.bf16.msra.mxu0 %v6367
    %6446 = vmatprep.subr.bf16.mxu0 0
    %6447 = vmatpush1.bf16.msra.mxu0 %v6368
    %6448 = vmatprep.subr.bf16.mxu0 0
    %6449 = vmatpush1.bf16.msra.mxu0 %v6369
    %6450 = vmatprep.mubr.bf16.mxu0 %v6152
    %6451 = vmatmul.mubr.bf16.gmra.mrb[0].mxu0 %v6151
    %v6452 = vpop.f32.mrb[0].mxu0
    %v6453 = vadd.f32 %v6224, %v6452
    %v6454 = vpop.f32.mrb[0].mxu0
    %v6455 = vpop.f32.mrb[0].mxu0
    %v6456 = vadd.f32 %v6224, %v6455
    %v6457 = vpop.f32.mrb[0].mxu0
    %6458 = vdwg.mxu0
    %6459 = vmatprep.subr.bf16.mxu0 0
    %6460 = vmatpush1.bf16.msra.mxu0 %v6370
    %6461 = vmatprep.subr.bf16.mxu0 0
    %6462 = vmatpush1.bf16.msra.mxu0 %v6371
    %6463 = vmatprep.subr.bf16.mxu0 0
    %6464 = vmatpush1.bf16.msra.mxu0 %v6372
    %6465 = vmatprep.subr.bf16.mxu0 0
    %6466 = vmatpush1.bf16.msra.mxu0 %v6373
    %6467 = vmatprep.subr.bf16.mxu0 0
    %6468 = vmatpush1.bf16.msra.mxu0 %v6374
    %6469 = vmatprep.subr.bf16.mxu0 0
    %6470 = vmatpush1.bf16.msra.mxu0 %v6375
    %6471 = vmatprep.subr.bf16.mxu0 0
    %6472 = vmatpush1.bf16.msra.mxu0 %v6376
    %6473 = vmatprep.subr.bf16.mxu0 0
    %6474 = vmatpush1.bf16.msra.mxu0 %v6377
    %6475 = vmatprep.subr.bf16.mxu0 0
    %6476 = vmatpush1.bf16.msra.mxu0 %v6378
    %6477 = vmatprep.subr.bf16.mxu0 0
    %6478 = vmatpush1.bf16.msra.mxu0 %v6379
    %6479 = vmatprep.subr.bf16.mxu0 0
    %6480 = vmatpush1.bf16.msra.mxu0 %v6380
    %6481 = vmatprep.subr.bf16.mxu0 0
    %6482 = vmatpush1.bf16.msra.mxu0 %v6381
    %6483 = vmatprep.subr.bf16.mxu0 0
    %6484 = vmatpush1.bf16.msra.mxu0 %v6382
    %6485 = vmatprep.subr.bf16.mxu0 0
    %6486 = vmatpush1.bf16.msra.mxu0 %v6383
    %6487 = vmatprep.subr.bf16.mxu0 0
    %6488 = vmatpush1.bf16.msra.mxu0 %v6384
    %6489 = vmatprep.subr.bf16.mxu0 0
    %6490 = vmatpush1.bf16.msra.mxu0 %v6385
    %6491 = vmatprep.mubr.bf16.mxu0 %v6154
    %6492 = vmatmul.mubr.bf16.gmra.mrb[0].mxu0 %v6153
    %v6493 = vpop.f32.mrb[0].mxu0
    %v6494 = vadd.f32 %v6453, %v6493
    %v6495 = vpop.f32.mrb[0].mxu0
    %v6496 = vpop.f32.mrb[0].mxu0
    %v6497 = vadd.f32 %v6456, %v6496
    %v6498 = vpop.f32.mrb[0].mxu0
    %6499 = vdwg.mxu0
    %6500 = vst [vmem:[#allocation17] sm:$0xff] %v6494
    %6501 = vst [vmem:[#allocation17 + $0x8] sm:$0xff] %v6497
    // Predicated region
    $region74: #{tpu_custom_call.1} parent=1 // pred_check
      _
    $region75: #{tpu_custom_call.1} parent=1 // pred_check_branch
      %6503 = sbr.rel (0) target = $region77
    $region76: #{tpu_custom_call.1} parent=1 // pred_region
      %s6505 = ssub.s32 256, 256
      %6506 = vsyncadd [#allocation4], %s6505
      %s6507 = sshll.u32 [#allocation17], 4
      %s6508 = int_to_ptr.vmem [resolvable:$true] %s6507
      %6513 = dma.vmem_to_hbm [thread:$0]  %s6508, 256, %s9, [#allocation4], 128, 128, 8
    $region77: #{tpu_custom_call.1} parent=1 // pred_fallthru
      _
    // Predicated region
    $region78: #{tpu_custom_call.1} parent=1 // pred_check
      _
    $region79: #{tpu_custom_call.1} parent=1 // pred_check_branch
      %6515 = sbr.rel (0) target = $region81
    $region80: #{tpu_custom_call.1} parent=1 // pred_region
      %6516 = dma.done [#allocation4], 256
    $region81: #{tpu_custom_call.1} parent=1 // pred_fallthru
      _
    %6517 = vsyncpa [#allocation3], 1
    %6518 = vsyncpa [#allocation6], 1
    %6519 = vsyncpa [#allocation9], 1
    %6520 = vsyncpa [#allocation12], 1
    %6521 = vsyncpa [#allocation15], 1
    %6522 = vsyncpa [#allocation4], 1

</llo_original>
